<compile_context>
chip_gen: v7x
topology: tpu7x:2x2x1
jax: 0.10.0
libtpu: 0.0.40
codegen_flags: <defaults>
</compile_context>

<pallas_src>
import numpy as np
import jax
import jax.numpy as jnp
from jax.experimental import pallas as pl
from jax.experimental.pallas import tpu as pltpu  # noqa: F401  (kept for TPU-specific tuning hooks)

NEG = -1.0e30  # -inf surrogate for max-pool padding (finite inputs only)

# Per-inception-block parameter ordering passed to the kernel.
BLOCK_KEYS = ('w1', 'b1', 'w13', 'b13', 'w3f', 'b3', 'w15', 'b15',
              'w5f', 'b5', 'wp', 'bp', 'bn_scale', 'bn_shift')


# ----------------------------------------------------------------------------
# Fused kernel factory (closes over static B and the per-block sequence lengths)
# ----------------------------------------------------------------------------
def _make_fused_kernel(B, L0):
    L1 = (L0 - 3) // 2 + 1
    L2 = (L1 - 3) // 2 + 1
    L3 = (L2 - 3) // 2 + 1
    if L3 != 1:
        raise ValueError(
            f"seq_len={L0} does not reduce to length 1 after three MaxPool1d(3,2); "
            "fc1(in_features=512) requires the final feature map length to be 1.")

    def relu(v):
        return jnp.maximum(v, 0.0)

    def conv1x1(x2, w_ref, b_ref):
        # (B*L, Cin) @ (Cin, F) + (1, F)
        return jnp.dot(x2, w_ref[...], preferred_element_type=jnp.float32) + b_ref[...]

    def convk(h, L, k, wf_ref, b_ref):
        # 'same' conv of kernel size k via im2col: one (B*L, k*F) x (k*F, F) matmul.
        C = h.shape[1]
        pad = k // 2
        cols = []
        for b in range(B):
            seg = h[b * L:(b + 1) * L, :]                       # (L, C)
            zp = jnp.zeros((pad, C), h.dtype)
            segp = jnp.concatenate([zp, seg, zp], axis=0)       # (L + 2*pad, C)
            cols.append(jnp.concatenate([segp[j:j + L, :] for j in range(k)], axis=1))
        cat = jnp.concatenate(cols, axis=0) if B > 1 else cols[0]   # (B*L, k*C)
        return jnp.dot(cat, wf_ref[...], preferred_element_type=jnp.float32) + b_ref[...]

    def maxpool3_same(x2, L):
        # MaxPool1d(kernel=3, stride=1, padding=1), per batch segment.
        C = x2.shape[1]
        outs = []
        for b in range(B):
            seg = x2[b * L:(b + 1) * L, :]
            npad = jnp.full((1, C), NEG, x2.dtype)
            segp = jnp.concatenate([npad, seg, npad], axis=0)   # (L + 2, C)
            outs.append(jnp.maximum(jnp.maximum(segp[0:L, :], segp[1:L + 1, :]),
                                    segp[2:L + 2, :]))
        return jnp.concatenate(outs, axis=0) if B > 1 else outs[0]

    def maxpool3_s2(x2, L):
        # Inter-block MaxPool1d(kernel=3, stride=2), VALID padding; folded (B*L, C) -> (B*Lp, C)
        Lp = (L - 3) // 2 + 1
        rows = []
        for b in range(B):
            for lp in range(Lp):
                r0 = b * L + 2 * lp
                rows.append(jnp.max(x2[r0:r0 + 3, :], axis=0, keepdims=True))
        pooled = jnp.concatenate(rows, axis=0) if len(rows) > 1 else rows[0]
        return pooled, Lp

    def inception(x2, L, refs):
        (w1, b1, w13, b13, w3f, b3, w15, b15, w5f, b5, wp, bp, bns, bnt) = refs
        p1 = relu(conv1x1(x2, w1, b1))                                   # conv1x1
        p2 = relu(convk(relu(conv1x1(x2, w13, b13)), L, 3, w3f, b3))     # 1x1 -> conv3
        p3 = relu(convk(relu(conv1x1(x2, w15, b15)), L, 5, w5f, b5))     # 1x1 -> conv5
        p4 = relu(conv1x1(maxpool3_same(x2, L), wp, bp))                 # pool -> 1x1
        cat = jnp.concatenate([p1, p2, p3, p4], axis=1)                  # (B*L, 4F), lane-dense
        return cat * bns[...] + bnt[...]                                 # BatchNorm1d (eval)

    def kernel(*refs):
        x_ref = refs[0]
        blocks = [refs[1 + 14 * i: 1 + 14 * (i + 1)] for i in range(3)]
        hw1, hb1, hs, ht, hw2, hb2 = refs[43:49]
        o_ref = refs[49]

        y = inception(x_ref[...], L0, blocks[0])      # (B*L0, 128)
        y, _ = maxpool3_s2(y, L0)                     # (B*L1, 128)
        y = inception(y, L1, blocks[1])               # (B*L1, 256)
        y, _ = maxpool3_s2(y, L1)                     # (B*L2, 256)
        y = inception(y, L2, blocks[2])               # (B*L2, 512)
        y, _ = maxpool3_s2(y, L2)                     # (B*L3, 512) = (B, 512) since L3 == 1

        # FC head: fc1 -> bn1 -> relu -> (dropout = identity) -> fc2 -> sigmoid
        h = jnp.dot(y, hw1[...], preferred_element_type=jnp.float32) + hb1[...]
        h = relu(h * hs[...] + ht[...])               # BatchNorm1d (eval) + ReLU
        z = jnp.dot(h, hw2[...], preferred_element_type=jnp.float32) + hb2[...]
        o_ref[...] = 1.0 / (1.0 + jnp.exp(-z))        # sigmoid

    return kernel


# ----------------------------------------------------------------------------
# Wrapper: single pallas_call for the whole forward pass
# ----------------------------------------------------------------------------
@jax.jit
def forward(x, params):
    """x: (B, L, embedding_dim) float32 -> (B, 1) float32."""
    B, L, E = x.shape
    kernel = _make_fused_kernel(B, L)

    args = [x.reshape(B * L, E)]                      # fold batch into the matmul M dim
    for name in ('inc1', 'inc2', 'inc3'):
        p = params[name]
        args += [p[k] for k in BLOCK_KEYS]
    h = params['head']
    args += [h['w1'], h['b1'], h['bn_scale'], h['bn_shift'], h['w2t'], h['b2']]

    return pl.pallas_call(
        kernel,
        out_shape=jax.ShapeDtypeStruct((B, 1), jnp.float32),
    )(*args)


# ----------------------------------------------------------------------------
# Deterministic parameter init (shapes per module __init__; synthetic weights)
# ----------------------------------------------------------------------------
def init_conv(key, cin, cout, k):
    k1, k2 = jax.random.split(key)
    bound = 1.0 / np.sqrt(cin * k)
    w = jax.random.uniform(k1, (k, cin, cout), jnp.float32, -bound, bound)
    b = jax.random.uniform(k2, (1, cout), jnp.float32, -bound, bound)
    return w, b


def init_inception(key, cin, F):
    ks = jax.random.split(key, 6)
    w1, b1 = init_conv(ks[0], cin, F, 1)
    w13, b13 = init_conv(ks[1], cin, F, 1)
    w3, b3 = init_conv(ks[2], F, F, 3)
    w15, b15 = init_conv(ks[3], cin, F, 1)
    w5, b5 = init_conv(ks[4], F, F, 5)
    wp, bp = init_conv(ks[5], cin, F, 1)
    eps = 1e-5
    # BatchNorm1d defaults (eval): gamma=1, beta=0, running_mean=0, running_var=1
    scale = jnp.full((1, 4 * F), 1.0 / np.sqrt(1.0 + eps), jnp.float32)
    shift = jnp.zeros((1, 4 * F), jnp.float32)
    return dict(w1=w1[0], b1=b1,
                w13=w13[0], b13=b13, w3f=w3.reshape(3 * F, F), b3=b3,
                w15=w15[0], b15=b15, w5f=w5.reshape(5 * F, F), b5=b5,
                wp=wp[0], bp=bp,
                bn_scale=scale, bn_shift=shift)


def init_head(key):
    k1, k2, k3, k4 = jax.random.split(key, 4)
    bound1 = 1.0 / np.sqrt(512.0)
    w1 = jax.random.uniform(k1, (512, 256), jnp.float32, -bound1, bound1)
    b1 = jax.random.uniform(k2, (1, 256), jnp.float32, -bound1, bound1)
    bound2 = 1.0 / np.sqrt(256.0)
    w2t = jax.random.uniform(k3, (256, 1), jnp.float32, -bound2, bound2)   # fc2 weight, transposed
    b2 = jax.random.uniform(k4, (1, 1), jnp.float32, -bound2, bound2)
    eps = 1e-5
    scale = jnp.full((1, 256), 1.0 / np.sqrt(1.0 + eps), jnp.float32)
    shift = jnp.zeros((1, 256), jnp.float32)
    return dict(w1=w1, b1=b1, w2t=w2t, b2=b2, bn_scale=scale, bn_shift=shift)


if __name__ == "__main__":
    key = jax.random.PRNGKey(0)
    kx, k1, k2, k3, kh = jax.random.split(key, 5)

    # x: (batch, seq_len, embedding_dim). seq_len=18 -> pools give 18 -> 8 -> 3 -> 1,
    # which matches fc1's in_features = 128*4 (flattened length-1 feature map).
    B, L, E = 2, 18, 21
    x = jax.random.normal(kx, (B, L, E), dtype=jnp.float32)

    params = dict(
        inc1=init_inception(k1, cin=21, F=32),
        inc2=init_inception(k2, cin=32 * 4, F=64),
        inc3=init_inception(k3, cin=64 * 4, F=128),
        head=init_head(kh),
    )

    out = forward(x, params)
    jax.block_until_ready(out)
    assert out.shape == (B, 1) and out.dtype == jnp.float32
    assert bool(jnp.all(jnp.isfinite(out)))
    # TODO(synk): training-mode BatchNorm statistics updates and Dropout sampling are not implemented
    # (eval-mode semantics only, as in the previous version).
    print("KERNEL_OK")
</pallas_src>

<mosaic_0001>
module attributes {stable_mosaic.version = 11 : i64} {
  func.func @kernel(%arg0: memref<36x21xf32, #tpu.memory_space<vmem>>, %arg1: memref<21x32xf32, #tpu.memory_space<vmem>>, %arg2: memref<1x32xf32, #tpu.memory_space<vmem>>, %arg3: memref<21x32xf32, #tpu.memory_space<vmem>>, %arg4: memref<1x32xf32, #tpu.memory_space<vmem>>, %arg5: memref<96x32xf32, #tpu.memory_space<vmem>>, %arg6: memref<1x32xf32, #tpu.memory_space<vmem>>, %arg7: memref<21x32xf32, #tpu.memory_space<vmem>>, %arg8: memref<1x32xf32, #tpu.memory_space<vmem>>, %arg9: memref<160x32xf32, #tpu.memory_space<vmem>>, %arg10: memref<1x32xf32, #tpu.memory_space<vmem>>, %arg11: memref<21x32xf32, #tpu.memory_space<vmem>>, %arg12: memref<1x32xf32, #tpu.memory_space<vmem>>, %arg13: memref<1x128xf32, #tpu.memory_space<vmem>>, %arg14: memref<1x128xf32, #tpu.memory_space<vmem>>, %arg15: memref<128x64xf32, #tpu.memory_space<vmem>>, %arg16: memref<1x64xf32, #tpu.memory_space<vmem>>, %arg17: memref<128x64xf32, #tpu.memory_space<vmem>>, %arg18: memref<1x64xf32, #tpu.memory_space<vmem>>, %arg19: memref<192x64xf32, #tpu.memory_space<vmem>>, %arg20: memref<1x64xf32, #tpu.memory_space<vmem>>, %arg21: memref<128x64xf32, #tpu.memory_space<vmem>>, %arg22: memref<1x64xf32, #tpu.memory_space<vmem>>, %arg23: memref<320x64xf32, #tpu.memory_space<vmem>>, %arg24: memref<1x64xf32, #tpu.memory_space<vmem>>, %arg25: memref<128x64xf32, #tpu.memory_space<vmem>>, %arg26: memref<1x64xf32, #tpu.memory_space<vmem>>, %arg27: memref<1x256xf32, #tpu.memory_space<vmem>>, %arg28: memref<1x256xf32, #tpu.memory_space<vmem>>, %arg29: memref<256x128xf32, #tpu.memory_space<vmem>>, %arg30: memref<1x128xf32, #tpu.memory_space<vmem>>, %arg31: memref<256x128xf32, #tpu.memory_space<vmem>>, %arg32: memref<1x128xf32, #tpu.memory_space<vmem>>, %arg33: memref<384x128xf32, #tpu.memory_space<vmem>>, %arg34: memref<1x128xf32, #tpu.memory_space<vmem>>, %arg35: memref<256x128xf32, #tpu.memory_space<vmem>>, %arg36: memref<1x128xf32, #tpu.memory_space<vmem>>, %arg37: memref<640x128xf32, #tpu.memory_space<vmem>>, %arg38: memref<1x128xf32, #tpu.memory_space<vmem>>, %arg39: memref<256x128xf32, #tpu.memory_space<vmem>>, %arg40: memref<1x128xf32, #tpu.memory_space<vmem>>, %arg41: memref<1x512xf32, #tpu.memory_space<vmem>>, %arg42: memref<1x512xf32, #tpu.memory_space<vmem>>, %arg43: memref<512x256xf32, #tpu.memory_space<vmem>>, %arg44: memref<1x256xf32, #tpu.memory_space<vmem>>, %arg45: memref<1x256xf32, #tpu.memory_space<vmem>>, %arg46: memref<1x256xf32, #tpu.memory_space<vmem>>, %arg47: memref<256x1xf32, #tpu.memory_space<vmem>>, %arg48: memref<1x1xf32, #tpu.memory_space<vmem>>, %arg49: memref<2x1xf32, #tpu.memory_space<vmem>>) attributes {dimension_semantics = [], scalar_prefetch = 0 : i64, scratch_operands = 0 : i64, tpu.core_type = #tpu.core_type<tc>} {
    %c0 = arith.constant 0 : index
    %c0_0 = arith.constant 0 : index
    %0 = vector.load %arg0[%c0, %c0_0] : memref<36x21xf32, #tpu.memory_space<vmem>>, vector<36x21xf32>
    %c0_1 = arith.constant 0 : index
    %c0_2 = arith.constant 0 : index
    %1 = vector.load %arg1[%c0_1, %c0_2] : memref<21x32xf32, #tpu.memory_space<vmem>>, vector<21x32xf32>
    %cst = arith.constant dense<0.000000e+00> : vector<36x32xf32>
    %2 = tpu.matmul %0, %1, %cst {dimension_numbers = #tpu.dot_dimension_numbers<[1], [0], [0], [1], [0, 0, 1, 1], [], []>} : vector<36x21xf32>, vector<21x32xf32>, vector<36x32xf32> -> vector<36x32xf32>
    %c0_3 = arith.constant 0 : index
    %c0_4 = arith.constant 0 : index
    %3 = vector.load %arg2[%c0_3, %c0_4] : memref<1x32xf32, #tpu.memory_space<vmem>>, vector<1x32xf32>
    %4 = vector.broadcast %3 : vector<1x32xf32> to vector<36x32xf32>
    %5 = arith.addf %2, %4 : vector<36x32xf32>
    %cst_5 = arith.constant 0.000000e+00 : f32
    %6 = vector.broadcast %cst_5 : f32 to vector<36x32xf32>
    %7 = arith.maximumf %5, %6 : vector<36x32xf32>
    %c0_6 = arith.constant 0 : index
    %c0_7 = arith.constant 0 : index
    %8 = vector.load %arg3[%c0_6, %c0_7] : memref<21x32xf32, #tpu.memory_space<vmem>>, vector<21x32xf32>
    %cst_8 = arith.constant dense<0.000000e+00> : vector<36x32xf32>
    %9 = tpu.matmul %0, %8, %cst_8 {dimension_numbers = #tpu.dot_dimension_numbers<[1], [0], [0], [1], [0, 0, 1, 1], [], []>} : vector<36x21xf32>, vector<21x32xf32>, vector<36x32xf32> -> vector<36x32xf32>
    %c0_9 = arith.constant 0 : index
    %c0_10 = arith.constant 0 : index
    %10 = vector.load %arg4[%c0_9, %c0_10] : memref<1x32xf32, #tpu.memory_space<vmem>>, vector<1x32xf32>
    %11 = vector.broadcast %10 : vector<1x32xf32> to vector<36x32xf32>
    %12 = arith.addf %9, %11 : vector<36x32xf32>
    %cst_11 = arith.constant 0.000000e+00 : f32
    %13 = vector.broadcast %cst_11 : f32 to vector<36x32xf32>
    %14 = arith.maximumf %12, %13 : vector<36x32xf32>
    %15 = vector.extract_strided_slice %14 {offsets = [0, 0], sizes = [18, 32], strides = [1, 1]} : vector<36x32xf32> to vector<18x32xf32>
    %cst_12 = arith.constant 0.000000e+00 : f32
    %16 = vector.broadcast %cst_12 : f32 to vector<1x32xf32>
    %17 = tpu.concatenate %16, %15, %16 in 0 : vector<1x32xf32>, vector<18x32xf32>, vector<1x32xf32> -> vector<20x32xf32>
    %18 = vector.extract_strided_slice %17 {offsets = [0, 0], sizes = [18, 32], strides = [1, 1]} : vector<20x32xf32> to vector<18x32xf32>
    %19 = vector.extract_strided_slice %17 {offsets = [1, 0], sizes = [18, 32], strides = [1, 1]} : vector<20x32xf32> to vector<18x32xf32>
    %20 = vector.extract_strided_slice %17 {offsets = [2, 0], sizes = [18, 32], strides = [1, 1]} : vector<20x32xf32> to vector<18x32xf32>
    %21 = tpu.concatenate %18, %19, %20 in 1 : vector<18x32xf32>, vector<18x32xf32>, vector<18x32xf32> -> vector<18x96xf32>
    %22 = vector.extract_strided_slice %14 {offsets = [18, 0], sizes = [18, 32], strides = [1, 1]} : vector<36x32xf32> to vector<18x32xf32>
    %cst_13 = arith.constant 0.000000e+00 : f32
    %23 = vector.broadcast %cst_13 : f32 to vector<1x32xf32>
    %24 = tpu.concatenate %23, %22, %23 in 0 : vector<1x32xf32>, vector<18x32xf32>, vector<1x32xf32> -> vector<20x32xf32>
    %25 = vector.extract_strided_slice %24 {offsets = [0, 0], sizes = [18, 32], strides = [1, 1]} : vector<20x32xf32> to vector<18x32xf32>
    %26 = vector.extract_strided_slice %24 {offsets = [1, 0], sizes = [18, 32], strides = [1, 1]} : vector<20x32xf32> to vector<18x32xf32>
    %27 = vector.extract_strided_slice %24 {offsets = [2, 0], sizes = [18, 32], strides = [1, 1]} : vector<20x32xf32> to vector<18x32xf32>
    %28 = tpu.concatenate %25, %26, %27 in 1 : vector<18x32xf32>, vector<18x32xf32>, vector<18x32xf32> -> vector<18x96xf32>
    %29 = tpu.concatenate %21, %28 in 0 : vector<18x96xf32>, vector<18x96xf32> -> vector<36x96xf32>
    %c0_14 = arith.constant 0 : index
    %c0_15 = arith.constant 0 : index
    %30 = vector.load %arg5[%c0_14, %c0_15] : memref<96x32xf32, #tpu.memory_space<vmem>>, vector<96x32xf32>
    %cst_16 = arith.constant dense<0.000000e+00> : vector<36x32xf32>
    %31 = tpu.matmul %29, %30, %cst_16 {dimension_numbers = #tpu.dot_dimension_numbers<[1], [0], [0], [1], [0, 0, 1, 1], [], []>} : vector<36x96xf32>, vector<96x32xf32>, vector<36x32xf32> -> vector<36x32xf32>
    %c0_17 = arith.constant 0 : index
    %c0_18 = arith.constant 0 : index
    %32 = vector.load %arg6[%c0_17, %c0_18] : memref<1x32xf32, #tpu.memory_space<vmem>>, vector<1x32xf32>
    %33 = vector.broadcast %32 : vector<1x32xf32> to vector<36x32xf32>
    %34 = arith.addf %31, %33 : vector<36x32xf32>
    %cst_19 = arith.constant 0.000000e+00 : f32
    %35 = vector.broadcast %cst_19 : f32 to vector<36x32xf32>
    %36 = arith.maximumf %34, %35 : vector<36x32xf32>
    %c0_20 = arith.constant 0 : index
    %c0_21 = arith.constant 0 : index
    %37 = vector.load %arg7[%c0_20, %c0_21] : memref<21x32xf32, #tpu.memory_space<vmem>>, vector<21x32xf32>
    %cst_22 = arith.constant dense<0.000000e+00> : vector<36x32xf32>
    %38 = tpu.matmul %0, %37, %cst_22 {dimension_numbers = #tpu.dot_dimension_numbers<[1], [0], [0], [1], [0, 0, 1, 1], [], []>} : vector<36x21xf32>, vector<21x32xf32>, vector<36x32xf32> -> vector<36x32xf32>
    %c0_23 = arith.constant 0 : index
    %c0_24 = arith.constant 0 : index
    %39 = vector.load %arg8[%c0_23, %c0_24] : memref<1x32xf32, #tpu.memory_space<vmem>>, vector<1x32xf32>
    %40 = vector.broadcast %39 : vector<1x32xf32> to vector<36x32xf32>
    %41 = arith.addf %38, %40 : vector<36x32xf32>
    %cst_25 = arith.constant 0.000000e+00 : f32
    %42 = vector.broadcast %cst_25 : f32 to vector<36x32xf32>
    %43 = arith.maximumf %41, %42 : vector<36x32xf32>
    %44 = vector.extract_strided_slice %43 {offsets = [0, 0], sizes = [18, 32], strides = [1, 1]} : vector<36x32xf32> to vector<18x32xf32>
    %cst_26 = arith.constant 0.000000e+00 : f32
    %45 = vector.broadcast %cst_26 : f32 to vector<2x32xf32>
    %46 = tpu.concatenate %45, %44, %45 in 0 : vector<2x32xf32>, vector<18x32xf32>, vector<2x32xf32> -> vector<22x32xf32>
    %47 = vector.extract_strided_slice %46 {offsets = [0, 0], sizes = [18, 32], strides = [1, 1]} : vector<22x32xf32> to vector<18x32xf32>
    %48 = vector.extract_strided_slice %46 {offsets = [1, 0], sizes = [18, 32], strides = [1, 1]} : vector<22x32xf32> to vector<18x32xf32>
    %49 = vector.extract_strided_slice %46 {offsets = [2, 0], sizes = [18, 32], strides = [1, 1]} : vector<22x32xf32> to vector<18x32xf32>
    %50 = vector.extract_strided_slice %46 {offsets = [3, 0], sizes = [18, 32], strides = [1, 1]} : vector<22x32xf32> to vector<18x32xf32>
    %51 = vector.extract_strided_slice %46 {offsets = [4, 0], sizes = [18, 32], strides = [1, 1]} : vector<22x32xf32> to vector<18x32xf32>
    %52 = tpu.concatenate %47, %48, %49, %50, %51 in 1 : vector<18x32xf32>, vector<18x32xf32>, vector<18x32xf32>, vector<18x32xf32>, vector<18x32xf32> -> vector<18x160xf32>
    %53 = vector.extract_strided_slice %43 {offsets = [18, 0], sizes = [18, 32], strides = [1, 1]} : vector<36x32xf32> to vector<18x32xf32>
    %cst_27 = arith.constant 0.000000e+00 : f32
    %54 = vector.broadcast %cst_27 : f32 to vector<2x32xf32>
    %55 = tpu.concatenate %54, %53, %54 in 0 : vector<2x32xf32>, vector<18x32xf32>, vector<2x32xf32> -> vector<22x32xf32>
    %56 = vector.extract_strided_slice %55 {offsets = [0, 0], sizes = [18, 32], strides = [1, 1]} : vector<22x32xf32> to vector<18x32xf32>
    %57 = vector.extract_strided_slice %55 {offsets = [1, 0], sizes = [18, 32], strides = [1, 1]} : vector<22x32xf32> to vector<18x32xf32>
    %58 = vector.extract_strided_slice %55 {offsets = [2, 0], sizes = [18, 32], strides = [1, 1]} : vector<22x32xf32> to vector<18x32xf32>
    %59 = vector.extract_strided_slice %55 {offsets = [3, 0], sizes = [18, 32], strides = [1, 1]} : vector<22x32xf32> to vector<18x32xf32>
    %60 = vector.extract_strided_slice %55 {offsets = [4, 0], sizes = [18, 32], strides = [1, 1]} : vector<22x32xf32> to vector<18x32xf32>
    %61 = tpu.concatenate %56, %57, %58, %59, %60 in 1 : vector<18x32xf32>, vector<18x32xf32>, vector<18x32xf32>, vector<18x32xf32>, vector<18x32xf32> -> vector<18x160xf32>
    %62 = tpu.concatenate %52, %61 in 0 : vector<18x160xf32>, vector<18x160xf32> -> vector<36x160xf32>
    %c0_28 = arith.constant 0 : index
    %c0_29 = arith.constant 0 : index
    %63 = vector.load %arg9[%c0_28, %c0_29] : memref<160x32xf32, #tpu.memory_space<vmem>>, vector<160x32xf32>
    %cst_30 = arith.constant dense<0.000000e+00> : vector<36x32xf32>
    %64 = tpu.matmul %62, %63, %cst_30 {dimension_numbers = #tpu.dot_dimension_numbers<[1], [0], [0], [1], [0, 0, 1, 1], [], []>} : vector<36x160xf32>, vector<160x32xf32>, vector<36x32xf32> -> vector<36x32xf32>
    %c0_31 = arith.constant 0 : index
    %c0_32 = arith.constant 0 : index
    %65 = vector.load %arg10[%c0_31, %c0_32] : memref<1x32xf32, #tpu.memory_space<vmem>>, vector<1x32xf32>
    %66 = vector.broadcast %65 : vector<1x32xf32> to vector<36x32xf32>
    %67 = arith.addf %64, %66 : vector<36x32xf32>
    %cst_33 = arith.constant 0.000000e+00 : f32
    %68 = vector.broadcast %cst_33 : f32 to vector<36x32xf32>
    %69 = arith.maximumf %67, %68 : vector<36x32xf32>
    %70 = vector.extract_strided_slice %0 {offsets = [0, 0], sizes = [18, 21], strides = [1, 1]} : vector<36x21xf32> to vector<18x21xf32>
    %cst_34 = arith.constant -1.000000e+30 : f32
    %71 = vector.broadcast %cst_34 : f32 to vector<1x21xf32>
    %72 = tpu.concatenate %71, %70, %71 in 0 : vector<1x21xf32>, vector<18x21xf32>, vector<1x21xf32> -> vector<20x21xf32>
    %73 = vector.extract_strided_slice %72 {offsets = [0, 0], sizes = [18, 21], strides = [1, 1]} : vector<20x21xf32> to vector<18x21xf32>
    %74 = vector.extract_strided_slice %72 {offsets = [1, 0], sizes = [18, 21], strides = [1, 1]} : vector<20x21xf32> to vector<18x21xf32>
    %75 = arith.maximumf %73, %74 : vector<18x21xf32>
    %76 = vector.extract_strided_slice %72 {offsets = [2, 0], sizes = [18, 21], strides = [1, 1]} : vector<20x21xf32> to vector<18x21xf32>
    %77 = arith.maximumf %75, %76 : vector<18x21xf32>
    %78 = vector.extract_strided_slice %0 {offsets = [18, 0], sizes = [18, 21], strides = [1, 1]} : vector<36x21xf32> to vector<18x21xf32>
    %cst_35 = arith.constant -1.000000e+30 : f32
    %79 = vector.broadcast %cst_35 : f32 to vector<1x21xf32>
    %80 = tpu.concatenate %79, %78, %79 in 0 : vector<1x21xf32>, vector<18x21xf32>, vector<1x21xf32> -> vector<20x21xf32>
    %81 = vector.extract_strided_slice %80 {offsets = [0, 0], sizes = [18, 21], strides = [1, 1]} : vector<20x21xf32> to vector<18x21xf32>
    %82 = vector.extract_strided_slice %80 {offsets = [1, 0], sizes = [18, 21], strides = [1, 1]} : vector<20x21xf32> to vector<18x21xf32>
    %83 = arith.maximumf %81, %82 : vector<18x21xf32>
    %84 = vector.extract_strided_slice %80 {offsets = [2, 0], sizes = [18, 21], strides = [1, 1]} : vector<20x21xf32> to vector<18x21xf32>
    %85 = arith.maximumf %83, %84 : vector<18x21xf32>
    %86 = tpu.concatenate %77, %85 in 0 : vector<18x21xf32>, vector<18x21xf32> -> vector<36x21xf32>
    %c0_36 = arith.constant 0 : index
    %c0_37 = arith.constant 0 : index
    %87 = vector.load %arg11[%c0_36, %c0_37] : memref<21x32xf32, #tpu.memory_space<vmem>>, vector<21x32xf32>
    %cst_38 = arith.constant dense<0.000000e+00> : vector<36x32xf32>
    %88 = tpu.matmul %86, %87, %cst_38 {dimension_numbers = #tpu.dot_dimension_numbers<[1], [0], [0], [1], [0, 0, 1, 1], [], []>} : vector<36x21xf32>, vector<21x32xf32>, vector<36x32xf32> -> vector<36x32xf32>
    %c0_39 = arith.constant 0 : index
    %c0_40 = arith.constant 0 : index
    %89 = vector.load %arg12[%c0_39, %c0_40] : memref<1x32xf32, #tpu.memory_space<vmem>>, vector<1x32xf32>
    %90 = vector.broadcast %89 : vector<1x32xf32> to vector<36x32xf32>
    %91 = arith.addf %88, %90 : vector<36x32xf32>
    %cst_41 = arith.constant 0.000000e+00 : f32
    %92 = vector.broadcast %cst_41 : f32 to vector<36x32xf32>
    %93 = arith.maximumf %91, %92 : vector<36x32xf32>
    %94 = tpu.concatenate %7, %36, %69, %93 in 1 : vector<36x32xf32>, vector<36x32xf32>, vector<36x32xf32>, vector<36x32xf32> -> vector<36x128xf32>
    %c0_42 = arith.constant 0 : index
    %c0_43 = arith.constant 0 : index
    %95 = vector.load %arg13[%c0_42, %c0_43] : memref<1x128xf32, #tpu.memory_space<vmem>>, vector<1x128xf32>
    %96 = vector.broadcast %95 : vector<1x128xf32> to vector<36x128xf32>
    %97 = arith.mulf %94, %96 : vector<36x128xf32>
    %c0_44 = arith.constant 0 : index
    %c0_45 = arith.constant 0 : index
    %98 = vector.load %arg14[%c0_44, %c0_45] : memref<1x128xf32, #tpu.memory_space<vmem>>, vector<1x128xf32>
    %99 = vector.broadcast %98 : vector<1x128xf32> to vector<36x128xf32>
    %100 = arith.addf %97, %99 : vector<36x128xf32>
    %101 = vector.extract_strided_slice %100 {offsets = [0, 0], sizes = [3, 128], strides = [1, 1]} : vector<36x128xf32> to vector<3x128xf32>
    %cst_46 = arith.constant dense<0xFF800000> : vector<128xf32>
    %102 = vector.multi_reduction <maximumf>, %101, %cst_46 [0] : vector<3x128xf32> to vector<128xf32>
    %103 = vector.shape_cast %102 : vector<128xf32> to vector<1x128xf32>
    %104 = vector.extract_strided_slice %100 {offsets = [2, 0], sizes = [3, 128], strides = [1, 1]} : vector<36x128xf32> to vector<3x128xf32>
    %cst_47 = arith.constant dense<0xFF800000> : vector<128xf32>
    %105 = vector.multi_reduction <maximumf>, %104, %cst_47 [0] : vector<3x128xf32> to vector<128xf32>
    %106 = vector.shape_cast %105 : vector<128xf32> to vector<1x128xf32>
    %107 = vector.extract_strided_slice %100 {offsets = [4, 0], sizes = [3, 128], strides = [1, 1]} : vector<36x128xf32> to vector<3x128xf32>
    %cst_48 = arith.constant dense<0xFF800000> : vector<128xf32>
    %108 = vector.multi_reduction <maximumf>, %107, %cst_48 [0] : vector<3x128xf32> to vector<128xf32>
    %109 = vector.shape_cast %108 : vector<128xf32> to vector<1x128xf32>
    %110 = vector.extract_strided_slice %100 {offsets = [6, 0], sizes = [3, 128], strides = [1, 1]} : vector<36x128xf32> to vector<3x128xf32>
    %cst_49 = arith.constant dense<0xFF800000> : vector<128xf32>
    %111 = vector.multi_reduction <maximumf>, %110, %cst_49 [0] : vector<3x128xf32> to vector<128xf32>
    %112 = vector.shape_cast %111 : vector<128xf32> to vector<1x128xf32>
    %113 = vector.extract_strided_slice %100 {offsets = [8, 0], sizes = [3, 128], strides = [1, 1]} : vector<36x128xf32> to vector<3x128xf32>
    %cst_50 = arith.constant dense<0xFF800000> : vector<128xf32>
    %114 = vector.multi_reduction <maximumf>, %113, %cst_50 [0] : vector<3x128xf32> to vector<128xf32>
    %115 = vector.shape_cast %114 : vector<128xf32> to vector<1x128xf32>
    %116 = vector.extract_strided_slice %100 {offsets = [10, 0], sizes = [3, 128], strides = [1, 1]} : vector<36x128xf32> to vector<3x128xf32>
    %cst_51 = arith.constant dense<0xFF800000> : vector<128xf32>
    %117 = vector.multi_reduction <maximumf>, %116, %cst_51 [0] : vector<3x128xf32> to vector<128xf32>
    %118 = vector.shape_cast %117 : vector<128xf32> to vector<1x128xf32>
    %119 = vector.extract_strided_slice %100 {offsets = [12, 0], sizes = [3, 128], strides = [1, 1]} : vector<36x128xf32> to vector<3x128xf32>
    %cst_52 = arith.constant dense<0xFF800000> : vector<128xf32>
    %120 = vector.multi_reduction <maximumf>, %119, %cst_52 [0] : vector<3x128xf32> to vector<128xf32>
    %121 = vector.shape_cast %120 : vector<128xf32> to vector<1x128xf32>
    %122 = vector.extract_strided_slice %100 {offsets = [14, 0], sizes = [3, 128], strides = [1, 1]} : vector<36x128xf32> to vector<3x128xf32>
    %cst_53 = arith.constant dense<0xFF800000> : vector<128xf32>
    %123 = vector.multi_reduction <maximumf>, %122, %cst_53 [0] : vector<3x128xf32> to vector<128xf32>
    %124 = vector.shape_cast %123 : vector<128xf32> to vector<1x128xf32>
    %125 = vector.extract_strided_slice %100 {offsets = [18, 0], sizes = [3, 128], strides = [1, 1]} : vector<36x128xf32> to vector<3x128xf32>
    %cst_54 = arith.constant dense<0xFF800000> : vector<128xf32>
    %126 = vector.multi_reduction <maximumf>, %125, %cst_54 [0] : vector<3x128xf32> to vector<128xf32>
    %127 = vector.shape_cast %126 : vector<128xf32> to vector<1x128xf32>
    %128 = vector.extract_strided_slice %100 {offsets = [20, 0], sizes = [3, 128], strides = [1, 1]} : vector<36x128xf32> to vector<3x128xf32>
    %cst_55 = arith.constant dense<0xFF800000> : vector<128xf32>
    %129 = vector.multi_reduction <maximumf>, %128, %cst_55 [0] : vector<3x128xf32> to vector<128xf32>
    %130 = vector.shape_cast %129 : vector<128xf32> to vector<1x128xf32>
    %131 = vector.extract_strided_slice %100 {offsets = [22, 0], sizes = [3, 128], strides = [1, 1]} : vector<36x128xf32> to vector<3x128xf32>
    %cst_56 = arith.constant dense<0xFF800000> : vector<128xf32>
    %132 = vector.multi_reduction <maximumf>, %131, %cst_56 [0] : vector<3x128xf32> to vector<128xf32>
    %133 = vector.shape_cast %132 : vector<128xf32> to vector<1x128xf32>
    %134 = vector.extract_strided_slice %100 {offsets = [24, 0], sizes = [3, 128], strides = [1, 1]} : vector<36x128xf32> to vector<3x128xf32>
    %cst_57 = arith.constant dense<0xFF800000> : vector<128xf32>
    %135 = vector.multi_reduction <maximumf>, %134, %cst_57 [0] : vector<3x128xf32> to vector<128xf32>
    %136 = vector.shape_cast %135 : vector<128xf32> to vector<1x128xf32>
    %137 = vector.extract_strided_slice %100 {offsets = [26, 0], sizes = [3, 128], strides = [1, 1]} : vector<36x128xf32> to vector<3x128xf32>
    %cst_58 = arith.constant dense<0xFF800000> : vector<128xf32>
    %138 = vector.multi_reduction <maximumf>, %137, %cst_58 [0] : vector<3x128xf32> to vector<128xf32>
    %139 = vector.shape_cast %138 : vector<128xf32> to vector<1x128xf32>
    %140 = vector.extract_strided_slice %100 {offsets = [28, 0], sizes = [3, 128], strides = [1, 1]} : vector<36x128xf32> to vector<3x128xf32>
    %cst_59 = arith.constant dense<0xFF800000> : vector<128xf32>
    %141 = vector.multi_reduction <maximumf>, %140, %cst_59 [0] : vector<3x128xf32> to vector<128xf32>
    %142 = vector.shape_cast %141 : vector<128xf32> to vector<1x128xf32>
    %143 = vector.extract_strided_slice %100 {offsets = [30, 0], sizes = [3, 128], strides = [1, 1]} : vector<36x128xf32> to vector<3x128xf32>
    %cst_60 = arith.constant dense<0xFF800000> : vector<128xf32>
    %144 = vector.multi_reduction <maximumf>, %143, %cst_60 [0] : vector<3x128xf32> to vector<128xf32>
    %145 = vector.shape_cast %144 : vector<128xf32> to vector<1x128xf32>
    %146 = vector.extract_strided_slice %100 {offsets = [32, 0], sizes = [3, 128], strides = [1, 1]} : vector<36x128xf32> to vector<3x128xf32>
    %cst_61 = arith.constant dense<0xFF800000> : vector<128xf32>
    %147 = vector.multi_reduction <maximumf>, %146, %cst_61 [0] : vector<3x128xf32> to vector<128xf32>
    %148 = vector.shape_cast %147 : vector<128xf32> to vector<1x128xf32>
    %149 = tpu.concatenate %103, %106, %109, %112, %115, %118, %121, %124, %127, %130, %133, %136, %139, %142, %145, %148 in 0 : vector<1x128xf32>, vector<1x128xf32>, vector<1x128xf32>, vector<1x128xf32>, vector<1x128xf32>, vector<1x128xf32>, vector<1x128xf32>, vector<1x128xf32>, vector<1x128xf32>, vector<1x128xf32>, vector<1x128xf32>, vector<1x128xf32>, vector<1x128xf32>, vector<1x128xf32>, vector<1x128xf32>, vector<1x128xf32> -> vector<16x128xf32>
    %c0_62 = arith.constant 0 : index
    %c0_63 = arith.constant 0 : index
    %150 = vector.load %arg15[%c0_62, %c0_63] : memref<128x64xf32, #tpu.memory_space<vmem>>, vector<128x64xf32>
    %cst_64 = arith.constant dense<0.000000e+00> : vector<16x64xf32>
    %151 = tpu.matmul %149, %150, %cst_64 {dimension_numbers = #tpu.dot_dimension_numbers<[1], [0], [0], [1], [0, 0, 1, 1], [], []>} : vector<16x128xf32>, vector<128x64xf32>, vector<16x64xf32> -> vector<16x64xf32>
    %c0_65 = arith.constant 0 : index
    %c0_66 = arith.constant 0 : index
    %152 = vector.load %arg16[%c0_65, %c0_66] : memref<1x64xf32, #tpu.memory_space<vmem>>, vector<1x64xf32>
    %153 = vector.broadcast %152 : vector<1x64xf32> to vector<16x64xf32>
    %154 = arith.addf %151, %153 : vector<16x64xf32>
    %cst_67 = arith.constant 0.000000e+00 : f32
    %155 = vector.broadcast %cst_67 : f32 to vector<16x64xf32>
    %156 = arith.maximumf %154, %155 : vector<16x64xf32>
    %c0_68 = arith.constant 0 : index
    %c0_69 = arith.constant 0 : index
    %157 = vector.load %arg17[%c0_68, %c0_69] : memref<128x64xf32, #tpu.memory_space<vmem>>, vector<128x64xf32>
    %cst_70 = arith.constant dense<0.000000e+00> : vector<16x64xf32>
    %158 = tpu.matmul %149, %157, %cst_70 {dimension_numbers = #tpu.dot_dimension_numbers<[1], [0], [0], [1], [0, 0, 1, 1], [], []>} : vector<16x128xf32>, vector<128x64xf32>, vector<16x64xf32> -> vector<16x64xf32>
    %c0_71 = arith.constant 0 : index
    %c0_72 = arith.constant 0 : index
    %159 = vector.load %arg18[%c0_71, %c0_72] : memref<1x64xf32, #tpu.memory_space<vmem>>, vector<1x64xf32>
    %160 = vector.broadcast %159 : vector<1x64xf32> to vector<16x64xf32>
    %161 = arith.addf %158, %160 : vector<16x64xf32>
    %cst_73 = arith.constant 0.000000e+00 : f32
    %162 = vector.broadcast %cst_73 : f32 to vector<16x64xf32>
    %163 = arith.maximumf %161, %162 : vector<16x64xf32>
    %164 = vector.extract_strided_slice %163 {offsets = [0, 0], sizes = [8, 64], strides = [1, 1]} : vector<16x64xf32> to vector<8x64xf32>
    %cst_74 = arith.constant 0.000000e+00 : f32
    %165 = vector.broadcast %cst_74 : f32 to vector<1x64xf32>
    %166 = tpu.concatenate %165, %164, %165 in 0 : vector<1x64xf32>, vector<8x64xf32>, vector<1x64xf32> -> vector<10x64xf32>
    %167 = vector.extract_strided_slice %166 {offsets = [0, 0], sizes = [8, 64], strides = [1, 1]} : vector<10x64xf32> to vector<8x64xf32>
    %168 = vector.extract_strided_slice %166 {offsets = [1, 0], sizes = [8, 64], strides = [1, 1]} : vector<10x64xf32> to vector<8x64xf32>
    %169 = vector.extract_strided_slice %166 {offsets = [2, 0], sizes = [8, 64], strides = [1, 1]} : vector<10x64xf32> to vector<8x64xf32>
    %170 = tpu.concatenate %167, %168, %169 in 1 : vector<8x64xf32>, vector<8x64xf32>, vector<8x64xf32> -> vector<8x192xf32>
    %171 = vector.extract_strided_slice %163 {offsets = [8, 0], sizes = [8, 64], strides = [1, 1]} : vector<16x64xf32> to vector<8x64xf32>
    %cst_75 = arith.constant 0.000000e+00 : f32
    %172 = vector.broadcast %cst_75 : f32 to vector<1x64xf32>
    %173 = tpu.concatenate %172, %171, %172 in 0 : vector<1x64xf32>, vector<8x64xf32>, vector<1x64xf32> -> vector<10x64xf32>
    %174 = vector.extract_strided_slice %173 {offsets = [0, 0], sizes = [8, 64], strides = [1, 1]} : vector<10x64xf32> to vector<8x64xf32>
    %175 = vector.extract_strided_slice %173 {offsets = [1, 0], sizes = [8, 64], strides = [1, 1]} : vector<10x64xf32> to vector<8x64xf32>
    %176 = vector.extract_strided_slice %173 {offsets = [2, 0], sizes = [8, 64], strides = [1, 1]} : vector<10x64xf32> to vector<8x64xf32>
    %177 = tpu.concatenate %174, %175, %176 in 1 : vector<8x64xf32>, vector<8x64xf32>, vector<8x64xf32> -> vector<8x192xf32>
    %178 = tpu.concatenate %170, %177 in 0 : vector<8x192xf32>, vector<8x192xf32> -> vector<16x192xf32>
    %c0_76 = arith.constant 0 : index
    %c0_77 = arith.constant 0 : index
    %179 = vector.load %arg19[%c0_76, %c0_77] : memref<192x64xf32, #tpu.memory_space<vmem>>, vector<192x64xf32>
    %cst_78 = arith.constant dense<0.000000e+00> : vector<16x64xf32>
    %180 = tpu.matmul %178, %179, %cst_78 {dimension_numbers = #tpu.dot_dimension_numbers<[1], [0], [0], [1], [0, 0, 1, 1], [], []>} : vector<16x192xf32>, vector<192x64xf32>, vector<16x64xf32> -> vector<16x64xf32>
    %c0_79 = arith.constant 0 : index
    %c0_80 = arith.constant 0 : index
    %181 = vector.load %arg20[%c0_79, %c0_80] : memref<1x64xf32, #tpu.memory_space<vmem>>, vector<1x64xf32>
    %182 = vector.broadcast %181 : vector<1x64xf32> to vector<16x64xf32>
    %183 = arith.addf %180, %182 : vector<16x64xf32>
    %cst_81 = arith.constant 0.000000e+00 : f32
    %184 = vector.broadcast %cst_81 : f32 to vector<16x64xf32>
    %185 = arith.maximumf %183, %184 : vector<16x64xf32>
    %c0_82 = arith.constant 0 : index
    %c0_83 = arith.constant 0 : index
    %186 = vector.load %arg21[%c0_82, %c0_83] : memref<128x64xf32, #tpu.memory_space<vmem>>, vector<128x64xf32>
    %cst_84 = arith.constant dense<0.000000e+00> : vector<16x64xf32>
    %187 = tpu.matmul %149, %186, %cst_84 {dimension_numbers = #tpu.dot_dimension_numbers<[1], [0], [0], [1], [0, 0, 1, 1], [], []>} : vector<16x128xf32>, vector<128x64xf32>, vector<16x64xf32> -> vector<16x64xf32>
    %c0_85 = arith.constant 0 : index
    %c0_86 = arith.constant 0 : index
    %188 = vector.load %arg22[%c0_85, %c0_86] : memref<1x64xf32, #tpu.memory_space<vmem>>, vector<1x64xf32>
    %189 = vector.broadcast %188 : vector<1x64xf32> to vector<16x64xf32>
    %190 = arith.addf %187, %189 : vector<16x64xf32>
    %cst_87 = arith.constant 0.000000e+00 : f32
    %191 = vector.broadcast %cst_87 : f32 to vector<16x64xf32>
    %192 = arith.maximumf %190, %191 : vector<16x64xf32>
    %193 = vector.extract_strided_slice %192 {offsets = [0, 0], sizes = [8, 64], strides = [1, 1]} : vector<16x64xf32> to vector<8x64xf32>
    %cst_88 = arith.constant 0.000000e+00 : f32
    %194 = vector.broadcast %cst_88 : f32 to vector<2x64xf32>
    %195 = tpu.concatenate %194, %193, %194 in 0 : vector<2x64xf32>, vector<8x64xf32>, vector<2x64xf32> -> vector<12x64xf32>
    %196 = vector.extract_strided_slice %195 {offsets = [0, 0], sizes = [8, 64], strides = [1, 1]} : vector<12x64xf32> to vector<8x64xf32>
    %197 = vector.extract_strided_slice %195 {offsets = [1, 0], sizes = [8, 64], strides = [1, 1]} : vector<12x64xf32> to vector<8x64xf32>
    %198 = vector.extract_strided_slice %195 {offsets = [2, 0], sizes = [8, 64], strides = [1, 1]} : vector<12x64xf32> to vector<8x64xf32>
    %199 = vector.extract_strided_slice %195 {offsets = [3, 0], sizes = [8, 64], strides = [1, 1]} : vector<12x64xf32> to vector<8x64xf32>
    %200 = vector.extract_strided_slice %195 {offsets = [4, 0], sizes = [8, 64], strides = [1, 1]} : vector<12x64xf32> to vector<8x64xf32>
    %201 = tpu.concatenate %196, %197, %198, %199, %200 in 1 : vector<8x64xf32>, vector<8x64xf32>, vector<8x64xf32>, vector<8x64xf32>, vector<8x64xf32> -> vector<8x320xf32>
    %202 = vector.extract_strided_slice %192 {offsets = [8, 0], sizes = [8, 64], strides = [1, 1]} : vector<16x64xf32> to vector<8x64xf32>
    %cst_89 = arith.constant 0.000000e+00 : f32
    %203 = vector.broadcast %cst_89 : f32 to vector<2x64xf32>
    %204 = tpu.concatenate %203, %202, %203 in 0 : vector<2x64xf32>, vector<8x64xf32>, vector<2x64xf32> -> vector<12x64xf32>
    %205 = vector.extract_strided_slice %204 {offsets = [0, 0], sizes = [8, 64], strides = [1, 1]} : vector<12x64xf32> to vector<8x64xf32>
    %206 = vector.extract_strided_slice %204 {offsets = [1, 0], sizes = [8, 64], strides = [1, 1]} : vector<12x64xf32> to vector<8x64xf32>
    %207 = vector.extract_strided_slice %204 {offsets = [2, 0], sizes = [8, 64], strides = [1, 1]} : vector<12x64xf32> to vector<8x64xf32>
    %208 = vector.extract_strided_slice %204 {offsets = [3, 0], sizes = [8, 64], strides = [1, 1]} : vector<12x64xf32> to vector<8x64xf32>
    %209 = vector.extract_strided_slice %204 {offsets = [4, 0], sizes = [8, 64], strides = [1, 1]} : vector<12x64xf32> to vector<8x64xf32>
    %210 = tpu.concatenate %205, %206, %207, %208, %209 in 1 : vector<8x64xf32>, vector<8x64xf32>, vector<8x64xf32>, vector<8x64xf32>, vector<8x64xf32> -> vector<8x320xf32>
    %211 = tpu.concatenate %201, %210 in 0 : vector<8x320xf32>, vector<8x320xf32> -> vector<16x320xf32>
    %c0_90 = arith.constant 0 : index
    %c0_91 = arith.constant 0 : index
    %212 = vector.load %arg23[%c0_90, %c0_91] : memref<320x64xf32, #tpu.memory_space<vmem>>, vector<320x64xf32>
    %cst_92 = arith.constant dense<0.000000e+00> : vector<16x64xf32>
    %213 = tpu.matmul %211, %212, %cst_92 {dimension_numbers = #tpu.dot_dimension_numbers<[1], [0], [0], [1], [0, 0, 1, 1], [], []>} : vector<16x320xf32>, vector<320x64xf32>, vector<16x64xf32> -> vector<16x64xf32>
    %c0_93 = arith.constant 0 : index
    %c0_94 = arith.constant 0 : index
    %214 = vector.load %arg24[%c0_93, %c0_94] : memref<1x64xf32, #tpu.memory_space<vmem>>, vector<1x64xf32>
    %215 = vector.broadcast %214 : vector<1x64xf32> to vector<16x64xf32>
    %216 = arith.addf %213, %215 : vector<16x64xf32>
    %cst_95 = arith.constant 0.000000e+00 : f32
    %217 = vector.broadcast %cst_95 : f32 to vector<16x64xf32>
    %218 = arith.maximumf %216, %217 : vector<16x64xf32>
    %219 = vector.extract_strided_slice %149 {offsets = [0, 0], sizes = [8, 128], strides = [1, 1]} : vector<16x128xf32> to vector<8x128xf32>
    %cst_96 = arith.constant -1.000000e+30 : f32
    %220 = vector.broadcast %cst_96 : f32 to vector<1x128xf32>
    %221 = tpu.concatenate %220, %219, %220 in 0 : vector<1x128xf32>, vector<8x128xf32>, vector<1x128xf32> -> vector<10x128xf32>
    %222 = vector.extract_strided_slice %221 {offsets = [0, 0], sizes = [8, 128], strides = [1, 1]} : vector<10x128xf32> to vector<8x128xf32>
    %223 = vector.extract_strided_slice %221 {offsets = [1, 0], sizes = [8, 128], strides = [1, 1]} : vector<10x128xf32> to vector<8x128xf32>
    %224 = arith.maximumf %222, %223 : vector<8x128xf32>
    %225 = vector.extract_strided_slice %221 {offsets = [2, 0], sizes = [8, 128], strides = [1, 1]} : vector<10x128xf32> to vector<8x128xf32>
    %226 = arith.maximumf %224, %225 : vector<8x128xf32>
    %227 = vector.extract_strided_slice %149 {offsets = [8, 0], sizes = [8, 128], strides = [1, 1]} : vector<16x128xf32> to vector<8x128xf32>
    %cst_97 = arith.constant -1.000000e+30 : f32
    %228 = vector.broadcast %cst_97 : f32 to vector<1x128xf32>
    %229 = tpu.concatenate %228, %227, %228 in 0 : vector<1x128xf32>, vector<8x128xf32>, vector<1x128xf32> -> vector<10x128xf32>
    %230 = vector.extract_strided_slice %229 {offsets = [0, 0], sizes = [8, 128], strides = [1, 1]} : vector<10x128xf32> to vector<8x128xf32>
    %231 = vector.extract_strided_slice %229 {offsets = [1, 0], sizes = [8, 128], strides = [1, 1]} : vector<10x128xf32> to vector<8x128xf32>
    %232 = arith.maximumf %230, %231 : vector<8x128xf32>
    %233 = vector.extract_strided_slice %229 {offsets = [2, 0], sizes = [8, 128], strides = [1, 1]} : vector<10x128xf32> to vector<8x128xf32>
    %234 = arith.maximumf %232, %233 : vector<8x128xf32>
    %235 = tpu.concatenate %226, %234 in 0 : vector<8x128xf32>, vector<8x128xf32> -> vector<16x128xf32>
    %c0_98 = arith.constant 0 : index
    %c0_99 = arith.constant 0 : index
    %236 = vector.load %arg25[%c0_98, %c0_99] : memref<128x64xf32, #tpu.memory_space<vmem>>, vector<128x64xf32>
    %cst_100 = arith.constant dense<0.000000e+00> : vector<16x64xf32>
    %237 = tpu.matmul %235, %236, %cst_100 {dimension_numbers = #tpu.dot_dimension_numbers<[1], [0], [0], [1], [0, 0, 1, 1], [], []>} : vector<16x128xf32>, vector<128x64xf32>, vector<16x64xf32> -> vector<16x64xf32>
    %c0_101 = arith.constant 0 : index
    %c0_102 = arith.constant 0 : index
    %238 = vector.load %arg26[%c0_101, %c0_102] : memref<1x64xf32, #tpu.memory_space<vmem>>, vector<1x64xf32>
    %239 = vector.broadcast %238 : vector<1x64xf32> to vector<16x64xf32>
    %240 = arith.addf %237, %239 : vector<16x64xf32>
    %cst_103 = arith.constant 0.000000e+00 : f32
    %241 = vector.broadcast %cst_103 : f32 to vector<16x64xf32>
    %242 = arith.maximumf %240, %241 : vector<16x64xf32>
    %243 = tpu.concatenate %156, %185, %218, %242 in 1 : vector<16x64xf32>, vector<16x64xf32>, vector<16x64xf32>, vector<16x64xf32> -> vector<16x256xf32>
    %c0_104 = arith.constant 0 : index
    %c0_105 = arith.constant 0 : index
    %244 = vector.load %arg27[%c0_104, %c0_105] : memref<1x256xf32, #tpu.memory_space<vmem>>, vector<1x256xf32>
    %245 = vector.broadcast %244 : vector<1x256xf32> to vector<16x256xf32>
    %246 = arith.mulf %243, %245 : vector<16x256xf32>
    %c0_106 = arith.constant 0 : index
    %c0_107 = arith.constant 0 : index
    %247 = vector.load %arg28[%c0_106, %c0_107] : memref<1x256xf32, #tpu.memory_space<vmem>>, vector<1x256xf32>
    %248 = vector.broadcast %247 : vector<1x256xf32> to vector<16x256xf32>
    %249 = arith.addf %246, %248 : vector<16x256xf32>
    %250 = vector.extract_strided_slice %249 {offsets = [0, 0], sizes = [3, 256], strides = [1, 1]} : vector<16x256xf32> to vector<3x256xf32>
    %cst_108 = arith.constant dense<0xFF800000> : vector<256xf32>
    %251 = vector.multi_reduction <maximumf>, %250, %cst_108 [0] : vector<3x256xf32> to vector<256xf32>
    %252 = vector.shape_cast %251 : vector<256xf32> to vector<1x256xf32>
    %253 = vector.extract_strided_slice %249 {offsets = [2, 0], sizes = [3, 256], strides = [1, 1]} : vector<16x256xf32> to vector<3x256xf32>
    %cst_109 = arith.constant dense<0xFF800000> : vector<256xf32>
    %254 = vector.multi_reduction <maximumf>, %253, %cst_109 [0] : vector<3x256xf32> to vector<256xf32>
    %255 = vector.shape_cast %254 : vector<256xf32> to vector<1x256xf32>
    %256 = vector.extract_strided_slice %249 {offsets = [4, 0], sizes = [3, 256], strides = [1, 1]} : vector<16x256xf32> to vector<3x256xf32>
    %cst_110 = arith.constant dense<0xFF800000> : vector<256xf32>
    %257 = vector.multi_reduction <maximumf>, %256, %cst_110 [0] : vector<3x256xf32> to vector<256xf32>
    %258 = vector.shape_cast %257 : vector<256xf32> to vector<1x256xf32>
    %259 = vector.extract_strided_slice %249 {offsets = [8, 0], sizes = [3, 256], strides = [1, 1]} : vector<16x256xf32> to vector<3x256xf32>
    %cst_111 = arith.constant dense<0xFF800000> : vector<256xf32>
    %260 = vector.multi_reduction <maximumf>, %259, %cst_111 [0] : vector<3x256xf32> to vector<256xf32>
    %261 = vector.shape_cast %260 : vector<256xf32> to vector<1x256xf32>
    %262 = vector.extract_strided_slice %249 {offsets = [10, 0], sizes = [3, 256], strides = [1, 1]} : vector<16x256xf32> to vector<3x256xf32>
    %cst_112 = arith.constant dense<0xFF800000> : vector<256xf32>
    %263 = vector.multi_reduction <maximumf>, %262, %cst_112 [0] : vector<3x256xf32> to vector<256xf32>
    %264 = vector.shape_cast %263 : vector<256xf32> to vector<1x256xf32>
    %265 = vector.extract_strided_slice %249 {offsets = [12, 0], sizes = [3, 256], strides = [1, 1]} : vector<16x256xf32> to vector<3x256xf32>
    %cst_113 = arith.constant dense<0xFF800000> : vector<256xf32>
    %266 = vector.multi_reduction <maximumf>, %265, %cst_113 [0] : vector<3x256xf32> to vector<256xf32>
    %267 = vector.shape_cast %266 : vector<256xf32> to vector<1x256xf32>
    %268 = tpu.concatenate %252, %255, %258, %261, %264, %267 in 0 : vector<1x256xf32>, vector<1x256xf32>, vector<1x256xf32>, vector<1x256xf32>, vector<1x256xf32>, vector<1x256xf32> -> vector<6x256xf32>
    %c0_114 = arith.constant 0 : index
    %c0_115 = arith.constant 0 : index
    %269 = vector.load %arg29[%c0_114, %c0_115] : memref<256x128xf32, #tpu.memory_space<vmem>>, vector<256x128xf32>
    %cst_116 = arith.constant dense<0.000000e+00> : vector<6x128xf32>
    %270 = tpu.matmul %268, %269, %cst_116 {dimension_numbers = #tpu.dot_dimension_numbers<[1], [0], [0], [1], [0, 0, 1, 1], [], []>} : vector<6x256xf32>, vector<256x128xf32>, vector<6x128xf32> -> vector<6x128xf32>
    %c0_117 = arith.constant 0 : index
    %c0_118 = arith.constant 0 : index
    %271 = vector.load %arg30[%c0_117, %c0_118] : memref<1x128xf32, #tpu.memory_space<vmem>>, vector<1x128xf32>
    %272 = vector.broadcast %271 : vector<1x128xf32> to vector<6x128xf32>
    %273 = arith.addf %270, %272 : vector<6x128xf32>
    %cst_119 = arith.constant 0.000000e+00 : f32
    %274 = vector.broadcast %cst_119 : f32 to vector<6x128xf32>
    %275 = arith.maximumf %273, %274 : vector<6x128xf32>
    %c0_120 = arith.constant 0 : index
    %c0_121 = arith.constant 0 : index
    %276 = vector.load %arg31[%c0_120, %c0_121] : memref<256x128xf32, #tpu.memory_space<vmem>>, vector<256x128xf32>
    %cst_122 = arith.constant dense<0.000000e+00> : vector<6x128xf32>
    %277 = tpu.matmul %268, %276, %cst_122 {dimension_numbers = #tpu.dot_dimension_numbers<[1], [0], [0], [1], [0, 0, 1, 1], [], []>} : vector<6x256xf32>, vector<256x128xf32>, vector<6x128xf32> -> vector<6x128xf32>
    %c0_123 = arith.constant 0 : index
    %c0_124 = arith.constant 0 : index
    %278 = vector.load %arg32[%c0_123, %c0_124] : memref<1x128xf32, #tpu.memory_space<vmem>>, vector<1x128xf32>
    %279 = vector.broadcast %278 : vector<1x128xf32> to vector<6x128xf32>
    %280 = arith.addf %277, %279 : vector<6x128xf32>
    %cst_125 = arith.constant 0.000000e+00 : f32
    %281 = vector.broadcast %cst_125 : f32 to vector<6x128xf32>
    %282 = arith.maximumf %280, %281 : vector<6x128xf32>
    %283 = vector.extract_strided_slice %282 {offsets = [0, 0], sizes = [3, 128], strides = [1, 1]} : vector<6x128xf32> to vector<3x128xf32>
    %cst_126 = arith.constant 0.000000e+00 : f32
    %284 = vector.broadcast %cst_126 : f32 to vector<1x128xf32>
    %285 = tpu.concatenate %284, %283, %284 in 0 : vector<1x128xf32>, vector<3x128xf32>, vector<1x128xf32> -> vector<5x128xf32>
    %286 = vector.extract_strided_slice %285 {offsets = [0, 0], sizes = [3, 128], strides = [1, 1]} : vector<5x128xf32> to vector<3x128xf32>
    %287 = vector.extract_strided_slice %285 {offsets = [1, 0], sizes = [3, 128], strides = [1, 1]} : vector<5x128xf32> to vector<3x128xf32>
    %288 = vector.extract_strided_slice %285 {offsets = [2, 0], sizes = [3, 128], strides = [1, 1]} : vector<5x128xf32> to vector<3x128xf32>
    %289 = tpu.concatenate %286, %287, %288 in 1 : vector<3x128xf32>, vector<3x128xf32>, vector<3x128xf32> -> vector<3x384xf32>
    %290 = vector.extract_strided_slice %282 {offsets = [3, 0], sizes = [3, 128], strides = [1, 1]} : vector<6x128xf32> to vector<3x128xf32>
    %cst_127 = arith.constant 0.000000e+00 : f32
    %291 = vector.broadcast %cst_127 : f32 to vector<1x128xf32>
    %292 = tpu.concatenate %291, %290, %291 in 0 : vector<1x128xf32>, vector<3x128xf32>, vector<1x128xf32> -> vector<5x128xf32>
    %293 = vector.extract_strided_slice %292 {offsets = [0, 0], sizes = [3, 128], strides = [1, 1]} : vector<5x128xf32> to vector<3x128xf32>
    %294 = vector.extract_strided_slice %292 {offsets = [1, 0], sizes = [3, 128], strides = [1, 1]} : vector<5x128xf32> to vector<3x128xf32>
    %295 = vector.extract_strided_slice %292 {offsets = [2, 0], sizes = [3, 128], strides = [1, 1]} : vector<5x128xf32> to vector<3x128xf32>
    %296 = tpu.concatenate %293, %294, %295 in 1 : vector<3x128xf32>, vector<3x128xf32>, vector<3x128xf32> -> vector<3x384xf32>
    %297 = tpu.concatenate %289, %296 in 0 : vector<3x384xf32>, vector<3x384xf32> -> vector<6x384xf32>
    %c0_128 = arith.constant 0 : index
    %c0_129 = arith.constant 0 : index
    %298 = vector.load %arg33[%c0_128, %c0_129] : memref<384x128xf32, #tpu.memory_space<vmem>>, vector<384x128xf32>
    %cst_130 = arith.constant dense<0.000000e+00> : vector<6x128xf32>
    %299 = tpu.matmul %297, %298, %cst_130 {dimension_numbers = #tpu.dot_dimension_numbers<[1], [0], [0], [1], [0, 0, 1, 1], [], []>} : vector<6x384xf32>, vector<384x128xf32>, vector<6x128xf32> -> vector<6x128xf32>
    %c0_131 = arith.constant 0 : index
    %c0_132 = arith.constant 0 : index
    %300 = vector.load %arg34[%c0_131, %c0_132] : memref<1x128xf32, #tpu.memory_space<vmem>>, vector<1x128xf32>
    %301 = vector.broadcast %300 : vector<1x128xf32> to vector<6x128xf32>
    %302 = arith.addf %299, %301 : vector<6x128xf32>
    %cst_133 = arith.constant 0.000000e+00 : f32
    %303 = vector.broadcast %cst_133 : f32 to vector<6x128xf32>
    %304 = arith.maximumf %302, %303 : vector<6x128xf32>
    %c0_134 = arith.constant 0 : index
    %c0_135 = arith.constant 0 : index
    %305 = vector.load %arg35[%c0_134, %c0_135] : memref<256x128xf32, #tpu.memory_space<vmem>>, vector<256x128xf32>
    %cst_136 = arith.constant dense<0.000000e+00> : vector<6x128xf32>
    %306 = tpu.matmul %268, %305, %cst_136 {dimension_numbers = #tpu.dot_dimension_numbers<[1], [0], [0], [1], [0, 0, 1, 1], [], []>} : vector<6x256xf32>, vector<256x128xf32>, vector<6x128xf32> -> vector<6x128xf32>
    %c0_137 = arith.constant 0 : index
    %c0_138 = arith.constant 0 : index
    %307 = vector.load %arg36[%c0_137, %c0_138] : memref<1x128xf32, #tpu.memory_space<vmem>>, vector<1x128xf32>
    %308 = vector.broadcast %307 : vector<1x128xf32> to vector<6x128xf32>
    %309 = arith.addf %306, %308 : vector<6x128xf32>
    %cst_139 = arith.constant 0.000000e+00 : f32
    %310 = vector.broadcast %cst_139 : f32 to vector<6x128xf32>
    %311 = arith.maximumf %309, %310 : vector<6x128xf32>
    %312 = vector.extract_strided_slice %311 {offsets = [0, 0], sizes = [3, 128], strides = [1, 1]} : vector<6x128xf32> to vector<3x128xf32>
    %cst_140 = arith.constant 0.000000e+00 : f32
    %313 = vector.broadcast %cst_140 : f32 to vector<2x128xf32>
    %314 = tpu.concatenate %313, %312, %313 in 0 : vector<2x128xf32>, vector<3x128xf32>, vector<2x128xf32> -> vector<7x128xf32>
    %315 = vector.extract_strided_slice %314 {offsets = [0, 0], sizes = [3, 128], strides = [1, 1]} : vector<7x128xf32> to vector<3x128xf32>
    %316 = vector.extract_strided_slice %314 {offsets = [1, 0], sizes = [3, 128], strides = [1, 1]} : vector<7x128xf32> to vector<3x128xf32>
    %317 = vector.extract_strided_slice %314 {offsets = [2, 0], sizes = [3, 128], strides = [1, 1]} : vector<7x128xf32> to vector<3x128xf32>
    %318 = vector.extract_strided_slice %314 {offsets = [3, 0], sizes = [3, 128], strides = [1, 1]} : vector<7x128xf32> to vector<3x128xf32>
    %319 = vector.extract_strided_slice %314 {offsets = [4, 0], sizes = [3, 128], strides = [1, 1]} : vector<7x128xf32> to vector<3x128xf32>
    %320 = tpu.concatenate %315, %316, %317, %318, %319 in 1 : vector<3x128xf32>, vector<3x128xf32>, vector<3x128xf32>, vector<3x128xf32>, vector<3x128xf32> -> vector<3x640xf32>
    %321 = vector.extract_strided_slice %311 {offsets = [3, 0], sizes = [3, 128], strides = [1, 1]} : vector<6x128xf32> to vector<3x128xf32>
    %cst_141 = arith.constant 0.000000e+00 : f32
    %322 = vector.broadcast %cst_141 : f32 to vector<2x128xf32>
    %323 = tpu.concatenate %322, %321, %322 in 0 : vector<2x128xf32>, vector<3x128xf32>, vector<2x128xf32> -> vector<7x128xf32>
    %324 = vector.extract_strided_slice %323 {offsets = [0, 0], sizes = [3, 128], strides = [1, 1]} : vector<7x128xf32> to vector<3x128xf32>
    %325 = vector.extract_strided_slice %323 {offsets = [1, 0], sizes = [3, 128], strides = [1, 1]} : vector<7x128xf32> to vector<3x128xf32>
    %326 = vector.extract_strided_slice %323 {offsets = [2, 0], sizes = [3, 128], strides = [1, 1]} : vector<7x128xf32> to vector<3x128xf32>
    %327 = vector.extract_strided_slice %323 {offsets = [3, 0], sizes = [3, 128], strides = [1, 1]} : vector<7x128xf32> to vector<3x128xf32>
    %328 = vector.extract_strided_slice %323 {offsets = [4, 0], sizes = [3, 128], strides = [1, 1]} : vector<7x128xf32> to vector<3x128xf32>
    %329 = tpu.concatenate %324, %325, %326, %327, %328 in 1 : vector<3x128xf32>, vector<3x128xf32>, vector<3x128xf32>, vector<3x128xf32>, vector<3x128xf32> -> vector<3x640xf32>
    %330 = tpu.concatenate %320, %329 in 0 : vector<3x640xf32>, vector<3x640xf32> -> vector<6x640xf32>
    %c0_142 = arith.constant 0 : index
    %c0_143 = arith.constant 0 : index
    %331 = vector.load %arg37[%c0_142, %c0_143] : memref<640x128xf32, #tpu.memory_space<vmem>>, vector<640x128xf32>
    %cst_144 = arith.constant dense<0.000000e+00> : vector<6x128xf32>
    %332 = tpu.matmul %330, %331, %cst_144 {dimension_numbers = #tpu.dot_dimension_numbers<[1], [0], [0], [1], [0, 0, 1, 1], [], []>} : vector<6x640xf32>, vector<640x128xf32>, vector<6x128xf32> -> vector<6x128xf32>
    %c0_145 = arith.constant 0 : index
    %c0_146 = arith.constant 0 : index
    %333 = vector.load %arg38[%c0_145, %c0_146] : memref<1x128xf32, #tpu.memory_space<vmem>>, vector<1x128xf32>
    %334 = vector.broadcast %333 : vector<1x128xf32> to vector<6x128xf32>
    %335 = arith.addf %332, %334 : vector<6x128xf32>
    %cst_147 = arith.constant 0.000000e+00 : f32
    %336 = vector.broadcast %cst_147 : f32 to vector<6x128xf32>
    %337 = arith.maximumf %335, %336 : vector<6x128xf32>
    %338 = vector.extract_strided_slice %268 {offsets = [0, 0], sizes = [3, 256], strides = [1, 1]} : vector<6x256xf32> to vector<3x256xf32>
    %cst_148 = arith.constant -1.000000e+30 : f32
    %339 = vector.broadcast %cst_148 : f32 to vector<1x256xf32>
    %340 = tpu.concatenate %339, %338, %339 in 0 : vector<1x256xf32>, vector<3x256xf32>, vector<1x256xf32> -> vector<5x256xf32>
    %341 = vector.extract_strided_slice %340 {offsets = [0, 0], sizes = [3, 256], strides = [1, 1]} : vector<5x256xf32> to vector<3x256xf32>
    %342 = vector.extract_strided_slice %340 {offsets = [1, 0], sizes = [3, 256], strides = [1, 1]} : vector<5x256xf32> to vector<3x256xf32>
    %343 = arith.maximumf %341, %342 : vector<3x256xf32>
    %344 = vector.extract_strided_slice %340 {offsets = [2, 0], sizes = [3, 256], strides = [1, 1]} : vector<5x256xf32> to vector<3x256xf32>
    %345 = arith.maximumf %343, %344 : vector<3x256xf32>
    %346 = vector.extract_strided_slice %268 {offsets = [3, 0], sizes = [3, 256], strides = [1, 1]} : vector<6x256xf32> to vector<3x256xf32>
    %cst_149 = arith.constant -1.000000e+30 : f32
    %347 = vector.broadcast %cst_149 : f32 to vector<1x256xf32>
    %348 = tpu.concatenate %347, %346, %347 in 0 : vector<1x256xf32>, vector<3x256xf32>, vector<1x256xf32> -> vector<5x256xf32>
    %349 = vector.extract_strided_slice %348 {offsets = [0, 0], sizes = [3, 256], strides = [1, 1]} : vector<5x256xf32> to vector<3x256xf32>
    %350 = vector.extract_strided_slice %348 {offsets = [1, 0], sizes = [3, 256], strides = [1, 1]} : vector<5x256xf32> to vector<3x256xf32>
    %351 = arith.maximumf %349, %350 : vector<3x256xf32>
    %352 = vector.extract_strided_slice %348 {offsets = [2, 0], sizes = [3, 256], strides = [1, 1]} : vector<5x256xf32> to vector<3x256xf32>
    %353 = arith.maximumf %351, %352 : vector<3x256xf32>
    %354 = tpu.concatenate %345, %353 in 0 : vector<3x256xf32>, vector<3x256xf32> -> vector<6x256xf32>
    %c0_150 = arith.constant 0 : index
    %c0_151 = arith.constant 0 : index
    %355 = vector.load %arg39[%c0_150, %c0_151] : memref<256x128xf32, #tpu.memory_space<vmem>>, vector<256x128xf32>
    %cst_152 = arith.constant dense<0.000000e+00> : vector<6x128xf32>
    %356 = tpu.matmul %354, %355, %cst_152 {dimension_numbers = #tpu.dot_dimension_numbers<[1], [0], [0], [1], [0, 0, 1, 1], [], []>} : vector<6x256xf32>, vector<256x128xf32>, vector<6x128xf32> -> vector<6x128xf32>
    %c0_153 = arith.constant 0 : index
    %c0_154 = arith.constant 0 : index
    %357 = vector.load %arg40[%c0_153, %c0_154] : memref<1x128xf32, #tpu.memory_space<vmem>>, vector<1x128xf32>
    %358 = vector.broadcast %357 : vector<1x128xf32> to vector<6x128xf32>
    %359 = arith.addf %356, %358 : vector<6x128xf32>
    %cst_155 = arith.constant 0.000000e+00 : f32
    %360 = vector.broadcast %cst_155 : f32 to vector<6x128xf32>
    %361 = arith.maximumf %359, %360 : vector<6x128xf32>
    %362 = tpu.concatenate %275, %304, %337, %361 in 1 : vector<6x128xf32>, vector<6x128xf32>, vector<6x128xf32>, vector<6x128xf32> -> vector<6x512xf32>
    %c0_156 = arith.constant 0 : index
    %c0_157 = arith.constant 0 : index
    %363 = vector.load %arg41[%c0_156, %c0_157] : memref<1x512xf32, #tpu.memory_space<vmem>>, vector<1x512xf32>
    %364 = vector.broadcast %363 : vector<1x512xf32> to vector<6x512xf32>
    %365 = arith.mulf %362, %364 : vector<6x512xf32>
    %c0_158 = arith.constant 0 : index
    %c0_159 = arith.constant 0 : index
    %366 = vector.load %arg42[%c0_158, %c0_159] : memref<1x512xf32, #tpu.memory_space<vmem>>, vector<1x512xf32>
    %367 = vector.broadcast %366 : vector<1x512xf32> to vector<6x512xf32>
    %368 = arith.addf %365, %367 : vector<6x512xf32>
    %369 = vector.extract_strided_slice %368 {offsets = [0, 0], sizes = [3, 512], strides = [1, 1]} : vector<6x512xf32> to vector<3x512xf32>
    %cst_160 = arith.constant dense<0xFF800000> : vector<512xf32>
    %370 = vector.multi_reduction <maximumf>, %369, %cst_160 [0] : vector<3x512xf32> to vector<512xf32>
    %371 = vector.shape_cast %370 : vector<512xf32> to vector<1x512xf32>
    %372 = vector.extract_strided_slice %368 {offsets = [3, 0], sizes = [3, 512], strides = [1, 1]} : vector<6x512xf32> to vector<3x512xf32>
    %cst_161 = arith.constant dense<0xFF800000> : vector<512xf32>
    %373 = vector.multi_reduction <maximumf>, %372, %cst_161 [0] : vector<3x512xf32> to vector<512xf32>
    %374 = vector.shape_cast %373 : vector<512xf32> to vector<1x512xf32>
    %375 = tpu.concatenate %371, %374 in 0 : vector<1x512xf32>, vector<1x512xf32> -> vector<2x512xf32>
    %c0_162 = arith.constant 0 : index
    %c0_163 = arith.constant 0 : index
    %376 = vector.load %arg43[%c0_162, %c0_163] : memref<512x256xf32, #tpu.memory_space<vmem>>, vector<512x256xf32>
    %cst_164 = arith.constant dense<0.000000e+00> : vector<2x256xf32>
    %377 = tpu.matmul %375, %376, %cst_164 {dimension_numbers = #tpu.dot_dimension_numbers<[1], [0], [0], [1], [0, 0, 1, 1], [], []>} : vector<2x512xf32>, vector<512x256xf32>, vector<2x256xf32> -> vector<2x256xf32>
    %c0_165 = arith.constant 0 : index
    %c0_166 = arith.constant 0 : index
    %378 = vector.load %arg44[%c0_165, %c0_166] : memref<1x256xf32, #tpu.memory_space<vmem>>, vector<1x256xf32>
    %379 = vector.broadcast %378 : vector<1x256xf32> to vector<2x256xf32>
    %380 = arith.addf %377, %379 : vector<2x256xf32>
    %c0_167 = arith.constant 0 : index
    %c0_168 = arith.constant 0 : index
    %381 = vector.load %arg45[%c0_167, %c0_168] : memref<1x256xf32, #tpu.memory_space<vmem>>, vector<1x256xf32>
    %382 = vector.broadcast %381 : vector<1x256xf32> to vector<2x256xf32>
    %383 = arith.mulf %380, %382 : vector<2x256xf32>
    %c0_169 = arith.constant 0 : index
    %c0_170 = arith.constant 0 : index
    %384 = vector.load %arg46[%c0_169, %c0_170] : memref<1x256xf32, #tpu.memory_space<vmem>>, vector<1x256xf32>
    %385 = vector.broadcast %384 : vector<1x256xf32> to vector<2x256xf32>
    %386 = arith.addf %383, %385 : vector<2x256xf32>
    %cst_171 = arith.constant 0.000000e+00 : f32
    %387 = vector.broadcast %cst_171 : f32 to vector<2x256xf32>
    %388 = arith.maximumf %386, %387 : vector<2x256xf32>
    %c0_172 = arith.constant 0 : index
    %c0_173 = arith.constant 0 : index
    %389 = vector.load %arg47[%c0_172, %c0_173] : memref<256x1xf32, #tpu.memory_space<vmem>>, vector<256x1xf32>
    %cst_174 = arith.constant dense<0.000000e+00> : vector<2x1xf32>
    %390 = tpu.matmul %388, %389, %cst_174 {dimension_numbers = #tpu.dot_dimension_numbers<[1], [0], [0], [1], [0, 0, 1, 1], [], []>} : vector<2x256xf32>, vector<256x1xf32>, vector<2x1xf32> -> vector<2x1xf32>
    %c0_175 = arith.constant 0 : index
    %c0_176 = arith.constant 0 : index
    %391 = vector.load %arg48[%c0_175, %c0_176] : memref<1x1xf32, #tpu.memory_space<vmem>>, vector<1x1xf32>
    %392 = vector.broadcast %391 : vector<1x1xf32> to vector<2x1xf32>
    %393 = arith.addf %390, %392 : vector<2x1xf32>
    %cst_177 = arith.constant 0.000000e+00 : f32
    %394 = vector.broadcast %cst_177 : f32 to vector<2x1xf32>
    %395 = arith.subf %394, %393 : vector<2x1xf32>
    %396 = math.exp %395 : vector<2x1xf32>
    %cst_178 = arith.constant 1.000000e+00 : f32
    %397 = vector.broadcast %cst_178 : f32 to vector<2x1xf32>
    %398 = arith.addf %397, %396 : vector<2x1xf32>
    %cst_179 = arith.constant 1.000000e+00 : f32
    %399 = vector.broadcast %cst_179 : f32 to vector<2x1xf32>
    %400 = arith.divf %399, %398 : vector<2x1xf32>
    %c0_180 = arith.constant 0 : index
    %c0_181 = arith.constant 0 : index
    %401 = vector.load %arg49[%c0_180, %c0_181] : memref<2x1xf32, #tpu.memory_space<vmem>>, vector<2x1xf32>
    tpu.vector_store %arg49[%c0_180, %c0_181], %400 {strides = array<i32>} : memref<2x1xf32, #tpu.memory_space<vmem>>, vector<2x1xf32>,
    return
  }
}

</mosaic_0001>

<llo_original>
// kernel: forward.1
$region0: #{forward.1}
  #allocation0 [shape = 'u32[]', space=smem, size = 0x4, offset = 0x4, fixed_abs, tag = 'smem constant byte address 0x4 - core index']
  #allocation1 [shape = 'u32[144,128]{1,0:T(1,128)}', space=vmem, size = 0x12000, scoped, tag = 'internal scratch']
  #allocation2 [shape = 'f32[1,1]{1,0:T(1,128)S(1)}', space=vmem, size = 0x200, scoped, tag = 'scoped memory for forward.1']
  %s0 = inlined_call_operand.smem [shape: u32[50], index: -1, kind: input, shape index: {}]
  %s1 = sld [smem:[%s0]]
  %s2 = scalar_lea.smem %s0, 1
  %s3 = sld [smem:[%s2]]
  %s4 = scalar_lea.smem %s0, 2
  %s5 = sld [smem:[%s4]]
  %s6 = scalar_lea.smem %s0, 3
  %s7 = sld [smem:[%s6]]
  %s8 = scalar_lea.smem %s0, 4
  %s9 = sld [smem:[%s8]]
  %s10 = scalar_lea.smem %s0, 5
  %s11 = sld [smem:[%s10]]
  %s12 = scalar_lea.smem %s0, 6
  %s13 = sld [smem:[%s12]]
  %s14 = scalar_lea.smem %s0, 7
  %s15 = sld [smem:[%s14]]
  %s16 = scalar_lea.smem %s0, 8
  %s17 = sld [smem:[%s16]]
  %s18 = scalar_lea.smem %s0, 9
  %s19 = sld [smem:[%s18]]
  %s20 = scalar_lea.smem %s0, 10
  %s21 = sld [smem:[%s20]]
  %s22 = scalar_lea.smem %s0, 11
  %s23 = sld [smem:[%s22]]
  %s24 = scalar_lea.smem %s0, 12
  %s25 = sld [smem:[%s24]]
  %s26 = scalar_lea.smem %s0, 13
  %s27 = sld [smem:[%s26]]
  %s28 = scalar_lea.smem %s0, 14
  %s29 = sld [smem:[%s28]]
  %s30 = scalar_lea.smem %s0, 15
  %s31 = sld [smem:[%s30]]
  %s32 = scalar_lea.smem %s0, 16
  %s33 = sld [smem:[%s32]]
  %s34 = scalar_lea.smem %s0, 17
  %s35 = sld [smem:[%s34]]
  %s36 = scalar_lea.smem %s0, 18
  %s37 = sld [smem:[%s36]]
  %s38 = scalar_lea.smem %s0, 19
  %s39 = sld [smem:[%s38]]
  %s40 = scalar_lea.smem %s0, 20
  %s41 = sld [smem:[%s40]]
  %s42 = scalar_lea.smem %s0, 21
  %s43 = sld [smem:[%s42]]
  %s44 = scalar_lea.smem %s0, 22
  %s45 = sld [smem:[%s44]]
  %s46 = scalar_lea.smem %s0, 23
  %s47 = sld [smem:[%s46]]
  %s48 = scalar_lea.smem %s0, 24
  %s49 = sld [smem:[%s48]]
  %s50 = scalar_lea.smem %s0, 25
  %s51 = sld [smem:[%s50]]
  %s52 = scalar_lea.smem %s0, 26
  %s53 = sld [smem:[%s52]]
  %s54 = scalar_lea.smem %s0, 27
  %s55 = sld [smem:[%s54]]
  %s56 = scalar_lea.smem %s0, 28
  %s57 = sld [smem:[%s56]]
  %s58 = scalar_lea.smem %s0, 29
  %s59 = sld [smem:[%s58]]
  %s60 = scalar_lea.smem %s0, 30
  %s61 = sld [smem:[%s60]]
  %s62 = scalar_lea.smem %s0, 31
  %s63 = sld [smem:[%s62]]
  %s64 = scalar_lea.smem %s0, 32
  %s65 = sld [smem:[%s64]]
  %s66 = scalar_lea.smem %s0, 33
  %s67 = sld [smem:[%s66]]
  %s68 = scalar_lea.smem %s0, 34
  %s69 = sld [smem:[%s68]]
  %s70 = scalar_lea.smem %s0, 35
  %s71 = sld [smem:[%s70]]
  %s72 = scalar_lea.smem %s0, 36
  %s73 = sld [smem:[%s72]]
  %s74 = scalar_lea.smem %s0, 37
  %s75 = sld [smem:[%s74]]
  %s76 = scalar_lea.smem %s0, 38
  %s77 = sld [smem:[%s76]]
  %s78 = scalar_lea.smem %s0, 39
  %s79 = sld [smem:[%s78]]
  %s80 = scalar_lea.smem %s0, 40
  %s81 = sld [smem:[%s80]]
  %s82 = scalar_lea.smem %s0, 41
  %s83 = sld [smem:[%s82]]
  %s84 = scalar_lea.smem %s0, 42
  %s85 = sld [smem:[%s84]]
  %s86 = scalar_lea.smem %s0, 43
  %s87 = sld [smem:[%s86]]
  %s88 = scalar_lea.smem %s0, 44
  %s89 = sld [smem:[%s88]]
  %s90 = scalar_lea.smem %s0, 45
  %s91 = sld [smem:[%s90]]
  %s92 = scalar_lea.smem %s0, 46
  %s93 = sld [smem:[%s92]]
  %s94 = scalar_lea.smem %s0, 47
  %s95 = sld [smem:[%s94]]
  %s96 = scalar_lea.smem %s0, 48
  %s97 = sld [smem:[%s96]]
  %s98 = scalar_lea.smem %s0, 49
  %s99 = sld [smem:[%s98]]
  %s100 = sld [smem:[#allocation0]]
  $region310: #{forward.1} parent=0
    _
  %s102 = ssub.s32 1, %s100
  %s103 = scalar_select 0, %s102, %s100
  %v104 = vstv %s97
  %105 = vst [vmem:[#allocation2] sm:$0x1] %v104
  $region1: #{forward.1} parent=0
    #allocation3 [shape = 'u8[12288]{0}', space=vmem, size = 0x3000, scoped, tag = 'input window, operand 1, single buffered']
    #allocation4 [shape = 's32[1]{0}', space=sflag, size = 0x4, scoped, tag = 'scoped memory for forward.1']
    #allocation5 [shape = 'u8[512]{0}', space=vmem, size = 0x400, scoped, tag = 'input window, operand 2, single buffered']
    #allocation6 [shape = 's32[1]{0}', space=sflag, size = 0x4, scoped, tag = 'scoped memory for forward.1']
    #allocation7 [shape = 'u8[12288]{0}', space=vmem, size = 0x3000, scoped, tag = 'input window, operand 3, single buffered']
    #allocation8 [shape = 'u8[512]{0}', space=vmem, size = 0x400, scoped, tag = 'input window, operand 4, single buffered']
    #allocation9 [shape = 's32[1]{0}', space=sflag, size = 0x4, scoped, tag = 'scoped memory for forward.1']
    #allocation10 [shape = 'u8[512]{0}', space=vmem, size = 0x400, scoped, tag = 'input window, operand 6, single buffered']
    #allocation11 [shape = 'u8[12288]{0}', space=vmem, size = 0x3000, scoped, tag = 'input window, operand 7, single buffered']
    #allocation12 [shape = 's32[1]{0}', space=sflag, size = 0x4, scoped, tag = 'scoped memory for forward.1']
    #allocation13 [shape = 'u8[512]{0}', space=vmem, size = 0x400, scoped, tag = 'input window, operand 8, single buffered']
    #allocation14 [shape = 'u8[512]{0}', space=vmem, size = 0x400, scoped, tag = 'input window, operand 10, single buffered']
    #allocation15 [shape = 's32[1]{0}', space=sflag, size = 0x4, scoped, tag = 'scoped memory for forward.1']
    #allocation16 [shape = 'u8[12288]{0}', space=vmem, size = 0x3000, scoped, tag = 'input window, operand 11, single buffered']
    #allocation17 [shape = 'u8[512]{0}', space=vmem, size = 0x400, scoped, tag = 'input window, operand 12, single buffered']
    #allocation18 [shape = 's32[1]{0}', space=sflag, size = 0x4, scoped, tag = 'scoped memory for forward.1']
    #allocation19 [shape = 'u8[512]{0}', space=vmem, size = 0x400, scoped, tag = 'input window, operand 13, single buffered']
    #allocation20 [shape = 'u8[512]{0}', space=vmem, size = 0x400, scoped, tag = 'input window, operand 14, single buffered']
    #allocation21 [shape = 's32[1]{0}', space=sflag, size = 0x4, scoped, tag = 'scoped memory for forward.1']
    #allocation22 [shape = 'u8[512]{0}', space=vmem, size = 0x400, scoped, tag = 'input window, operand 16, single buffered']
    #allocation23 [shape = 'u8[512]{0}', space=vmem, size = 0x400, scoped, tag = 'input window, operand 18, single buffered']
    #allocation24 [shape = 's32[1]{0}', space=sflag, size = 0x4, scoped, tag = 'scoped memory for forward.1']
    #allocation25 [shape = 'u8[512]{0}', space=vmem, size = 0x400, scoped, tag = 'input window, operand 20, single buffered']
    #allocation26 [shape = 'u8[512]{0}', space=vmem, size = 0x400, scoped, tag = 'input window, operand 22, single buffered']
    #allocation27 [shape = 's32[1]{0}', space=sflag, size = 0x4, scoped, tag = 'scoped memory for forward.1']
    #allocation28 [shape = 'u8[512]{0}', space=vmem, size = 0x400, scoped, tag = 'input window, operand 24, single buffered']
    #allocation29 [shape = 'u8[512]{0}', space=vmem, size = 0x400, scoped, tag = 'input window, operand 26, single buffered']
    #allocation30 [shape = 's32[1]{0}', space=sflag, size = 0x4, scoped, tag = 'scoped memory for forward.1']
    #allocation31 [shape = 'u8[1024]{0}', space=vmem, size = 0x400, scoped, tag = 'input window, operand 27, single buffered']
    #allocation32 [shape = 'u8[1024]{0}', space=vmem, size = 0x400, scoped, tag = 'input window, operand 28, single buffered']
    #allocation33 [shape = 's32[1]{0}', space=sflag, size = 0x4, scoped, tag = 'scoped memory for forward.1']
    #allocation34 [shape = 'u8[131072]{0}', space=vmem, size = 0x20000, scoped, tag = 'input window, operand 31, single buffered']
    #allocation35 [shape = 'u8[131072]{0}', space=vmem, size = 0x20000, scoped, tag = 'input window, operand 35, single buffered']
    #allocation36 [shape = 's32[1]{0}', space=sflag, size = 0x4, scoped, tag = 'scoped memory for forward.1']
    #allocation37 [shape = 'u8[131072]{0}', space=vmem, size = 0x20000, scoped, tag = 'input window, operand 39, single buffered']
    #allocation38 [shape = 'u8[1024]{0}', space=vmem, size = 0x400, scoped, tag = 'input window, operand 44, single buffered']
    #allocation39 [shape = 's32[1]{0}', space=sflag, size = 0x4, scoped, tag = 'scoped memory for forward.1']
    #allocation40 [shape = 'u8[1024]{0}', space=vmem, size = 0x400, scoped, tag = 'input window, operand 45, single buffered']
    #allocation41 [shape = 'u8[1024]{0}', space=vmem, size = 0x400, scoped, tag = 'input window, operand 46, single buffered']
    #allocation42 [shape = 's32[1]{0}', space=sflag, size = 0x4, scoped, tag = 'scoped memory for forward.1']
    %106 = vsyncpa [#allocation4], 0
    %107 = vsyncpa [#allocation6], 0
    %108 = vsyncpa [#allocation9], 0
    %109 = vsyncpa [#allocation12], 0
    %110 = vsyncpa [#allocation15], 0
    %111 = vsyncpa [#allocation18], 0
    %112 = vsyncpa [#allocation21], 0
    %113 = vsyncpa [#allocation24], 0
    %114 = vsyncpa [#allocation27], 0
    %115 = vsyncpa [#allocation30], 0
    %116 = vsyncpa [#allocation33], 0
    %117 = vsyncpa [#allocation36], 0
    %118 = vsyncpa [#allocation39], 0
    %119 = vsyncpa [#allocation42], 0
    // Predicated region
    $region2: #{forward.1} parent=1 // pred_check
      _
    $region3: #{forward.1} parent=1 // pred_check_branch
      %121 = sbr.rel (0) target = $region5
    $region4: #{forward.1} parent=1 // pred_region
      _
    $region5: #{forward.1} parent=1 // pred_fallthru
      _
    // Predicated region
    $region6: #{forward.1} parent=1 // pred_check
      _
    $region7: #{forward.1} parent=1 // pred_check_branch
      %123 = sbr.rel (0) target = $region9
    $region8: #{forward.1} parent=1 // pred_region
      %s125 = ssub.s32 384, 384
      %126 = vsyncadd [#allocation4], %s125
      %s127 = sshll.u32 [#allocation3], 4
      %s128 = int_to_ptr.vmem [resolvable:$true] %s127
      %133 = dma.hbm_to_vmem [thread:$0]  %s3, 384, %s128, [#allocation4], 128, 128, 8
    $region9: #{forward.1} parent=1 // pred_fallthru
      _
    // Predicated region
    $region10: #{forward.1} parent=1 // pred_check
      _
    $region11: #{forward.1} parent=1 // pred_check_branch
      %135 = sbr.rel (0) target = $region13
    $region12: #{forward.1} parent=1 // pred_region
      %s137 = ssub.s32 16, 16
      %138 = vsyncadd [#allocation6], %s137
      %s140 = sshll.u32 [#allocation5], 4
      %s141 = int_to_ptr.vmem [resolvable:$true] %s140
      %143 = dma.hbm_to_vmem [thread:$0]  %s5, 16, %s141, [#allocation6]
    $region13: #{forward.1} parent=1 // pred_fallthru
      _
    // Predicated region
    $region14: #{forward.1} parent=1 // pred_check
      _
    $region15: #{forward.1} parent=1 // pred_check_branch
      %145 = sbr.rel (0) target = $region17
    $region16: #{forward.1} parent=1 // pred_region
      %s147 = ssub.s32 384, 384
      %148 = vsyncadd [#allocation6], %s147
      %s149 = sshll.u32 [#allocation7], 4
      %s150 = int_to_ptr.vmem [resolvable:$true] %s149
      %155 = dma.hbm_to_vmem [thread:$0]  %s7, 384, %s150, [#allocation6], 128, 128, 8
    $region17: #{forward.1} parent=1 // pred_fallthru
      _
    // Predicated region
    $region18: #{forward.1} parent=1 // pred_check
      _
    $region19: #{forward.1} parent=1 // pred_check_branch
      %157 = sbr.rel (0) target = $region21
    $region20: #{forward.1} parent=1 // pred_region
      %s159 = ssub.s32 16, 16
      %160 = vsyncadd [#allocation9], %s159
      %s162 = sshll.u32 [#allocation8], 4
      %s163 = int_to_ptr.vmem [resolvable:$true] %s162
      %165 = dma.hbm_to_vmem [thread:$0]  %s9, 16, %s163, [#allocation9]
    $region21: #{forward.1} parent=1 // pred_fallthru
      _
    // Predicated region
    $region22: #{forward.1} parent=1 // pred_check
      _
    $region23: #{forward.1} parent=1 // pred_check_branch
      %167 = sbr.rel (0) target = $region25
    $region24: #{forward.1} parent=1 // pred_region
      _
    $region25: #{forward.1} parent=1 // pred_fallthru
      _
    // Predicated region
    $region26: #{forward.1} parent=1 // pred_check
      _
    $region27: #{forward.1} parent=1 // pred_check_branch
      %169 = sbr.rel (0) target = $region29
    $region28: #{forward.1} parent=1 // pred_region
      %s171 = ssub.s32 16, 16
      %172 = vsyncadd [#allocation9], %s171
      %s174 = sshll.u32 [#allocation10], 4
      %s175 = int_to_ptr.vmem [resolvable:$true] %s174
      %177 = dma.hbm_to_vmem [thread:$0]  %s13, 16, %s175, [#allocation9]
    $region29: #{forward.1} parent=1 // pred_fallthru
      _
    // Predicated region
    $region30: #{forward.1} parent=1 // pred_check
      _
    $region31: #{forward.1} parent=1 // pred_check_branch
      %179 = sbr.rel (0) target = $region33
    $region32: #{forward.1} parent=1 // pred_region
      %s181 = ssub.s32 384, 384
      %182 = vsyncadd [#allocation12], %s181
      %s183 = sshll.u32 [#allocation11], 4
      %s184 = int_to_ptr.vmem [resolvable:$true] %s183
      %189 = dma.hbm_to_vmem [thread:$0]  %s15, 384, %s184, [#allocation12], 128, 128, 8
    $region33: #{forward.1} parent=1 // pred_fallthru
      _
    // Predicated region
    $region34: #{forward.1} parent=1 // pred_check
      _
    $region35: #{forward.1} parent=1 // pred_check_branch
      %191 = sbr.rel (0) target = $region37
    $region36: #{forward.1} parent=1 // pred_region
      %s193 = ssub.s32 16, 16
      %194 = vsyncadd [#allocation12], %s193
      %s196 = sshll.u32 [#allocation13], 4
      %s197 = int_to_ptr.vmem [resolvable:$true] %s196
      %199 = dma.hbm_to_vmem [thread:$0]  %s17, 16, %s197, [#allocation12]
    $region37: #{forward.1} parent=1 // pred_fallthru
      _
    // Predicated region
    $region38: #{forward.1} parent=1 // pred_check
      _
    $region39: #{forward.1} parent=1 // pred_check_branch
      %201 = sbr.rel (0) target = $region41
    $region40: #{forward.1} parent=1 // pred_region
      _
    $region41: #{forward.1} parent=1 // pred_fallthru
      _
    // Predicated region
    $region42: #{forward.1} parent=1 // pred_check
      _
    $region43: #{forward.1} parent=1 // pred_check_branch
      %203 = sbr.rel (0) target = $region45
    $region44: #{forward.1} parent=1 // pred_region
      %s205 = ssub.s32 16, 16
      %206 = vsyncadd [#allocation15], %s205
      %s208 = sshll.u32 [#allocation14], 4
      %s209 = int_to_ptr.vmem [resolvable:$true] %s208
      %211 = dma.hbm_to_vmem [thread:$0]  %s21, 16, %s209, [#allocation15]
    $region45: #{forward.1} parent=1 // pred_fallthru
      _
    // Predicated region
    $region46: #{forward.1} parent=1 // pred_check
      _
    $region47: #{forward.1} parent=1 // pred_check_branch
      %213 = sbr.rel (0) target = $region49
    $region48: #{forward.1} parent=1 // pred_region
      %s215 = ssub.s32 384, 384
      %216 = vsyncadd [#allocation15], %s215
      %s217 = sshll.u32 [#allocation16], 4
      %s218 = int_to_ptr.vmem [resolvable:$true] %s217
      %223 = dma.hbm_to_vmem [thread:$0]  %s23, 384, %s218, [#allocation15], 128, 128, 8
    $region49: #{forward.1} parent=1 // pred_fallthru
      _
    // Predicated region
    $region50: #{forward.1} parent=1 // pred_check
      _
    $region51: #{forward.1} parent=1 // pred_check_branch
      %225 = sbr.rel (0) target = $region53
    $region52: #{forward.1} parent=1 // pred_region
      %s227 = ssub.s32 16, 16
      %228 = vsyncadd [#allocation18], %s227
      %s230 = sshll.u32 [#allocation17], 4
      %s231 = int_to_ptr.vmem [resolvable:$true] %s230
      %233 = dma.hbm_to_vmem [thread:$0]  %s25, 16, %s231, [#allocation18]
    $region53: #{forward.1} parent=1 // pred_fallthru
      _
    // Predicated region
    $region54: #{forward.1} parent=1 // pred_check
      _
    $region55: #{forward.1} parent=1 // pred_check_branch
      %235 = sbr.rel (0) target = $region57
    $region56: #{forward.1} parent=1 // pred_region
      %s237 = ssub.s32 16, 16
      %238 = vsyncadd [#allocation18], %s237
      %s240 = sshll.u32 [#allocation19], 4
      %s241 = int_to_ptr.vmem [resolvable:$true] %s240
      %243 = dma.hbm_to_vmem [thread:$0]  %s27, 16, %s241, [#allocation18]
    $region57: #{forward.1} parent=1 // pred_fallthru
      _
    // Predicated region
    $region58: #{forward.1} parent=1 // pred_check
      _
    $region59: #{forward.1} parent=1 // pred_check_branch
      %245 = sbr.rel (0) target = $region61
    $region60: #{forward.1} parent=1 // pred_region
      %s247 = ssub.s32 16, 16
      %248 = vsyncadd [#allocation21], %s247
      %s250 = sshll.u32 [#allocation20], 4
      %s251 = int_to_ptr.vmem [resolvable:$true] %s250
      %253 = dma.hbm_to_vmem [thread:$0]  %s29, 16, %s251, [#allocation21]
    $region61: #{forward.1} parent=1 // pred_fallthru
      _
    // Predicated region
    $region62: #{forward.1} parent=1 // pred_check
      _
    $region63: #{forward.1} parent=1 // pred_check_branch
      %255 = sbr.rel (0) target = $region65
    $region64: #{forward.1} parent=1 // pred_region
      _
    $region65: #{forward.1} parent=1 // pred_fallthru
      _
    // Predicated region
    $region66: #{forward.1} parent=1 // pred_check
      _
    $region67: #{forward.1} parent=1 // pred_check_branch
      %257 = sbr.rel (0) target = $region69
    $region68: #{forward.1} parent=1 // pred_region
      %s259 = ssub.s32 16, 16
      %260 = vsyncadd [#allocation21], %s259
      %s262 = sshll.u32 [#allocation22], 4
      %s263 = int_to_ptr.vmem [resolvable:$true] %s262
      %265 = dma.hbm_to_vmem [thread:$0]  %s33, 16, %s263, [#allocation21]
    $region69: #{forward.1} parent=1 // pred_fallthru
      _
    // Predicated region
    $region70: #{forward.1} parent=1 // pred_check
      _
    $region71: #{forward.1} parent=1 // pred_check_branch
      %267 = sbr.rel (0) target = $region73
    $region72: #{forward.1} parent=1 // pred_region
      _
    $region73: #{forward.1} parent=1 // pred_fallthru
      _
    // Predicated region
    $region74: #{forward.1} parent=1 // pred_check
      _
    $region75: #{forward.1} parent=1 // pred_check_branch
      %269 = sbr.rel (0) target = $region77
    $region76: #{forward.1} parent=1 // pred_region
      %s271 = ssub.s32 16, 16
      %272 = vsyncadd [#allocation24], %s271
      %s274 = sshll.u32 [#allocation23], 4
      %s275 = int_to_ptr.vmem [resolvable:$true] %s274
      %277 = dma.hbm_to_vmem [thread:$0]  %s37, 16, %s275, [#allocation24]
    $region77: #{forward.1} parent=1 // pred_fallthru
      _
    // Predicated region
    $region78: #{forward.1} parent=1 // pred_check
      _
    $region79: #{forward.1} parent=1 // pred_check_branch
      %279 = sbr.rel (0) target = $region81
    $region80: #{forward.1} parent=1 // pred_region
      _
    $region81: #{forward.1} parent=1 // pred_fallthru
      _
    // Predicated region
    $region82: #{forward.1} parent=1 // pred_check
      _
    $region83: #{forward.1} parent=1 // pred_check_branch
      %281 = sbr.rel (0) target = $region85
    $region84: #{forward.1} parent=1 // pred_region
      %s283 = ssub.s32 16, 16
      %284 = vsyncadd [#allocation24], %s283
      %s286 = sshll.u32 [#allocation25], 4
      %s287 = int_to_ptr.vmem [resolvable:$true] %s286
      %289 = dma.hbm_to_vmem [thread:$0]  %s41, 16, %s287, [#allocation24]
    $region85: #{forward.1} parent=1 // pred_fallthru
      _
    // Predicated region
    $region86: #{forward.1} parent=1 // pred_check
      _
    $region87: #{forward.1} parent=1 // pred_check_branch
      %291 = sbr.rel (0) target = $region89
    $region88: #{forward.1} parent=1 // pred_region
      _
    $region89: #{forward.1} parent=1 // pred_fallthru
      _
    // Predicated region
    $region90: #{forward.1} parent=1 // pred_check
      _
    $region91: #{forward.1} parent=1 // pred_check_branch
      %293 = sbr.rel (0) target = $region93
    $region92: #{forward.1} parent=1 // pred_region
      %s295 = ssub.s32 16, 16
      %296 = vsyncadd [#allocation27], %s295
      %s298 = sshll.u32 [#allocation26], 4
      %s299 = int_to_ptr.vmem [resolvable:$true] %s298
      %301 = dma.hbm_to_vmem [thread:$0]  %s45, 16, %s299, [#allocation27]
    $region93: #{forward.1} parent=1 // pred_fallthru
      _
    // Predicated region
    $region94: #{forward.1} parent=1 // pred_check
      _
    $region95: #{forward.1} parent=1 // pred_check_branch
      %303 = sbr.rel (0) target = $region97
    $region96: #{forward.1} parent=1 // pred_region
      _
    $region97: #{forward.1} parent=1 // pred_fallthru
      _
    // Predicated region
    $region98: #{forward.1} parent=1 // pred_check
      _
    $region99: #{forward.1} parent=1 // pred_check_branch
      %305 = sbr.rel (0) target = $region101
    $region100: #{forward.1} parent=1 // pred_region
      %s307 = ssub.s32 16, 16
      %308 = vsyncadd [#allocation27], %s307
      %s310 = sshll.u32 [#allocation28], 4
      %s311 = int_to_ptr.vmem [resolvable:$true] %s310
      %313 = dma.hbm_to_vmem [thread:$0]  %s49, 16, %s311, [#allocation27]
    $region101: #{forward.1} parent=1 // pred_fallthru
      _
    // Predicated region
    $region102: #{forward.1} parent=1 // pred_check
      _
    $region103: #{forward.1} parent=1 // pred_check_branch
      %315 = sbr.rel (0) target = $region105
    $region104: #{forward.1} parent=1 // pred_region
      _
    $region105: #{forward.1} parent=1 // pred_fallthru
      _
    // Predicated region
    $region106: #{forward.1} parent=1 // pred_check
      _
    $region107: #{forward.1} parent=1 // pred_check_branch
      %317 = sbr.rel (0) target = $region109
    $region108: #{forward.1} parent=1 // pred_region
      %s319 = ssub.s32 16, 16
      %320 = vsyncadd [#allocation30], %s319
      %s322 = sshll.u32 [#allocation29], 4
      %s323 = int_to_ptr.vmem [resolvable:$true] %s322
      %325 = dma.hbm_to_vmem [thread:$0]  %s53, 16, %s323, [#allocation30]
    $region109: #{forward.1} parent=1 // pred_fallthru
      _
    // Predicated region
    $region110: #{forward.1} parent=1 // pred_check
      _
    $region111: #{forward.1} parent=1 // pred_check_branch
      %327 = sbr.rel (0) target = $region113
    $region112: #{forward.1} parent=1 // pred_region
      %s329 = ssub.s32 32, 32
      %330 = vsyncadd [#allocation30], %s329
      %s332 = sshll.u32 [#allocation31], 4
      %s333 = int_to_ptr.vmem [resolvable:$true] %s332
      %335 = dma.hbm_to_vmem [thread:$0]  %s55, 32, %s333, [#allocation30]
    $region113: #{forward.1} parent=1 // pred_fallthru
      _
    // Predicated region
    $region114: #{forward.1} parent=1 // pred_check
      _
    $region115: #{forward.1} parent=1 // pred_check_branch
      %337 = sbr.rel (0) target = $region117
    $region116: #{forward.1} parent=1 // pred_region
      %s339 = ssub.s32 32, 32
      %340 = vsyncadd [#allocation33], %s339
      %s342 = sshll.u32 [#allocation32], 4
      %s343 = int_to_ptr.vmem [resolvable:$true] %s342
      %345 = dma.hbm_to_vmem [thread:$0]  %s57, 32, %s343, [#allocation33]
    $region117: #{forward.1} parent=1 // pred_fallthru
      _
    // Predicated region
    $region118: #{forward.1} parent=1 // pred_check
      _
    $region119: #{forward.1} parent=1 // pred_check_branch
      %347 = sbr.rel (0) target = $region121
    $region120: #{forward.1} parent=1 // pred_region
      _
    $region121: #{forward.1} parent=1 // pred_fallthru
      _
    // Predicated region
    $region122: #{forward.1} parent=1 // pred_check
      _
    $region123: #{forward.1} parent=1 // pred_check_branch
      %349 = sbr.rel (0) target = $region125
    $region124: #{forward.1} parent=1 // pred_region
      _
    $region125: #{forward.1} parent=1 // pred_fallthru
      _
    // Predicated region
    $region126: #{forward.1} parent=1 // pred_check
      _
    $region127: #{forward.1} parent=1 // pred_check_branch
      %351 = sbr.rel (0) target = $region129
    $region128: #{forward.1} parent=1 // pred_region
      %s353 = ssub.s32 4096, 4096
      %354 = vsyncadd [#allocation33], %s353
      %s355 = sshll.u32 [#allocation34], 4
      %s356 = int_to_ptr.vmem [resolvable:$true] %s355
      %361 = dma.hbm_to_vmem [thread:$0]  %s63, 4096, %s356, [#allocation33], 128, 128, 8
    $region129: #{forward.1} parent=1 // pred_fallthru
      _
    // Predicated region
    $region130: #{forward.1} parent=1 // pred_check
      _
    $region131: #{forward.1} parent=1 // pred_check_branch
      %363 = sbr.rel (0) target = $region133
    $region132: #{forward.1} parent=1 // pred_region
      _
    $region133: #{forward.1} parent=1 // pred_fallthru
      _
    // Predicated region
    $region134: #{forward.1} parent=1 // pred_check
      _
    $region135: #{forward.1} parent=1 // pred_check_branch
      %365 = sbr.rel (0) target = $region137
    $region136: #{forward.1} parent=1 // pred_region
      _
    $region137: #{forward.1} parent=1 // pred_fallthru
      _
    // Predicated region
    $region138: #{forward.1} parent=1 // pred_check
      _
    $region139: #{forward.1} parent=1 // pred_check_branch
      %367 = sbr.rel (0) target = $region141
    $region140: #{forward.1} parent=1 // pred_region
      _
    $region141: #{forward.1} parent=1 // pred_fallthru
      _
    // Predicated region
    $region142: #{forward.1} parent=1 // pred_check
      _
    $region143: #{forward.1} parent=1 // pred_check_branch
      %369 = sbr.rel (0) target = $region145
    $region144: #{forward.1} parent=1 // pred_region
      %s371 = ssub.s32 4096, 4096
      %372 = vsyncadd [#allocation36], %s371
      %s373 = sshll.u32 [#allocation35], 4
      %s374 = int_to_ptr.vmem [resolvable:$true] %s373
      %379 = dma.hbm_to_vmem [thread:$0]  %s71, 4096, %s374, [#allocation36], 128, 128, 8
    $region145: #{forward.1} parent=1 // pred_fallthru
      _
    // Predicated region
    $region146: #{forward.1} parent=1 // pred_check
      _
    $region147: #{forward.1} parent=1 // pred_check_branch
      %381 = sbr.rel (0) target = $region149
    $region148: #{forward.1} parent=1 // pred_region
      _
    $region149: #{forward.1} parent=1 // pred_fallthru
      _
    // Predicated region
    $region150: #{forward.1} parent=1 // pred_check
      _
    $region151: #{forward.1} parent=1 // pred_check_branch
      %383 = sbr.rel (0) target = $region153
    $region152: #{forward.1} parent=1 // pred_region
      _
    $region153: #{forward.1} parent=1 // pred_fallthru
      _
    // Predicated region
    $region154: #{forward.1} parent=1 // pred_check
      _
    $region155: #{forward.1} parent=1 // pred_check_branch
      %385 = sbr.rel (0) target = $region157
    $region156: #{forward.1} parent=1 // pred_region
      _
    $region157: #{forward.1} parent=1 // pred_fallthru
      _
    // Predicated region
    $region158: #{forward.1} parent=1 // pred_check
      _
    $region159: #{forward.1} parent=1 // pred_check_branch
      %387 = sbr.rel (0) target = $region161
    $region160: #{forward.1} parent=1 // pred_region
      %s389 = ssub.s32 4096, 4096
      %390 = vsyncadd [#allocation36], %s389
      %s391 = sshll.u32 [#allocation37], 4
      %s392 = int_to_ptr.vmem [resolvable:$true] %s391
      %397 = dma.hbm_to_vmem [thread:$0]  %s79, 4096, %s392, [#allocation36], 128, 128, 8
    $region161: #{forward.1} parent=1 // pred_fallthru
      _
    // Predicated region
    $region162: #{forward.1} parent=1 // pred_check
      _
    $region163: #{forward.1} parent=1 // pred_check_branch
      %399 = sbr.rel (0) target = $region165
    $region164: #{forward.1} parent=1 // pred_region
      _
    $region165: #{forward.1} parent=1 // pred_fallthru
      _
    // Predicated region
    $region166: #{forward.1} parent=1 // pred_check
      _
    $region167: #{forward.1} parent=1 // pred_check_branch
      %401 = sbr.rel (0) target = $region169
    $region168: #{forward.1} parent=1 // pred_region
      _
    $region169: #{forward.1} parent=1 // pred_fallthru
      _
    // Predicated region
    $region170: #{forward.1} parent=1 // pred_check
      _
    $region171: #{forward.1} parent=1 // pred_check_branch
      %403 = sbr.rel (0) target = $region173
    $region172: #{forward.1} parent=1 // pred_region
      _
    $region173: #{forward.1} parent=1 // pred_fallthru
      _
    // Predicated region
    $region174: #{forward.1} parent=1 // pred_check
      _
    $region175: #{forward.1} parent=1 // pred_check_branch
      %405 = sbr.rel (0) target = $region177
    $region176: #{forward.1} parent=1 // pred_region
      _
    $region177: #{forward.1} parent=1 // pred_fallthru
      _
    // Predicated region
    $region178: #{forward.1} parent=1 // pred_check
      _
    $region179: #{forward.1} parent=1 // pred_check_branch
      %407 = sbr.rel (0) target = $region181
    $region180: #{forward.1} parent=1 // pred_region
      %s409 = ssub.s32 32, 32
      %410 = vsyncadd [#allocation39], %s409
      %s412 = sshll.u32 [#allocation38], 4
      %s413 = int_to_ptr.vmem [resolvable:$true] %s412
      %415 = dma.hbm_to_vmem [thread:$0]  %s89, 32, %s413, [#allocation39]
    $region181: #{forward.1} parent=1 // pred_fallthru
      _
    // Predicated region
    $region182: #{forward.1} parent=1 // pred_check
      _
    $region183: #{forward.1} parent=1 // pred_check_branch
      %417 = sbr.rel (0) target = $region185
    $region184: #{forward.1} parent=1 // pred_region
      %s419 = ssub.s32 32, 32
      %420 = vsyncadd [#allocation39], %s419
      %s422 = sshll.u32 [#allocation40], 4
      %s423 = int_to_ptr.vmem [resolvable:$true] %s422
      %425 = dma.hbm_to_vmem [thread:$0]  %s91, 32, %s423, [#allocation39]
    $region185: #{forward.1} parent=1 // pred_fallthru
      _
    // Predicated region
    $region186: #{forward.1} parent=1 // pred_check
      _
    $region187: #{forward.1} parent=1 // pred_check_branch
      %427 = sbr.rel (0) target = $region189
    $region188: #{forward.1} parent=1 // pred_region
      %s429 = ssub.s32 32, 32
      %430 = vsyncadd [#allocation42], %s429
      %s432 = sshll.u32 [#allocation41], 4
      %s433 = int_to_ptr.vmem [resolvable:$true] %s432
      %435 = dma.hbm_to_vmem [thread:$0]  %s93, 32, %s433, [#allocation42]
    $region189: #{forward.1} parent=1 // pred_fallthru
      _
    // Predicated region
    $region190: #{forward.1} parent=1 // pred_check
      _
    $region191: #{forward.1} parent=1 // pred_check_branch
      %437 = sbr.rel (0) target = $region193
    $region192: #{forward.1} parent=1 // pred_region
      _
    $region193: #{forward.1} parent=1 // pred_fallthru
      _
    // Predicated region
    $region194: #{forward.1} parent=1 // pred_check
      _
    $region195: #{forward.1} parent=1 // pred_check_branch
      %439 = sbr.rel (0) target = $region197
    $region196: #{forward.1} parent=1 // pred_region
      _
    $region197: #{forward.1} parent=1 // pred_fallthru
      _
    // Predicated region
    $region198: #{forward.1} parent=1 // pred_check
      _
    $region199: #{forward.1} parent=1 // pred_check_branch
      %441 = sbr.rel (0) target = $region201
    $region200: #{forward.1} parent=1 // pred_region
      %442 = dma.done [#allocation4], 384
    $region201: #{forward.1} parent=1 // pred_fallthru
      _
    // Predicated region
    $region202: #{forward.1} parent=1 // pred_check
      _
    $region203: #{forward.1} parent=1 // pred_check_branch
      %444 = sbr.rel (0) target = $region205
    $region204: #{forward.1} parent=1 // pred_region
      %445 = dma.done [#allocation6], 16
    $region205: #{forward.1} parent=1 // pred_fallthru
      _
    // Predicated region
    $region206: #{forward.1} parent=1 // pred_check
      _
    $region207: #{forward.1} parent=1 // pred_check_branch
      %447 = sbr.rel (0) target = $region209
    $region208: #{forward.1} parent=1 // pred_region
      %448 = dma.done [#allocation6], 384
    $region209: #{forward.1} parent=1 // pred_fallthru
      _
    // Predicated region
    $region210: #{forward.1} parent=1 // pred_check
      _
    $region211: #{forward.1} parent=1 // pred_check_branch
      %450 = sbr.rel (0) target = $region213
    $region212: #{forward.1} parent=1 // pred_region
      %451 = dma.done [#allocation9], 16
    $region213: #{forward.1} parent=1 // pred_fallthru
      _
    // Predicated region
    $region214: #{forward.1} parent=1 // pred_check
      _
    $region215: #{forward.1} parent=1 // pred_check_branch
      %453 = sbr.rel (0) target = $region217
    $region216: #{forward.1} parent=1 // pred_region
      %454 = dma.done [#allocation9], 16
    $region217: #{forward.1} parent=1 // pred_fallthru
      _
    // Predicated region
    $region218: #{forward.1} parent=1 // pred_check
      _
    $region219: #{forward.1} parent=1 // pred_check_branch
      %456 = sbr.rel (0) target = $region221
    $region220: #{forward.1} parent=1 // pred_region
      %457 = dma.done [#allocation12], 384
    $region221: #{forward.1} parent=1 // pred_fallthru
      _
    // Predicated region
    $region222: #{forward.1} parent=1 // pred_check
      _
    $region223: #{forward.1} parent=1 // pred_check_branch
      %459 = sbr.rel (0) target = $region225
    $region224: #{forward.1} parent=1 // pred_region
      %460 = dma.done [#allocation12], 16
    $region225: #{forward.1} parent=1 // pred_fallthru
      _
    // Predicated region
    $region226: #{forward.1} parent=1 // pred_check
      _
    $region227: #{forward.1} parent=1 // pred_check_branch
      %462 = sbr.rel (0) target = $region229
    $region228: #{forward.1} parent=1 // pred_region
      %463 = dma.done [#allocation15], 16
    $region229: #{forward.1} parent=1 // pred_fallthru
      _
    // Predicated region
    $region230: #{forward.1} parent=1 // pred_check
      _
    $region231: #{forward.1} parent=1 // pred_check_branch
      %465 = sbr.rel (0) target = $region233
    $region232: #{forward.1} parent=1 // pred_region
      %466 = dma.done [#allocation15], 384
    $region233: #{forward.1} parent=1 // pred_fallthru
      _
    // Predicated region
    $region234: #{forward.1} parent=1 // pred_check
      _
    $region235: #{forward.1} parent=1 // pred_check_branch
      %468 = sbr.rel (0) target = $region237
    $region236: #{forward.1} parent=1 // pred_region
      %469 = dma.done [#allocation18], 16
    $region237: #{forward.1} parent=1 // pred_fallthru
      _
    // Predicated region
    $region238: #{forward.1} parent=1 // pred_check
      _
    $region239: #{forward.1} parent=1 // pred_check_branch
      %471 = sbr.rel (0) target = $region241
    $region240: #{forward.1} parent=1 // pred_region
      %472 = dma.done [#allocation18], 16
    $region241: #{forward.1} parent=1 // pred_fallthru
      _
    // Predicated region
    $region242: #{forward.1} parent=1 // pred_check
      _
    $region243: #{forward.1} parent=1 // pred_check_branch
      %474 = sbr.rel (0) target = $region245
    $region244: #{forward.1} parent=1 // pred_region
      %475 = dma.done [#allocation21], 16
    $region245: #{forward.1} parent=1 // pred_fallthru
      _
    // Predicated region
    $region246: #{forward.1} parent=1 // pred_check
      _
    $region247: #{forward.1} parent=1 // pred_check_branch
      %477 = sbr.rel (0) target = $region249
    $region248: #{forward.1} parent=1 // pred_region
      %478 = dma.done [#allocation21], 16
    $region249: #{forward.1} parent=1 // pred_fallthru
      _
    // Predicated region
    $region250: #{forward.1} parent=1 // pred_check
      _
    $region251: #{forward.1} parent=1 // pred_check_branch
      %480 = sbr.rel (0) target = $region253
    $region252: #{forward.1} parent=1 // pred_region
      %481 = dma.done [#allocation24], 16
    $region253: #{forward.1} parent=1 // pred_fallthru
      _
    // Predicated region
    $region254: #{forward.1} parent=1 // pred_check
      _
    $region255: #{forward.1} parent=1 // pred_check_branch
      %483 = sbr.rel (0) target = $region257
    $region256: #{forward.1} parent=1 // pred_region
      %484 = dma.done [#allocation24], 16
    $region257: #{forward.1} parent=1 // pred_fallthru
      _
    // Predicated region
    $region258: #{forward.1} parent=1 // pred_check
      _
    $region259: #{forward.1} parent=1 // pred_check_branch
      %486 = sbr.rel (0) target = $region261
    $region260: #{forward.1} parent=1 // pred_region
      %487 = dma.done [#allocation27], 16
    $region261: #{forward.1} parent=1 // pred_fallthru
      _
    // Predicated region
    $region262: #{forward.1} parent=1 // pred_check
      _
    $region263: #{forward.1} parent=1 // pred_check_branch
      %489 = sbr.rel (0) target = $region265
    $region264: #{forward.1} parent=1 // pred_region
      %490 = dma.done [#allocation27], 16
    $region265: #{forward.1} parent=1 // pred_fallthru
      _
    // Predicated region
    $region266: #{forward.1} parent=1 // pred_check
      _
    $region267: #{forward.1} parent=1 // pred_check_branch
      %492 = sbr.rel (0) target = $region269
    $region268: #{forward.1} parent=1 // pred_region
      %493 = dma.done [#allocation30], 16
    $region269: #{forward.1} parent=1 // pred_fallthru
      _
    // Predicated region
    $region270: #{forward.1} parent=1 // pred_check
      _
    $region271: #{forward.1} parent=1 // pred_check_branch
      %495 = sbr.rel (0) target = $region273
    $region272: #{forward.1} parent=1 // pred_region
      %496 = dma.done [#allocation30], 32
    $region273: #{forward.1} parent=1 // pred_fallthru
      _
    // Predicated region
    $region274: #{forward.1} parent=1 // pred_check
      _
    $region275: #{forward.1} parent=1 // pred_check_branch
      %498 = sbr.rel (0) target = $region277
    $region276: #{forward.1} parent=1 // pred_region
      %499 = dma.done [#allocation33], 32
    $region277: #{forward.1} parent=1 // pred_fallthru
      _
    // Predicated region
    $region278: #{forward.1} parent=1 // pred_check
      _
    $region279: #{forward.1} parent=1 // pred_check_branch
      %501 = sbr.rel (0) target = $region281
    $region280: #{forward.1} parent=1 // pred_region
      %502 = dma.done [#allocation33], 4096
    $region281: #{forward.1} parent=1 // pred_fallthru
      _
    // Predicated region
    $region282: #{forward.1} parent=1 // pred_check
      _
    $region283: #{forward.1} parent=1 // pred_check_branch
      %504 = sbr.rel (0) target = $region285
    $region284: #{forward.1} parent=1 // pred_region
      %505 = dma.done [#allocation36], 4096
    $region285: #{forward.1} parent=1 // pred_fallthru
      _
    // Predicated region
    $region286: #{forward.1} parent=1 // pred_check
      _
    $region287: #{forward.1} parent=1 // pred_check_branch
      %507 = sbr.rel (0) target = $region289
    $region288: #{forward.1} parent=1 // pred_region
      %508 = dma.done [#allocation36], 4096
    $region289: #{forward.1} parent=1 // pred_fallthru
      _
    // Predicated region
    $region290: #{forward.1} parent=1 // pred_check
      _
    $region291: #{forward.1} parent=1 // pred_check_branch
      %510 = sbr.rel (0) target = $region293
    $region292: #{forward.1} parent=1 // pred_region
      %511 = dma.done [#allocation39], 32
    $region293: #{forward.1} parent=1 // pred_fallthru
      _
    // Predicated region
    $region294: #{forward.1} parent=1 // pred_check
      _
    $region295: #{forward.1} parent=1 // pred_check_branch
      %513 = sbr.rel (0) target = $region297
    $region296: #{forward.1} parent=1 // pred_region
      %514 = dma.done [#allocation39], 32
    $region297: #{forward.1} parent=1 // pred_fallthru
      _
    // Predicated region
    $region298: #{forward.1} parent=1 // pred_check
      _
    $region299: #{forward.1} parent=1 // pred_check_branch
      %516 = sbr.rel (0) target = $region301
    $region300: #{forward.1} parent=1 // pred_region
      %517 = dma.done [#allocation42], 32
    $region301: #{forward.1} parent=1 // pred_fallthru
      _
    %v518 = vld [vmem:[%s1] sm:$0xff]
    %v519 = vld [vmem:[%s1 + $0x8] sm:$0xff]
    %v520 = vld [vmem:[%s1 + $0x10] sm:$0xff]
    %v521 = vld [vmem:[%s1 + $0x18] sm:$0xff]
    %v522 = vld [vmem:[%s1 + $0x20] sm:$0xf]
    %v523 = vld [vmem:[#allocation3] sm:$0xff]
    %v524 = vld [vmem:[#allocation3 + $0x8] sm:$0xff]
    %v525 = vld [vmem:[#allocation3 + $0x10] sm:$0x1f]
    %v526 = vld [vmem:[#allocation5] sm:$0x1]
    %v528 = vlaneseq
    %v529 = vshrl.u32 %v528, 7
    %v530 = vsub.s32 0, %v529
    %v531 = vrot.slane %v526, %v530
    %vm533 = vcmask 171008
    %v535 = vsel %vm533, %v518, 0
    %v538 = vsel %vm533, %v519, 0
    %v541 = vsel %vm533, %v520, 0
    %v544 = vsel %vm533, %v521, 0
    %v547 = vsel %vm533, %v522, 0
    %vm549 = vcmask 1044480
    %v551 = vsel %vm549, %v525, 0
    %553 = vmatprep.subr.mxu0 0.0
    %554 = vmatpush1.msra.mxu0 %v523
    %555 = vmatprep.subr.mxu0 0.0
    %556 = vmatpush1.msra.mxu0 %v524
    %557 = vmatprep.subr.mxu0 0.0
    %558 = vmatpush1.msra.mxu0 %v551
    %559 = vmatprep.subr.mxu0 0.0
    %560 = vmatpush1.msra.mxu0 0.0
    %561 = vmatprep.subr.mxu0 0.0
    %562 = vmatpush1.msra.mxu0 0.0
    %563 = vmatprep.subr.mxu0 0.0
    %564 = vmatpush1.msra.mxu0 0.0
    %565 = vmatprep.subr.mxu0 0.0
    %566 = vmatpush1.msra.mxu0 0.0
    %567 = vmatprep.subr.mxu0 0.0
    %568 = vmatpush1.msra.mxu0 0.0
    %569 = vmatprep.subr.mxu0 0.0
    %570 = vmatpush1.msra.mxu0 0.0
    %571 = vmatprep.subr.mxu0 0.0
    %572 = vmatpush1.msra.mxu0 0.0
    %573 = vmatprep.subr.mxu0 0.0
    %574 = vmatpush1.msra.mxu0 0.0
    %575 = vmatprep.subr.mxu0 0.0
    %576 = vmatpush1.msra.mxu0 0.0
    %577 = vmatprep.subr.mxu0 0.0
    %578 = vmatpush1.msra.mxu0 0.0
    %579 = vmatprep.subr.mxu0 0.0
    %580 = vmatpush1.msra.mxu0 0.0
    %581 = vmatprep.subr.mxu0 0.0
    %582 = vmatpush1.msra.mxu0 0.0
    %583 = vmatprep.subr.mxu0 0.0
    %584 = vmatpush1.msra.mxu0 0.0
    %585 = vmatprep.subr.mxu0 0.0
    %586 = vmatpush1.msra.mxu0 0.0
    %587 = vmatprep.subr.mxu0 0.0
    %588 = vmatpush1.msra.mxu0 0.0
    %589 = vmatprep.subr.mxu0 0.0
    %590 = vmatpush1.msra.mxu0 0.0
    %591 = vmatprep.subr.mxu0 0.0
    %592 = vmatpush1.msra.mxu0 0.0
    %593 = vmatprep.subr.mxu0 0.0
    %594 = vmatpush1.msra.mxu0 0.0
    %595 = vmatprep.subr.mxu0 0.0
    %596 = vmatpush1.msra.mxu0 0.0
    %597 = vmatprep.subr.mxu0 0.0
    %598 = vmatpush1.msra.mxu0 0.0
    %599 = vmatprep.subr.mxu0 0.0
    %600 = vmatpush1.msra.mxu0 0.0
    %601 = vmatprep.subr.mxu0 0.0
    %602 = vmatpush1.msra.mxu0 0.0
    %603 = vmatprep.subr.mxu0 0.0
    %604 = vmatpush1.msra.mxu0 0.0
    %605 = vmatprep.subr.mxu0 0.0
    %606 = vmatpush1.msra.mxu0 0.0
    %607 = vmatprep.subr.mxu0 0.0
    %608 = vmatpush1.msra.mxu0 0.0
    %609 = vmatprep.subr.mxu0 0.0
    %610 = vmatpush1.msra.mxu0 0.0
    %611 = vmatprep.subr.mxu0 0.0
    %612 = vmatpush1.msra.mxu0 0.0
    %613 = vmatprep.subr.mxu0 0.0
    %614 = vmatpush1.msra.mxu0 0.0
    %615 = vmatprep.subr.mxu0 0.0
    %616 = vmatpush1.msra.mxu0 0.0
    %617 = vmatprep.mubr.f32.mxu0 0.0
    %618 = vmatmul.mubr.f32.gmra.mrb[0].mxu0 %v535
    %v619 = vpop.f32.mrb[0].mxu0
    %v620 = vadd.f32 %v531, %v619
    %v621 = vpop.f32.mrb[0].mxu0
    %622 = vmatprep.mubr.f32.mxu0 0.0
    %623 = vmatmul.mubr.f32.gmra.mrb[0].mxu0 %v538
    %v624 = vpop.f32.mrb[0].mxu0
    %v625 = vadd.f32 %v531, %v624
    %v626 = vpop.f32.mrb[0].mxu0
    %627 = vmatprep.mubr.f32.mxu0 0.0
    %628 = vmatmul.mubr.f32.gmra.mrb[0].mxu0 %v541
    %v629 = vpop.f32.mrb[0].mxu0
    %v630 = vadd.f32 %v531, %v629
    %v631 = vpop.f32.mrb[0].mxu0
    %632 = vmatprep.mubr.f32.mxu0 0.0
    %633 = vmatmul.mubr.f32.gmra.mrb[0].mxu0 %v544
    %v634 = vpop.f32.mrb[0].mxu0
    %v635 = vadd.f32 %v531, %v634
    %v636 = vpop.f32.mrb[0].mxu0
    %637 = vmatprep.mubr.f32.mxu0 0.0
    %638 = vmatmul.mubr.f32.gmra.mrb[0].mxu0 %v547
    %v639 = vpop.f32.mrb[0].mxu0
    %v640 = vadd.f32 %v531, %v639
    %v641 = vpop.f32.mrb[0].mxu0
    %642 = vdwg.mxu0
    %v643 = vmax.f32 %v620, 0.0
    %v644 = vmax.f32 %v625, 0.0
    %v645 = vmax.f32 %v630, 0.0
    %v646 = vmax.f32 %v635, 0.0
    %v647 = vmax.f32 %v640, 0.0
    %v648 = vld [vmem:[#allocation7] sm:$0xff]
    %v649 = vld [vmem:[#allocation7 + $0x8] sm:$0xff]
    %v650 = vld [vmem:[#allocation7 + $0x10] sm:$0x1f]
    %v651 = vld [vmem:[#allocation8] sm:$0x1]
    %v653 = vlaneseq
    %v654 = vshrl.u32 %v653, 7
    %v655 = vsub.s32 0, %v654
    %v656 = vrot.slane %v651, %v655
    %v659 = vsel %vm549, %v650, 0
    %661 = vmatprep.subr.mxu0 0.0
    %662 = vmatpush1.msra.mxu0 %v648
    %663 = vmatprep.subr.mxu0 0.0
    %664 = vmatpush1.msra.mxu0 %v649
    %665 = vmatprep.subr.mxu0 0.0
    %666 = vmatpush1.msra.mxu0 %v659
    %667 = vmatprep.subr.mxu0 0.0
    %668 = vmatpush1.msra.mxu0 0.0
    %669 = vmatprep.subr.mxu0 0.0
    %670 = vmatpush1.msra.mxu0 0.0
    %671 = vmatprep.subr.mxu0 0.0
    %672 = vmatpush1.msra.mxu0 0.0
    %673 = vmatprep.subr.mxu0 0.0
    %674 = vmatpush1.msra.mxu0 0.0
    %675 = vmatprep.subr.mxu0 0.0
    %676 = vmatpush1.msra.mxu0 0.0
    %677 = vmatprep.subr.mxu0 0.0
    %678 = vmatpush1.msra.mxu0 0.0
    %679 = vmatprep.subr.mxu0 0.0
    %680 = vmatpush1.msra.mxu0 0.0
    %681 = vmatprep.subr.mxu0 0.0
    %682 = vmatpush1.msra.mxu0 0.0
    %683 = vmatprep.subr.mxu0 0.0
    %684 = vmatpush1.msra.mxu0 0.0
    %685 = vmatprep.subr.mxu0 0.0
    %686 = vmatpush1.msra.mxu0 0.0
    %687 = vmatprep.subr.mxu0 0.0
    %688 = vmatpush1.msra.mxu0 0.0
    %689 = vmatprep.subr.mxu0 0.0
    %690 = vmatpush1.msra.mxu0 0.0
    %691 = vmatprep.subr.mxu0 0.0
    %692 = vmatpush1.msra.mxu0 0.0
    %693 = vmatprep.subr.mxu0 0.0
    %694 = vmatpush1.msra.mxu0 0.0
    %695 = vmatprep.subr.mxu0 0.0
    %696 = vmatpush1.msra.mxu0 0.0
    %697 = vmatprep.subr.mxu0 0.0
    %698 = vmatpush1.msra.mxu0 0.0
    %699 = vmatprep.subr.mxu0 0.0
    %700 = vmatpush1.msra.mxu0 0.0
    %701 = vmatprep.subr.mxu0 0.0
    %702 = vmatpush1.msra.mxu0 0.0
    %703 = vmatprep.subr.mxu0 0.0
    %704 = vmatpush1.msra.mxu0 0.0
    %705 = vmatprep.subr.mxu0 0.0
    %706 = vmatpush1.msra.mxu0 0.0
    %707 = vmatprep.subr.mxu0 0.0
    %708 = vmatpush1.msra.mxu0 0.0
    %709 = vmatprep.subr.mxu0 0.0
    %710 = vmatpush1.msra.mxu0 0.0
    %711 = vmatprep.subr.mxu0 0.0
    %712 = vmatpush1.msra.mxu0 0.0
    %713 = vmatprep.subr.mxu0 0.0
    %714 = vmatpush1.msra.mxu0 0.0
    %715 = vmatprep.subr.mxu0 0.0
    %716 = vmatpush1.msra.mxu0 0.0
    %717 = vmatprep.subr.mxu0 0.0
    %718 = vmatpush1.msra.mxu0 0.0
    %719 = vmatprep.subr.mxu0 0.0
    %720 = vmatpush1.msra.mxu0 0.0
    %721 = vmatprep.subr.mxu0 0.0
    %722 = vmatpush1.msra.mxu0 0.0
    %723 = vmatprep.subr.mxu0 0.0
    %724 = vmatpush1.msra.mxu0 0.0
    %725 = vmatprep.mubr.f32.mxu0 0.0
    %726 = vmatmul.mubr.f32.gmra.mrb[0].mxu0 %v535
    %v727 = vpop.f32.mrb[0].mxu0
    %v728 = vadd.f32 %v656, %v727
    %v729 = vpop.f32.mrb[0].mxu0
    %730 = vmatprep.mubr.f32.mxu0 0.0
    %731 = vmatmul.mubr.f32.gmra.mrb[0].mxu0 %v538
    %v732 = vpop.f32.mrb[0].mxu0
    %v733 = vadd.f32 %v656, %v732
    %v734 = vpop.f32.mrb[0].mxu0
    %735 = vmatprep.mubr.f32.mxu0 0.0
    %736 = vmatmul.mubr.f32.gmra.mrb[0].mxu0 %v541
    %v737 = vpop.f32.mrb[0].mxu0
    %v738 = vadd.f32 %v656, %v737
    %v739 = vpop.f32.mrb[0].mxu0
    %740 = vmatprep.mubr.f32.mxu0 0.0
    %741 = vmatmul.mubr.f32.gmra.mrb[0].mxu0 %v544
    %v742 = vpop.f32.mrb[0].mxu0
    %v743 = vadd.f32 %v656, %v742
    %v744 = vpop.f32.mrb[0].mxu0
    %745 = vmatprep.mubr.f32.mxu0 0.0
    %746 = vmatmul.mubr.f32.gmra.mrb[0].mxu0 %v547
    %v747 = vpop.f32.mrb[0].mxu0
    %v748 = vadd.f32 %v656, %v747
    %v749 = vpop.f32.mrb[0].mxu0
    %750 = vdwg.mxu0
    %v751 = vmax.f32 %v728, 0.0
    %v752 = vmax.f32 %v733, 0.0
    %v753 = vmax.f32 %v738, 0.0
    %v754 = vmax.f32 %v743, 0.0
    %v755 = vmax.f32 %v748, 0.0
    %vm759 = vcmask 1040384
    %v760 = vrot.slane %v751, 7
    %v761 = vrot.slane %v752, 7
    %v762 = vsel %vm759, %v760, %v761
    %v763 = vrot.slane %v753, 7
    %v764 = vsel %vm759, %v761, %v763
    %v768 = vsel %vm759, 0.0, %v760
    %vm769 = vcmask 1042432
    %v770 = vsel %vm769, %v764, 0.0
    %vm773 = vcmask 1046528
    %v774 = vrot.slane %v768, 1
    %v775 = vrot.slane %v762, 1
    %v776 = vsel %vm773, %v774, %v775
    %v777 = vrot.slane %v770, 1
    %v778 = vsel %vm773, %v775, %v777
    %779 = vrot.lane.b32.xlu0 %v776, 32
    %v780 = vpop.permute.xlu0 %779
    %781 = vrot.lane.b32.xlu0 %v778, 32
    %v782 = vpop.permute.xlu0 %781
    %783 = vrot.lane.b32.xlu0 %v777, 32
    %v784 = vpop.permute.xlu0 %783
    %vm788 = vcmask 1045504
    %v789 = vrot.slane %v768, 2
    %v790 = vrot.slane %v762, 2
    %v791 = vsel %vm788, %v789, %v790
    %v792 = vrot.slane %v770, 2
    %v793 = vsel %vm788, %v790, %v792
    %794 = vrot.lane.b32.xlu0 %v791, 64
    %v795 = vpop.permute.xlu0 %794
    %796 = vrot.lane.b32.xlu0 %v793, 64
    %v797 = vpop.permute.xlu0 %796
    %798 = vrot.lane.b32.xlu0 %v792, 64
    %v799 = vpop.permute.xlu0 %798
    %vm803 = vcmask 261120
    %v804 = vsel %vm803, %v768, %v780
    %v805 = vsel %vm803, %v762, %v782
    %v806 = vsel %vm803, %v770, %v784
    %vm807 = vcmask 523264
    %v808 = vsel %vm807, %v804, %v795
    %v809 = vsel %vm807, %v805, %v797
    %v810 = vsel %vm807, %v806, %v799
    %v813 = vrot.slane %v753, 1
    %v814 = vrot.slane %v754, 1
    %v815 = vsel %vm773, %v813, %v814
    %v816 = vrot.slane %v755, 1
    %v817 = vsel %vm773, %v814, %v816
    %v821 = vsel %vm759, 0.0, %v815
    %v822 = vsel %vm769, %v816, 0.0
    %v825 = vrot.slane %v821, 1
    %v826 = vrot.slane %v817, 1
    %v827 = vsel %vm773, %v825, %v826
    %v828 = vrot.slane %v822, 1
    %v829 = vsel %vm773, %v826, %v828
    %830 = vrot.lane.b32.xlu0 %v827, 32
    %v831 = vpop.permute.xlu0 %830
    %832 = vrot.lane.b32.xlu0 %v829, 32
    %v833 = vpop.permute.xlu0 %832
    %834 = vrot.lane.b32.xlu0 %v828, 32
    %v835 = vpop.permute.xlu0 %834
    %v839 = vrot.slane %v821, 2
    %v840 = vrot.slane %v817, 2
    %v841 = vsel %vm788, %v839, %v840
    %v842 = vrot.slane %v822, 2
    %v843 = vsel %vm788, %v840, %v842
    %844 = vrot.lane.b32.xlu0 %v841, 64
    %v845 = vpop.permute.xlu0 %844
    %846 = vrot.lane.b32.xlu0 %v843, 64
    %v847 = vpop.permute.xlu0 %846
    %848 = vrot.lane.b32.xlu0 %v842, 64
    %v849 = vpop.permute.xlu0 %848
    %v853 = vsel %vm803, %v821, %v831
    %v854 = vsel %vm803, %v817, %v833
    %v855 = vsel %vm803, %v822, %v835
    %v856 = vsel %vm807, %v853, %v845
    %v857 = vsel %vm807, %v854, %v847
    %v858 = vsel %vm807, %v855, %v849
    %vm862 = vcmask 1041408
    %v863 = vrot.slane %v856, 6
    %v864 = vrot.slane %v857, 6
    %v865 = vsel %vm862, %v863, %v864
    %v866 = vrot.slane %v858, 6
    %v867 = vsel %vm862, %v864, %v866
    %v869 = vsel %vm862, %v810, %v863
    %v870 = vld [vmem:[%s11] sm:$0xff]
    %v871 = vld [vmem:[%s11 + $0x8] sm:$0xff]
    %v872 = vld [vmem:[%s11 + $0x10] sm:$0xff]
    %v873 = vld [vmem:[%s11 + $0x18] sm:$0xff]
    %v874 = vld [vmem:[%s11 + $0x20] sm:$0xff]
    %v875 = vld [vmem:[%s11 + $0x28] sm:$0xff]
    %v876 = vld [vmem:[%s11 + $0x30] sm:$0xff]
    %v877 = vld [vmem:[%s11 + $0x38] sm:$0xff]
    %v878 = vld [vmem:[%s11 + $0x40] sm:$0xff]
    %v879 = vld [vmem:[%s11 + $0x48] sm:$0xff]
    %v880 = vld [vmem:[%s11 + $0x50] sm:$0xff]
    %v881 = vld [vmem:[%s11 + $0x58] sm:$0xff]
    %v882 = vld [vmem:[#allocation10] sm:$0x1]
    %v884 = vlaneseq
    %v885 = vshrl.u32 %v884, 7
    %v886 = vsub.s32 0, %v885
    %v887 = vrot.slane %v882, %v886
    %vm889 = vcmask 785408
    %v891 = vsel %vm889, %v808, 0
    %v894 = vsel %vm889, %v809, 0
    %v897 = vsel %vm889, %v869, 0
    %v899 = vsel %vm889, %v865, 0
    %v901 = vsel %vm889, %v867, 0
    %903 = vmatprep.subr.mxu0 0.0
    %904 = vmatpush1.msra.mxu0 %v870
    %905 = vmatprep.subr.mxu0 0.0
    %906 = vmatpush1.msra.mxu0 %v871
    %907 = vmatprep.subr.mxu0 0.0
    %908 = vmatpush1.msra.mxu0 %v872
    %909 = vmatprep.subr.mxu0 0.0
    %910 = vmatpush1.msra.mxu0 %v873
    %911 = vmatprep.subr.mxu0 0.0
    %912 = vmatpush1.msra.mxu0 %v874
    %913 = vmatprep.subr.mxu0 0.0
    %914 = vmatpush1.msra.mxu0 %v875
    %915 = vmatprep.subr.mxu0 0.0
    %916 = vmatpush1.msra.mxu0 %v876
    %917 = vmatprep.subr.mxu0 0.0
    %918 = vmatpush1.msra.mxu0 %v877
    %919 = vmatprep.subr.mxu0 0.0
    %920 = vmatpush1.msra.mxu0 %v878
    %921 = vmatprep.subr.mxu0 0.0
    %922 = vmatpush1.msra.mxu0 %v879
    %923 = vmatprep.subr.mxu0 0.0
    %924 = vmatpush1.msra.mxu0 %v880
    %925 = vmatprep.subr.mxu0 0.0
    %926 = vmatpush1.msra.mxu0 %v881
    %927 = vmatprep.subr.mxu0 0.0
    %928 = vmatpush1.msra.mxu0 0.0
    %929 = vmatprep.subr.mxu0 0.0
    %930 = vmatpush1.msra.mxu0 0.0
    %931 = vmatprep.subr.mxu0 0.0
    %932 = vmatpush1.msra.mxu0 0.0
    %933 = vmatprep.subr.mxu0 0.0
    %934 = vmatpush1.msra.mxu0 0.0
    %935 = vmatprep.subr.mxu0 0.0
    %936 = vmatpush1.msra.mxu0 0.0
    %937 = vmatprep.subr.mxu0 0.0
    %938 = vmatpush1.msra.mxu0 0.0
    %939 = vmatprep.subr.mxu0 0.0
    %940 = vmatpush1.msra.mxu0 0.0
    %941 = vmatprep.subr.mxu0 0.0
    %942 = vmatpush1.msra.mxu0 0.0
    %943 = vmatprep.subr.mxu0 0.0
    %944 = vmatpush1.msra.mxu0 0.0
    %945 = vmatprep.subr.mxu0 0.0
    %946 = vmatpush1.msra.mxu0 0.0
    %947 = vmatprep.subr.mxu0 0.0
    %948 = vmatpush1.msra.mxu0 0.0
    %949 = vmatprep.subr.mxu0 0.0
    %950 = vmatpush1.msra.mxu0 0.0
    %951 = vmatprep.subr.mxu0 0.0
    %952 = vmatpush1.msra.mxu0 0.0
    %953 = vmatprep.subr.mxu0 0.0
    %954 = vmatpush1.msra.mxu0 0.0
    %955 = vmatprep.subr.mxu0 0.0
    %956 = vmatpush1.msra.mxu0 0.0
    %957 = vmatprep.subr.mxu0 0.0
    %958 = vmatpush1.msra.mxu0 0.0
    %959 = vmatprep.subr.mxu0 0.0
    %960 = vmatpush1.msra.mxu0 0.0
    %961 = vmatprep.subr.mxu0 0.0
    %962 = vmatpush1.msra.mxu0 0.0
    %963 = vmatprep.subr.mxu0 0.0
    %964 = vmatpush1.msra.mxu0 0.0
    %965 = vmatprep.subr.mxu0 0.0
    %966 = vmatpush1.msra.mxu0 0.0
    %967 = vmatprep.mubr.f32.mxu0 0.0
    %968 = vmatmul.mubr.f32.gmra.mrb[0].mxu0 %v891
    %v969 = vpop.f32.mrb[0].mxu0
    %v970 = vadd.f32 %v887, %v969
    %v971 = vpop.f32.mrb[0].mxu0
    %972 = vmatprep.mubr.f32.mxu0 0.0
    %973 = vmatmul.mubr.f32.gmra.mrb[0].mxu0 %v894
    %v974 = vpop.f32.mrb[0].mxu0
    %v975 = vadd.f32 %v887, %v974
    %v976 = vpop.f32.mrb[0].mxu0
    %977 = vmatprep.mubr.f32.mxu0 0.0
    %978 = vmatmul.mubr.f32.gmra.mrb[0].mxu0 %v897
    %v979 = vpop.f32.mrb[0].mxu0
    %v980 = vadd.f32 %v887, %v979
    %v981 = vpop.f32.mrb[0].mxu0
    %982 = vmatprep.mubr.f32.mxu0 0.0
    %983 = vmatmul.mubr.f32.gmra.mrb[0].mxu0 %v899
    %v984 = vpop.f32.mrb[0].mxu0
    %v985 = vadd.f32 %v887, %v984
    %v986 = vpop.f32.mrb[0].mxu0
    %987 = vmatprep.mubr.f32.mxu0 0.0
    %988 = vmatmul.mubr.f32.gmra.mrb[0].mxu0 %v901
    %v989 = vpop.f32.mrb[0].mxu0
    %v990 = vadd.f32 %v887, %v989
    %v991 = vpop.f32.mrb[0].mxu0
    %992 = vdwg.mxu0
    %v993 = vmax.f32 %v970, 0.0
    %v994 = vmax.f32 %v975, 0.0
    %v995 = vmax.f32 %v980, 0.0
    %v996 = vmax.f32 %v985, 0.0
    %v997 = vmax.f32 %v990, 0.0
    %v998 = vld [vmem:[#allocation11] sm:$0xff]
    %v999 = vld [vmem:[#allocation11 + $0x8] sm:$0xff]
    %v1000 = vld [vmem:[#allocation11 + $0x10] sm:$0x1f]
    %v1001 = vld [vmem:[#allocation13] sm:$0x1]
    %v1003 = vlaneseq
    %v1004 = vshrl.u32 %v1003, 7
    %v1005 = vsub.s32 0, %v1004
    %v1006 = vrot.slane %v1001, %v1005
    %v1009 = vsel %vm549, %v1000, 0
    %1011 = vmatprep.subr.mxu0 0.0
    %1012 = vmatpush1.msra.mxu0 %v998
    %1013 = vmatprep.subr.mxu0 0.0
    %1014 = vmatpush1.msra.mxu0 %v999
    %1015 = vmatprep.subr.mxu0 0.0
    %1016 = vmatpush1.msra.mxu0 %v1009
    %1017 = vmatprep.subr.mxu0 0.0
    %1018 = vmatpush1.msra.mxu0 0.0
    %1019 = vmatprep.subr.mxu0 0.0
    %1020 = vmatpush1.msra.mxu0 0.0
    %1021 = vmatprep.subr.mxu0 0.0
    %1022 = vmatpush1.msra.mxu0 0.0
    %1023 = vmatprep.subr.mxu0 0.0
    %1024 = vmatpush1.msra.mxu0 0.0
    %1025 = vmatprep.subr.mxu0 0.0
    %1026 = vmatpush1.msra.mxu0 0.0
    %1027 = vmatprep.subr.mxu0 0.0
    %1028 = vmatpush1.msra.mxu0 0.0
    %1029 = vmatprep.subr.mxu0 0.0
    %1030 = vmatpush1.msra.mxu0 0.0
    %1031 = vmatprep.subr.mxu0 0.0
    %1032 = vmatpush1.msra.mxu0 0.0
    %1033 = vmatprep.subr.mxu0 0.0
    %1034 = vmatpush1.msra.mxu0 0.0
    %1035 = vmatprep.subr.mxu0 0.0
    %1036 = vmatpush1.msra.mxu0 0.0
    %1037 = vmatprep.subr.mxu0 0.0
    %1038 = vmatpush1.msra.mxu0 0.0
    %1039 = vmatprep.subr.mxu0 0.0
    %1040 = vmatpush1.msra.mxu0 0.0
    %1041 = vmatprep.subr.mxu0 0.0
    %1042 = vmatpush1.msra.mxu0 0.0
    %1043 = vmatprep.subr.mxu0 0.0
    %1044 = vmatpush1.msra.mxu0 0.0
    %1045 = vmatprep.subr.mxu0 0.0
    %1046 = vmatpush1.msra.mxu0 0.0
    %1047 = vmatprep.subr.mxu0 0.0
    %1048 = vmatpush1.msra.mxu0 0.0
    %1049 = vmatprep.subr.mxu0 0.0
    %1050 = vmatpush1.msra.mxu0 0.0
    %1051 = vmatprep.subr.mxu0 0.0
    %1052 = vmatpush1.msra.mxu0 0.0
    %1053 = vmatprep.subr.mxu0 0.0
    %1054 = vmatpush1.msra.mxu0 0.0
    %1055 = vmatprep.subr.mxu0 0.0
    %1056 = vmatpush1.msra.mxu0 0.0
    %1057 = vmatprep.subr.mxu0 0.0
    %1058 = vmatpush1.msra.mxu0 0.0
    %1059 = vmatprep.subr.mxu0 0.0
    %1060 = vmatpush1.msra.mxu0 0.0
    %1061 = vmatprep.subr.mxu0 0.0
    %1062 = vmatpush1.msra.mxu0 0.0
    %1063 = vmatprep.subr.mxu0 0.0
    %1064 = vmatpush1.msra.mxu0 0.0
    %1065 = vmatprep.subr.mxu0 0.0
    %1066 = vmatpush1.msra.mxu0 0.0
    %1067 = vmatprep.subr.mxu0 0.0
    %1068 = vmatpush1.msra.mxu0 0.0
    %1069 = vmatprep.subr.mxu0 0.0
    %1070 = vmatpush1.msra.mxu0 0.0
    %1071 = vmatprep.subr.mxu0 0.0
    %1072 = vmatpush1.msra.mxu0 0.0
    %1073 = vmatprep.subr.mxu0 0.0
    %1074 = vmatpush1.msra.mxu0 0.0
    %1075 = vmatprep.mubr.f32.mxu0 0.0
    %1076 = vmatmul.mubr.f32.gmra.mrb[0].mxu0 %v535
    %v1077 = vpop.f32.mrb[0].mxu0
    %v1078 = vadd.f32 %v1006, %v1077
    %v1079 = vpop.f32.mrb[0].mxu0
    %1080 = vmatprep.mubr.f32.mxu0 0.0
    %1081 = vmatmul.mubr.f32.gmra.mrb[0].mxu0 %v538
    %v1082 = vpop.f32.mrb[0].mxu0
    %v1083 = vadd.f32 %v1006, %v1082
    %v1084 = vpop.f32.mrb[0].mxu0
    %1085 = vmatprep.mubr.f32.mxu0 0.0
    %1086 = vmatmul.mubr.f32.gmra.mrb[0].mxu0 %v541
    %v1087 = vpop.f32.mrb[0].mxu0
    %v1088 = vadd.f32 %v1006, %v1087
    %v1089 = vpop.f32.mrb[0].mxu0
    %1090 = vmatprep.mubr.f32.mxu0 0.0
    %1091 = vmatmul.mubr.f32.gmra.mrb[0].mxu0 %v544
    %v1092 = vpop.f32.mrb[0].mxu0
    %v1093 = vadd.f32 %v1006, %v1092
    %v1094 = vpop.f32.mrb[0].mxu0
    %1095 = vmatprep.mubr.f32.mxu0 0.0
    %1096 = vmatmul.mubr.f32.gmra.mrb[0].mxu0 %v547
    %v1097 = vpop.f32.mrb[0].mxu0
    %v1098 = vadd.f32 %v1006, %v1097
    %v1099 = vpop.f32.mrb[0].mxu0
    %1100 = vdwg.mxu0
    %v1101 = vmax.f32 %v1078, 0.0
    %v1102 = vmax.f32 %v1083, 0.0
    %v1103 = vmax.f32 %v1088, 0.0
    %v1104 = vmax.f32 %v1093, 0.0
    %v1105 = vmax.f32 %v1098, 0.0
    %v1109 = vrot.slane %v1101, 6
    %v1110 = vrot.slane %v1102, 6
    %v1111 = vsel %vm862, %v1109, %v1110
    %v1112 = vrot.slane %v1103, 6
    %v1113 = vsel %vm862, %v1110, %v1112
    %v1117 = vsel %vm862, 0.0, %v1109
    %vm1118 = vcmask 1043456
    %v1119 = vsel %vm1118, %v1113, 0.0
    %v1122 = vrot.slane %v1117, 1
    %v1123 = vrot.slane %v1111, 1
    %v1124 = vsel %vm773, %v1122, %v1123
    %v1125 = vrot.slane %v1119, 1
    %v1126 = vsel %vm773, %v1123, %v1125
    %1127 = vrot.lane.b32.xlu0 %v1124, 32
    %v1128 = vpop.permute.xlu0 %1127
    %1129 = vrot.lane.b32.xlu0 %v1126, 32
    %v1130 = vpop.permute.xlu0 %1129
    %1131 = vrot.lane.b32.xlu0 %v1125, 32
    %v1132 = vpop.permute.xlu0 %1131
    %v1136 = vrot.slane %v1117, 2
    %v1137 = vrot.slane %v1111, 2
    %v1138 = vsel %vm788, %v1136, %v1137
    %v1139 = vrot.slane %v1119, 2
    %v1140 = vsel %vm788, %v1137, %v1139
    %1141 = vrot.lane.b32.xlu0 %v1138, 64
    %v1142 = vpop.permute.xlu0 %1141
    %1143 = vrot.lane.b32.xlu0 %v1140, 64
    %v1144 = vpop.permute.xlu0 %1143
    %1145 = vrot.lane.b32.xlu0 %v1139, 64
    %v1146 = vpop.permute.xlu0 %1145
    %v1150 = vrot.slane %v1117, 3
    %v1151 = vrot.slane %v1111, 3
    %v1152 = vsel %vm549, %v1150, %v1151
    %v1153 = vrot.slane %v1119, 3
    %v1154 = vsel %vm549, %v1151, %v1153
    %1155 = vrot.lane.b32.xlu0 %v1152, 96
    %v1156 = vpop.permute.xlu0 %1155
    %1157 = vrot.lane.b32.xlu0 %v1154, 96
    %v1158 = vpop.permute.xlu0 %1157
    %1159 = vrot.lane.b32.xlu0 %v1153, 96
    %v1160 = vpop.permute.xlu0 %1159
    %v1164 = vrot.slane %v1117, 4
    %v1165 = vrot.slane %v1111, 4
    %v1166 = vsel %vm1118, %v1164, %v1165
    %v1167 = vrot.slane %v1119, 4
    %v1168 = vsel %vm1118, %v1165, %v1167
    %v1170 = vsel %vm803, %v1117, %v1128
    %v1171 = vsel %vm803, %v1111, %v1130
    %v1172 = vsel %vm803, %v1119, %v1132
    %v1173 = vsel %vm807, %v1170, %v1142
    %v1174 = vsel %vm807, %v1171, %v1144
    %v1175 = vsel %vm807, %v1172, %v1146
    %v1176 = vsel %vm889, %v1173, %v1156
    %v1177 = vsel %vm889, %v1174, %v1158
    %v1178 = vsel %vm889, %v1175, %v1160
    %v1179 = vsel %vm862, 0.0, %v1103
    %v1180 = vsel %vm1118, %v1105, 0.0
    %v1184 = vrot.slane %v1179, 1
    %v1185 = vrot.slane %v1104, 1
    %v1186 = vsel %vm773, %v1184, %v1185
    %v1187 = vrot.slane %v1180, 1
    %v1188 = vsel %vm773, %v1185, %v1187
    %1189 = vrot.lane.b32.xlu0 %v1186, 32
    %v1190 = vpop.permute.xlu0 %1189
    %1191 = vrot.lane.b32.xlu0 %v1188, 32
    %v1192 = vpop.permute.xlu0 %1191
    %1193 = vrot.lane.b32.xlu0 %v1187, 32
    %v1194 = vpop.permute.xlu0 %1193
    %v1198 = vrot.slane %v1179, 2
    %v1199 = vrot.slane %v1104, 2
    %v1200 = vsel %vm788, %v1198, %v1199
    %v1201 = vrot.slane %v1180, 2
    %v1202 = vsel %vm788, %v1199, %v1201
    %1203 = vrot.lane.b32.xlu0 %v1200, 64
    %v1204 = vpop.permute.xlu0 %1203
    %1205 = vrot.lane.b32.xlu0 %v1202, 64
    %v1206 = vpop.permute.xlu0 %1205
    %1207 = vrot.lane.b32.xlu0 %v1201, 64
    %v1208 = vpop.permute.xlu0 %1207
    %v1212 = vrot.slane %v1179, 3
    %v1213 = vrot.slane %v1104, 3
    %v1214 = vsel %vm549, %v1212, %v1213
    %v1215 = vrot.slane %v1180, 3
    %v1216 = vsel %vm549, %v1213, %v1215
    %1217 = vrot.lane.b32.xlu0 %v1214, 96
    %v1218 = vpop.permute.xlu0 %1217
    %1219 = vrot.lane.b32.xlu0 %v1216, 96
    %v1220 = vpop.permute.xlu0 %1219
    %1221 = vrot.lane.b32.xlu0 %v1215, 96
    %v1222 = vpop.permute.xlu0 %1221
    %v1226 = vrot.slane %v1179, 4
    %v1227 = vrot.slane %v1104, 4
    %v1228 = vsel %vm1118, %v1226, %v1227
    %v1229 = vrot.slane %v1180, 4
    %v1230 = vsel %vm1118, %v1227, %v1229
    %v1231 = vsel %vm803, %v1179, %v1190
    %v1232 = vsel %vm803, %v1104, %v1192
    %v1233 = vsel %vm803, %v1180, %v1194
    %v1234 = vsel %vm807, %v1231, %v1204
    %v1235 = vsel %vm807, %v1232, %v1206
    %v1236 = vsel %vm807, %v1233, %v1208
    %v1237 = vsel %vm889, %v1234, %v1218
    %v1238 = vsel %vm889, %v1235, %v1220
    %v1239 = vsel %vm889, %v1236, %v1222
    %v1243 = vrot.slane %v1237, 6
    %v1244 = vrot.slane %v1228, 6
    %v1245 = vrot.slane %v1238, 6
    %v1246 = vsel %vm862, %v1243, %v1245
    %v1247 = vrot.slane %v1230, 6
    %v1248 = vsel %vm862, %v1244, %v1247
    %v1249 = vrot.slane %v1239, 6
    %v1250 = vsel %vm862, %v1245, %v1249
    %v1251 = vrot.slane %v1229, 6
    %v1252 = vsel %vm862, %v1247, %v1251
    %v1257 = vsel %vm862, %v1178, %v1243
    %v1258 = vsel %vm862, %v1167, %v1244
    %v1259 = vld [vmem:[%s19] sm:$0xff]
    %v1260 = vld [vmem:[%s19 + $0x8] sm:$0xff]
    %v1261 = vld [vmem:[%s19 + $0x10] sm:$0xff]
    %v1262 = vld [vmem:[%s19 + $0x18] sm:$0xff]
    %v1263 = vld [vmem:[%s19 + $0x20] sm:$0xff]
    %v1264 = vld [vmem:[%s19 + $0x28] sm:$0xff]
    %v1265 = vld [vmem:[%s19 + $0x30] sm:$0xff]
    %v1266 = vld [vmem:[%s19 + $0x38] sm:$0xff]
    %v1267 = vld [vmem:[%s19 + $0x40] sm:$0xff]
    %v1268 = vld [vmem:[%s19 + $0x48] sm:$0xff]
    %v1269 = vld [vmem:[%s19 + $0x50] sm:$0xff]
    %v1270 = vld [vmem:[%s19 + $0x58] sm:$0xff]
    %v1271 = vld [vmem:[%s19 + $0x60] sm:$0xff]
    %v1272 = vld [vmem:[%s19 + $0x68] sm:$0xff]
    %v1273 = vld [vmem:[%s19 + $0x70] sm:$0xff]
    %v1274 = vld [vmem:[%s19 + $0x78] sm:$0xff]
    %v1275 = vld [vmem:[%s19 + $0x80] sm:$0xff]
    %v1276 = vld [vmem:[%s19 + $0x88] sm:$0xff]
    %v1277 = vld [vmem:[%s19 + $0x90] sm:$0xff]
    %v1278 = vld [vmem:[%s19 + $0x98] sm:$0xff]
    %v1279 = vld [vmem:[#allocation14] sm:$0x1]
    %v1281 = vlaneseq
    %v1282 = vshrl.u32 %v1281, 7
    %v1283 = vsub.s32 0, %v1282
    %v1284 = vrot.slane %v1279, %v1283
    %v1286 = vsel %vm803, %v1166, 0
    %v1288 = vsel %vm803, %v1168, 0
    %v1291 = vsel %vm803, %v1258, 0
    %v1293 = vsel %vm803, %v1248, 0
    %v1295 = vsel %vm803, %v1252, 0
    %1297 = vmatprep.subr.mxu0 0.0
    %1298 = vmatpush1.msra.mxu0 %v1259
    %1299 = vmatprep.subr.mxu0 0.0
    %1300 = vmatpush1.msra.mxu0 %v1260
    %1301 = vmatprep.subr.mxu0 0.0
    %1302 = vmatpush1.msra.mxu0 %v1261
    %1303 = vmatprep.subr.mxu0 0.0
    %1304 = vmatpush1.msra.mxu0 %v1262
    %1305 = vmatprep.subr.mxu0 0.0
    %1306 = vmatpush1.msra.mxu0 %v1263
    %1307 = vmatprep.subr.mxu0 0.0
    %1308 = vmatpush1.msra.mxu0 %v1264
    %1309 = vmatprep.subr.mxu0 0.0
    %1310 = vmatpush1.msra.mxu0 %v1265
    %1311 = vmatprep.subr.mxu0 0.0
    %1312 = vmatpush1.msra.mxu0 %v1266
    %1313 = vmatprep.subr.mxu0 0.0
    %1314 = vmatpush1.msra.mxu0 %v1267
    %1315 = vmatprep.subr.mxu0 0.0
    %1316 = vmatpush1.msra.mxu0 %v1268
    %1317 = vmatprep.subr.mxu0 0.0
    %1318 = vmatpush1.msra.mxu0 %v1269
    %1319 = vmatprep.subr.mxu0 0.0
    %1320 = vmatpush1.msra.mxu0 %v1270
    %1321 = vmatprep.subr.mxu0 0.0
    %1322 = vmatpush1.msra.mxu0 %v1271
    %1323 = vmatprep.subr.mxu0 0.0
    %1324 = vmatpush1.msra.mxu0 %v1272
    %1325 = vmatprep.subr.mxu0 0.0
    %1326 = vmatpush1.msra.mxu0 %v1273
    %1327 = vmatprep.subr.mxu0 0.0
    %1328 = vmatpush1.msra.mxu0 %v1274
    %1329 = vmatprep.subr.mxu0 0.0
    %1330 = vmatpush1.msra.mxu0 %v1275
    %1331 = vmatprep.subr.mxu0 0.0
    %1332 = vmatpush1.msra.mxu0 %v1276
    %1333 = vmatprep.subr.mxu0 0.0
    %1334 = vmatpush1.msra.mxu0 %v1277
    %1335 = vmatprep.subr.mxu0 0.0
    %1336 = vmatpush1.msra.mxu0 %v1278
    %1337 = vmatprep.subr.mxu0 0.0
    %1338 = vmatpush1.msra.mxu0 0.0
    %1339 = vmatprep.subr.mxu0 0.0
    %1340 = vmatpush1.msra.mxu0 0.0
    %1341 = vmatprep.subr.mxu0 0.0
    %1342 = vmatpush1.msra.mxu0 0.0
    %1343 = vmatprep.subr.mxu0 0.0
    %1344 = vmatpush1.msra.mxu0 0.0
    %1345 = vmatprep.subr.mxu0 0.0
    %1346 = vmatpush1.msra.mxu0 0.0
    %1347 = vmatprep.subr.mxu0 0.0
    %1348 = vmatpush1.msra.mxu0 0.0
    %1349 = vmatprep.subr.mxu0 0.0
    %1350 = vmatpush1.msra.mxu0 0.0
    %1351 = vmatprep.subr.mxu0 0.0
    %1352 = vmatpush1.msra.mxu0 0.0
    %1353 = vmatprep.subr.mxu0 0.0
    %1354 = vmatpush1.msra.mxu0 0.0
    %1355 = vmatprep.subr.mxu0 0.0
    %1356 = vmatpush1.msra.mxu0 0.0
    %1357 = vmatprep.subr.mxu0 0.0
    %1358 = vmatpush1.msra.mxu0 0.0
    %1359 = vmatprep.subr.mxu0 0.0
    %1360 = vmatpush1.msra.mxu0 0.0
    %1361 = vmatprep.mubr.f32.mxu0 %v1286
    %1362 = vmatmul.mubr.f32.gmra.mrb[0].mxu0 %v1176
    %v1363 = vpop.f32.mrb[0].mxu0
    %v1364 = vadd.f32 %v1284, %v1363
    %v1365 = vpop.f32.mrb[0].mxu0
    %1366 = vmatprep.mubr.f32.mxu0 %v1288
    %1367 = vmatmul.mubr.f32.gmra.mrb[0].mxu0 %v1177
    %v1368 = vpop.f32.mrb[0].mxu0
    %v1369 = vadd.f32 %v1284, %v1368
    %v1370 = vpop.f32.mrb[0].mxu0
    %1371 = vmatprep.mubr.f32.mxu0 %v1291
    %1372 = vmatmul.mubr.f32.gmra.mrb[0].mxu0 %v1257
    %v1373 = vpop.f32.mrb[0].mxu0
    %v1374 = vadd.f32 %v1284, %v1373
    %v1375 = vpop.f32.mrb[0].mxu0
    %1376 = vmatprep.mubr.f32.mxu0 %v1293
    %1377 = vmatmul.mubr.f32.gmra.mrb[0].mxu0 %v1246
    %v1378 = vpop.f32.mrb[0].mxu0
    %v1379 = vadd.f32 %v1284, %v1378
    %v1380 = vpop.f32.mrb[0].mxu0
    %1381 = vmatprep.mubr.f32.mxu0 %v1295
    %1382 = vmatmul.mubr.f32.gmra.mrb[0].mxu0 %v1250
    %v1383 = vpop.f32.mrb[0].mxu0
    %v1384 = vadd.f32 %v1284, %v1383
    %v1385 = vpop.f32.mrb[0].mxu0
    %1386 = vdwg.mxu0
    %v1387 = vmax.f32 %v1364, 0.0
    %v1388 = vmax.f32 %v1369, 0.0
    %v1389 = vmax.f32 %v1374, 0.0
    %v1390 = vmax.f32 %v1379, 0.0
    %v1391 = vmax.f32 %v1384, 0.0
    %v1392 = vrot.slane %v518, 7
    %v1393 = vrot.slane %v519, 7
    %v1394 = vsel %vm759, %v1392, %v1393
    %v1395 = vrot.slane %v520, 7
    %v1396 = vsel %vm759, %v1393, %v1395
    %v1400 = vsel %vm759, -1e+30, %v1392
    %v1401 = vsel %vm769, %v1396, -1e+30
    %v1404 = vrot.slane %v1400, 1
    %v1405 = vrot.slane %v1394, 1
    %v1406 = vsel %vm773, %v1404, %v1405
    %v1407 = vrot.slane %v1401, 1
    %v1408 = vsel %vm773, %v1405, %v1407
    %v1412 = vmax.f32 %v1400, %v1406
    %v1413 = vmax.f32 %v1394, %v1408
    %v1414 = vmax.f32 %v1401, %v1407
    %v1415 = vrot.slane %v1400, 2
    %v1416 = vrot.slane %v1394, 2
    %v1417 = vsel %vm788, %v1415, %v1416
    %v1418 = vrot.slane %v1401, 2
    %v1419 = vsel %vm788, %v1416, %v1418
    %v1423 = vmax.f32 %v1412, %v1417
    %v1424 = vmax.f32 %v1413, %v1419
    %v1425 = vmax.f32 %v1414, %v1418
    %v1426 = vrot.slane %v520, 1
    %v1427 = vrot.slane %v521, 1
    %v1428 = vsel %vm773, %v1426, %v1427
    %v1429 = vrot.slane %v522, 1
    %v1430 = vsel %vm773, %v1427, %v1429
    %v1434 = vsel %vm759, -1e+30, %v1428
    %v1435 = vsel %vm769, %v1429, -1e+30
    %v1438 = vrot.slane %v1434, 1
    %v1439 = vrot.slane %v1430, 1
    %v1440 = vsel %vm773, %v1438, %v1439
    %v1441 = vrot.slane %v1435, 1
    %v1442 = vsel %vm773, %v1439, %v1441
    %v1446 = vmax.f32 %v1434, %v1440
    %v1447 = vmax.f32 %v1430, %v1442
    %v1448 = vmax.f32 %v1435, %v1441
    %v1449 = vrot.slane %v1434, 2
    %v1450 = vrot.slane %v1430, 2
    %v1451 = vsel %vm788, %v1449, %v1450
    %v1452 = vrot.slane %v1435, 2
    %v1453 = vsel %vm788, %v1450, %v1452
    %v1457 = vmax.f32 %v1446, %v1451
    %v1458 = vmax.f32 %v1447, %v1453
    %v1459 = vmax.f32 %v1448, %v1452
    %v1463 = vrot.slane %v1457, 6
    %v1464 = vrot.slane %v1458, 6
    %v1465 = vsel %vm862, %v1463, %v1464
    %v1466 = vrot.slane %v1459, 6
    %v1467 = vsel %vm862, %v1464, %v1466
    %v1469 = vsel %vm862, %v1425, %v1463
    %v1470 = vld [vmem:[#allocation16] sm:$0xff]
    %v1471 = vld [vmem:[#allocation16 + $0x8] sm:$0xff]
    %v1472 = vld [vmem:[#allocation16 + $0x10] sm:$0x1f]
    %v1473 = vld [vmem:[#allocation17] sm:$0x1]
    %v1475 = vlaneseq
    %v1476 = vshrl.u32 %v1475, 7
    %v1477 = vsub.s32 0, %v1476
    %v1478 = vrot.slane %v1473, %v1477
    %v1481 = vsel %vm533, %v1423, 0
    %v1484 = vsel %vm533, %v1424, 0
    %v1487 = vsel %vm533, %v1469, 0
    %v1489 = vsel %vm533, %v1465, 0
    %v1491 = vsel %vm533, %v1467, 0
    %v1494 = vsel %vm549, %v1472, 0
    %1496 = vmatprep.subr.mxu0 0.0
    %1497 = vmatpush1.msra.mxu0 %v1470
    %1498 = vmatprep.subr.mxu0 0.0
    %1499 = vmatpush1.msra.mxu0 %v1471
    %1500 = vmatprep.subr.mxu0 0.0
    %1501 = vmatpush1.msra.mxu0 %v1494
    %1502 = vmatprep.subr.mxu0 0.0
    %1503 = vmatpush1.msra.mxu0 0.0
    %1504 = vmatprep.subr.mxu0 0.0
    %1505 = vmatpush1.msra.mxu0 0.0
    %1506 = vmatprep.subr.mxu0 0.0
    %1507 = vmatpush1.msra.mxu0 0.0
    %1508 = vmatprep.subr.mxu0 0.0
    %1509 = vmatpush1.msra.mxu0 0.0
    %1510 = vmatprep.subr.mxu0 0.0
    %1511 = vmatpush1.msra.mxu0 0.0
    %1512 = vmatprep.subr.mxu0 0.0
    %1513 = vmatpush1.msra.mxu0 0.0
    %1514 = vmatprep.subr.mxu0 0.0
    %1515 = vmatpush1.msra.mxu0 0.0
    %1516 = vmatprep.subr.mxu0 0.0
    %1517 = vmatpush1.msra.mxu0 0.0
    %1518 = vmatprep.subr.mxu0 0.0
    %1519 = vmatpush1.msra.mxu0 0.0
    %1520 = vmatprep.subr.mxu0 0.0
    %1521 = vmatpush1.msra.mxu0 0.0
    %1522 = vmatprep.subr.mxu0 0.0
    %1523 = vmatpush1.msra.mxu0 0.0
    %1524 = vmatprep.subr.mxu0 0.0
    %1525 = vmatpush1.msra.mxu0 0.0
    %1526 = vmatprep.subr.mxu0 0.0
    %1527 = vmatpush1.msra.mxu0 0.0
    %1528 = vmatprep.subr.mxu0 0.0
    %1529 = vmatpush1.msra.mxu0 0.0
    %1530 = vmatprep.subr.mxu0 0.0
    %1531 = vmatpush1.msra.mxu0 0.0
    %1532 = vmatprep.subr.mxu0 0.0
    %1533 = vmatpush1.msra.mxu0 0.0
    %1534 = vmatprep.subr.mxu0 0.0
    %1535 = vmatpush1.msra.mxu0 0.0
    %1536 = vmatprep.subr.mxu0 0.0
    %1537 = vmatpush1.msra.mxu0 0.0
    %1538 = vmatprep.subr.mxu0 0.0
    %1539 = vmatpush1.msra.mxu0 0.0
    %1540 = vmatprep.subr.mxu0 0.0
    %1541 = vmatpush1.msra.mxu0 0.0
    %1542 = vmatprep.subr.mxu0 0.0
    %1543 = vmatpush1.msra.mxu0 0.0
    %1544 = vmatprep.subr.mxu0 0.0
    %1545 = vmatpush1.msra.mxu0 0.0
    %1546 = vmatprep.subr.mxu0 0.0
    %1547 = vmatpush1.msra.mxu0 0.0
    %1548 = vmatprep.subr.mxu0 0.0
    %1549 = vmatpush1.msra.mxu0 0.0
    %1550 = vmatprep.subr.mxu0 0.0
    %1551 = vmatpush1.msra.mxu0 0.0
    %1552 = vmatprep.subr.mxu0 0.0
    %1553 = vmatpush1.msra.mxu0 0.0
    %1554 = vmatprep.subr.mxu0 0.0
    %1555 = vmatpush1.msra.mxu0 0.0
    %1556 = vmatprep.subr.mxu0 0.0
    %1557 = vmatpush1.msra.mxu0 0.0
    %1558 = vmatprep.subr.mxu0 0.0
    %1559 = vmatpush1.msra.mxu0 0.0
    %1560 = vmatprep.mubr.f32.mxu0 0.0
    %1561 = vmatmul.mubr.f32.gmra.mrb[0].mxu0 %v1481
    %v1562 = vpop.f32.mrb[0].mxu0
    %v1563 = vadd.f32 %v1478, %v1562
    %v1564 = vpop.f32.mrb[0].mxu0
    %1565 = vmatprep.mubr.f32.mxu0 0.0
    %1566 = vmatmul.mubr.f32.gmra.mrb[0].mxu0 %v1484
    %v1567 = vpop.f32.mrb[0].mxu0
    %v1568 = vadd.f32 %v1478, %v1567
    %v1569 = vpop.f32.mrb[0].mxu0
    %1570 = vmatprep.mubr.f32.mxu0 0.0
    %1571 = vmatmul.mubr.f32.gmra.mrb[0].mxu0 %v1487
    %v1572 = vpop.f32.mrb[0].mxu0
    %v1573 = vadd.f32 %v1478, %v1572
    %v1574 = vpop.f32.mrb[0].mxu0
    %1575 = vmatprep.mubr.f32.mxu0 0.0
    %1576 = vmatmul.mubr.f32.gmra.mrb[0].mxu0 %v1489
    %v1577 = vpop.f32.mrb[0].mxu0
    %v1578 = vadd.f32 %v1478, %v1577
    %v1579 = vpop.f32.mrb[0].mxu0
    %1580 = vmatprep.mubr.f32.mxu0 0.0
    %1581 = vmatmul.mubr.f32.gmra.mrb[0].mxu0 %v1491
    %v1582 = vpop.f32.mrb[0].mxu0
    %v1583 = vadd.f32 %v1478, %v1582
    %v1584 = vpop.f32.mrb[0].mxu0
    %1585 = vdwg.mxu0
    %v1586 = vmax.f32 %v1563, 0.0
    %v1587 = vmax.f32 %v1568, 0.0
    %v1588 = vmax.f32 %v1573, 0.0
    %v1589 = vmax.f32 %v1578, 0.0
    %v1590 = vmax.f32 %v1583, 0.0
    %1596 = vrot.lane.b32.xlu0 %v993, 32
    %v1597 = vpop.permute.xlu0 %1596
    %1598 = vrot.lane.b32.xlu0 %v994, 32
    %v1599 = vpop.permute.xlu0 %1598
    %1600 = vrot.lane.b32.xlu0 %v995, 32
    %v1601 = vpop.permute.xlu0 %1600
    %1602 = vrot.lane.b32.xlu0 %v996, 32
    %v1603 = vpop.permute.xlu0 %1602
    %1604 = vrot.lane.b32.xlu0 %v997, 32
    %v1605 = vpop.permute.xlu0 %1604
    %1616 = vrot.lane.b32.xlu0 %v1387, 64
    %v1617 = vpop.permute.xlu0 %1616
    %1618 = vrot.lane.b32.xlu0 %v1388, 64
    %v1619 = vpop.permute.xlu0 %1618
    %1620 = vrot.lane.b32.xlu0 %v1389, 64
    %v1621 = vpop.permute.xlu0 %1620
    %1622 = vrot.lane.b32.xlu0 %v1390, 64
    %v1623 = vpop.permute.xlu0 %1622
    %1624 = vrot.lane.b32.xlu0 %v1391, 64
    %v1625 = vpop.permute.xlu0 %1624
    %1636 = vrot.lane.b32.xlu0 %v1586, 96
    %v1637 = vpop.permute.xlu0 %1636
    %1638 = vrot.lane.b32.xlu0 %v1587, 96
    %v1639 = vpop.permute.xlu0 %1638
    %1640 = vrot.lane.b32.xlu0 %v1588, 96
    %v1641 = vpop.permute.xlu0 %1640
    %1642 = vrot.lane.b32.xlu0 %v1589, 96
    %v1643 = vpop.permute.xlu0 %1642
    %1644 = vrot.lane.b32.xlu0 %v1590, 96
    %v1645 = vpop.permute.xlu0 %1644
    %v1651 = vsel %vm803, %v643, %v1597
    %v1652 = vsel %vm803, %v644, %v1599
    %v1653 = vsel %vm803, %v645, %v1601
    %v1654 = vsel %vm803, %v646, %v1603
    %v1655 = vsel %vm803, %v647, %v1605
    %v1656 = vsel %vm807, %v1651, %v1617
    %v1657 = vsel %vm807, %v1652, %v1619
    %v1658 = vsel %vm807, %v1653, %v1621
    %v1659 = vsel %vm807, %v1654, %v1623
    %v1660 = vsel %vm807, %v1655, %v1625
    %v1661 = vsel %vm889, %v1656, %v1637
    %v1662 = vsel %vm889, %v1657, %v1639
    %v1663 = vsel %vm889, %v1658, %v1641
    %v1664 = vsel %vm889, %v1659, %v1643
    %v1665 = vsel %vm889, %v1660, %v1645
    %v1666 = vld [vmem:[#allocation19] sm:$0x1]
    %v1668 = vlaneseq
    %v1669 = vshrl.u32 %v1668, 7
    %v1670 = vsub.s32 0, %v1669
    %v1671 = vrot.slane %v1666, %v1670
    %v1673 = vmul.f32 %v1661, %v1671
    %v1674 = vmul.f32 %v1662, %v1671
    %v1675 = vmul.f32 %v1663, %v1671
    %v1676 = vmul.f32 %v1664, %v1671
    %v1677 = vmul.f32 %v1665, %v1671
    %v1678 = vld [vmem:[#allocation20] sm:$0x1]
    %v1680 = vlaneseq
    %v1681 = vshrl.u32 %v1680, 7
    %v1682 = vsub.s32 0, %v1681
    %v1683 = vrot.slane %v1678, %v1682
    %v1685 = vadd.f32 %v1673, %v1683
    %v1686 = vadd.f32 %v1674, %v1683
    %v1687 = vadd.f32 %v1675, %v1683
    %v1688 = vadd.f32 %v1676, %v1683
    %v1689 = vadd.f32 %v1677, %v1683
    %v1690 = vsel %vm769, %v1685, -inf
    %v1691 = vrot.slane %v1690, 4
    %v1692 = vmax.f32 %v1690, %v1691
    %v1693 = vrot.slane %v1692, 2
    %v1694 = vmax.f32 %v1692, %v1693
    %v1695 = vrot.slane %v1694, 1
    %v1696 = vmax.f32 %v1694, %v1695
    %vm1697 = vcmask 1044482
    %v1698 = vsel %vm1697, %v1685, -inf
    %v1699 = vrot.slane %v1698, 4
    %v1700 = vmax.f32 %v1698, %v1699
    %v1701 = vrot.slane %v1700, 2
    %v1702 = vmax.f32 %v1700, %v1701
    %v1703 = vrot.slane %v1702, 1
    %v1704 = vmax.f32 %v1702, %v1703
    %vm1705 = vcmask 1046532
    %v1706 = vsel %vm1705, %v1685, -inf
    %v1707 = vrot.slane %v1706, 4
    %v1708 = vmax.f32 %v1706, %v1707
    %v1709 = vrot.slane %v1708, 2
    %v1710 = vmax.f32 %v1708, %v1709
    %v1711 = vrot.slane %v1710, 1
    %v1712 = vmax.f32 %v1710, %v1711
    %vm1713 = vcmask 1047558
    %v1714 = vsel %vm1713, %v1685, -inf
    %v1715 = vsel %vm759, %v1686, -inf
    %v1716 = vmax.f32 %v1714, %v1715
    %v1717 = vrot.slane %v1716, 4
    %v1718 = vmax.f32 %v1716, %v1717
    %v1719 = vrot.slane %v1718, 2
    %v1720 = vmax.f32 %v1718, %v1719
    %v1721 = vrot.slane %v1720, 1
    %v1722 = vmax.f32 %v1720, %v1721
    %v1723 = vsel %vm769, %v1686, -inf
    %v1724 = vrot.slane %v1723, 4
    %v1725 = vmax.f32 %v1723, %v1724
    %v1726 = vrot.slane %v1725, 2
    %v1727 = vmax.f32 %v1725, %v1726
    %v1728 = vrot.slane %v1727, 1
    %v1729 = vmax.f32 %v1727, %v1728
    %v1730 = vsel %vm1697, %v1686, -inf
    %v1731 = vrot.slane %v1730, 4
    %v1732 = vmax.f32 %v1730, %v1731
    %v1733 = vrot.slane %v1732, 2
    %v1734 = vmax.f32 %v1732, %v1733
    %v1735 = vrot.slane %v1734, 1
    %v1736 = vmax.f32 %v1734, %v1735
    %v1737 = vsel %vm1705, %v1686, -inf
    %v1738 = vrot.slane %v1737, 4
    %v1739 = vmax.f32 %v1737, %v1738
    %v1740 = vrot.slane %v1739, 2
    %v1741 = vmax.f32 %v1739, %v1740
    %v1742 = vrot.slane %v1741, 1
    %v1743 = vmax.f32 %v1741, %v1742
    %v1744 = vsel %vm1713, %v1686, -inf
    %v1745 = vsel %vm759, %v1687, -inf
    %v1746 = vmax.f32 %v1744, %v1745
    %v1747 = vrot.slane %v1746, 4
    %v1748 = vmax.f32 %v1746, %v1747
    %v1749 = vrot.slane %v1748, 2
    %v1750 = vmax.f32 %v1748, %v1749
    %v1751 = vrot.slane %v1750, 1
    %v1752 = vmax.f32 %v1750, %v1751
    %v1753 = vsel %vm1697, %v1687, -inf
    %v1754 = vrot.slane %v1753, 4
    %v1755 = vmax.f32 %v1753, %v1754
    %v1756 = vrot.slane %v1755, 2
    %v1757 = vmax.f32 %v1755, %v1756
    %v1758 = vrot.slane %v1757, 1
    %v1759 = vmax.f32 %v1757, %v1758
    %v1760 = vsel %vm1705, %v1687, -inf
    %v1761 = vrot.slane %v1760, 4
    %v1762 = vmax.f32 %v1760, %v1761
    %v1763 = vrot.slane %v1762, 2
    %v1764 = vmax.f32 %v1762, %v1763
    %v1765 = vrot.slane %v1764, 1
    %v1766 = vmax.f32 %v1764, %v1765
    %v1767 = vsel %vm1713, %v1687, -inf
    %v1768 = vsel %vm759, %v1688, -inf
    %v1769 = vmax.f32 %v1767, %v1768
    %v1770 = vrot.slane %v1769, 4
    %v1771 = vmax.f32 %v1769, %v1770
    %v1772 = vrot.slane %v1771, 2
    %v1773 = vmax.f32 %v1771, %v1772
    %v1774 = vrot.slane %v1773, 1
    %v1775 = vmax.f32 %v1773, %v1774
    %v1776 = vsel %vm769, %v1688, -inf
    %v1777 = vrot.slane %v1776, 4
    %v1778 = vmax.f32 %v1776, %v1777
    %v1779 = vrot.slane %v1778, 2
    %v1780 = vmax.f32 %v1778, %v1779
    %v1781 = vrot.slane %v1780, 1
    %v1782 = vmax.f32 %v1780, %v1781
    %v1783 = vsel %vm1697, %v1688, -inf
    %v1784 = vrot.slane %v1783, 4
    %v1785 = vmax.f32 %v1783, %v1784
    %v1786 = vrot.slane %v1785, 2
    %v1787 = vmax.f32 %v1785, %v1786
    %v1788 = vrot.slane %v1787, 1
    %v1789 = vmax.f32 %v1787, %v1788
    %v1790 = vsel %vm1705, %v1688, -inf
    %v1791 = vrot.slane %v1790, 4
    %v1792 = vmax.f32 %v1790, %v1791
    %v1793 = vrot.slane %v1792, 2
    %v1794 = vmax.f32 %v1792, %v1793
    %v1795 = vrot.slane %v1794, 1
    %v1796 = vmax.f32 %v1794, %v1795
    %v1797 = vsel %vm1713, %v1688, -inf
    %v1798 = vsel %vm759, %v1689, -inf
    %v1799 = vmax.f32 %v1797, %v1798
    %v1800 = vrot.slane %v1799, 4
    %v1801 = vmax.f32 %v1799, %v1800
    %v1802 = vrot.slane %v1801, 2
    %v1803 = vmax.f32 %v1801, %v1802
    %v1804 = vrot.slane %v1803, 1
    %v1805 = vmax.f32 %v1803, %v1804
    %v1806 = vsel %vm769, %v1689, -inf
    %v1807 = vrot.slane %v1806, 4
    %v1808 = vmax.f32 %v1806, %v1807
    %v1809 = vrot.slane %v1808, 2
    %v1810 = vmax.f32 %v1808, %v1809
    %v1811 = vrot.slane %v1810, 1
    %v1812 = vmax.f32 %v1810, %v1811
    %v1813 = vsel %vm759, %v1696, %v1704
    %v1814 = vsel %vm862, %v1813, %v1712
    %v1815 = vsel %vm769, %v1814, %v1722
    %v1816 = vsel %vm1118, %v1815, %v1729
    %v1817 = vsel %vm549, %v1816, %v1736
    %v1818 = vsel %vm788, %v1817, %v1743
    %v1819 = vsel %vm773, %v1818, %v1752
    %v1820 = vsel %vm759, %v1759, %v1766
    %v1821 = vsel %vm862, %v1820, %v1775
    %v1822 = vsel %vm769, %v1821, %v1782
    %v1823 = vsel %vm1118, %v1822, %v1789
    %v1824 = vsel %vm549, %v1823, %v1796
    %v1825 = vsel %vm788, %v1824, %v1805
    %v1826 = vsel %vm773, %v1825, %v1812
    %v1827 = vld [vmem:[%s31] sm:$0xff]
    %v1828 = vld [vmem:[%s31 + $0x8] sm:$0xff]
    %v1829 = vld [vmem:[%s31 + $0x10] sm:$0xff]
    %v1830 = vld [vmem:[%s31 + $0x18] sm:$0xff]
    %v1831 = vld [vmem:[%s31 + $0x20] sm:$0xff]
    %v1832 = vld [vmem:[%s31 + $0x28] sm:$0xff]
    %v1833 = vld [vmem:[%s31 + $0x30] sm:$0xff]
    %v1834 = vld [vmem:[%s31 + $0x38] sm:$0xff]
    %v1835 = vld [vmem:[%s31 + $0x40] sm:$0xff]
    %v1836 = vld [vmem:[%s31 + $0x48] sm:$0xff]
    %v1837 = vld [vmem:[%s31 + $0x50] sm:$0xff]
    %v1838 = vld [vmem:[%s31 + $0x58] sm:$0xff]
    %v1839 = vld [vmem:[%s31 + $0x60] sm:$0xff]
    %v1840 = vld [vmem:[%s31 + $0x68] sm:$0xff]
    %v1841 = vld [vmem:[%s31 + $0x70] sm:$0xff]
    %v1842 = vld [vmem:[%s31 + $0x78] sm:$0xff]
    %v1843 = vld [vmem:[#allocation22] sm:$0x1]
    %v1845 = vlaneseq
    %v1846 = vshrl.u32 %v1845, 7
    %v1847 = vsub.s32 0, %v1846
    %v1848 = vrot.slane %v1843, %v1847
    %1850 = vmatprep.subr.mxu0 0.0
    %1851 = vmatpush1.msra.mxu0 %v1827
    %1852 = vmatprep.subr.mxu0 0.0
    %1853 = vmatpush1.msra.mxu0 %v1828
    %1854 = vmatprep.subr.mxu0 0.0
    %1855 = vmatpush1.msra.mxu0 %v1829
    %1856 = vmatprep.subr.mxu0 0.0
    %1857 = vmatpush1.msra.mxu0 %v1830
    %1858 = vmatprep.subr.mxu0 0.0
    %1859 = vmatpush1.msra.mxu0 %v1831
    %1860 = vmatprep.subr.mxu0 0.0
    %1861 = vmatpush1.msra.mxu0 %v1832
    %1862 = vmatprep.subr.mxu0 0.0
    %1863 = vmatpush1.msra.mxu0 %v1833
    %1864 = vmatprep.subr.mxu0 0.0
    %1865 = vmatpush1.msra.mxu0 %v1834
    %1866 = vmatprep.subr.mxu0 0.0
    %1867 = vmatpush1.msra.mxu0 %v1835
    %1868 = vmatprep.subr.mxu0 0.0
    %1869 = vmatpush1.msra.mxu0 %v1836
    %1870 = vmatprep.subr.mxu0 0.0
    %1871 = vmatpush1.msra.mxu0 %v1837
    %1872 = vmatprep.subr.mxu0 0.0
    %1873 = vmatpush1.msra.mxu0 %v1838
    %1874 = vmatprep.subr.mxu0 0.0
    %1875 = vmatpush1.msra.mxu0 %v1839
    %1876 = vmatprep.subr.mxu0 0.0
    %1877 = vmatpush1.msra.mxu0 %v1840
    %1878 = vmatprep.subr.mxu0 0.0
    %1879 = vmatpush1.msra.mxu0 %v1841
    %1880 = vmatprep.subr.mxu0 0.0
    %1881 = vmatpush1.msra.mxu0 %v1842
    %1882 = vmatprep.subr.mxu0 0.0
    %1883 = vmatpush1.msra.mxu0 0.0
    %1884 = vmatprep.subr.mxu0 0.0
    %1885 = vmatpush1.msra.mxu0 0.0
    %1886 = vmatprep.subr.mxu0 0.0
    %1887 = vmatpush1.msra.mxu0 0.0
    %1888 = vmatprep.subr.mxu0 0.0
    %1889 = vmatpush1.msra.mxu0 0.0
    %1890 = vmatprep.subr.mxu0 0.0
    %1891 = vmatpush1.msra.mxu0 0.0
    %1892 = vmatprep.subr.mxu0 0.0
    %1893 = vmatpush1.msra.mxu0 0.0
    %1894 = vmatprep.subr.mxu0 0.0
    %1895 = vmatpush1.msra.mxu0 0.0
    %1896 = vmatprep.subr.mxu0 0.0
    %1897 = vmatpush1.msra.mxu0 0.0
    %1898 = vmatprep.subr.mxu0 0.0
    %1899 = vmatpush1.msra.mxu0 0.0
    %1900 = vmatprep.subr.mxu0 0.0
    %1901 = vmatpush1.msra.mxu0 0.0
    %1902 = vmatprep.subr.mxu0 0.0
    %1903 = vmatpush1.msra.mxu0 0.0
    %1904 = vmatprep.subr.mxu0 0.0
    %1905 = vmatpush1.msra.mxu0 0.0
    %1906 = vmatprep.subr.mxu0 0.0
    %1907 = vmatpush1.msra.mxu0 0.0
    %1908 = vmatprep.subr.mxu0 0.0
    %1909 = vmatpush1.msra.mxu0 0.0
    %1910 = vmatprep.subr.mxu0 0.0
    %1911 = vmatpush1.msra.mxu0 0.0
    %1912 = vmatprep.subr.mxu0 0.0
    %1913 = vmatpush1.msra.mxu0 0.0
    %1914 = vmatprep.mubr.f32.mxu0 0.0
    %1915 = vmatmul.mubr.f32.gmra.mrb[0].mxu0 %v1819
    %v1916 = vpop.f32.mrb[0].mxu0
    %v1917 = vadd.f32 %v1848, %v1916
    %v1918 = vpop.f32.mrb[0].mxu0
    %1919 = vmatprep.mubr.f32.mxu0 0.0
    %1920 = vmatmul.mubr.f32.gmra.mrb[0].mxu0 %v1826
    %v1921 = vpop.f32.mrb[0].mxu0
    %v1922 = vadd.f32 %v1848, %v1921
    %v1923 = vpop.f32.mrb[0].mxu0
    %1924 = vdwg.mxu0
    %v1925 = vmax.f32 %v1917, 0.0
    %v1926 = vmax.f32 %v1922, 0.0
    %v1927 = vld [vmem:[%s35] sm:$0xff]
    %v1928 = vld [vmem:[%s35 + $0x8] sm:$0xff]
    %v1929 = vld [vmem:[%s35 + $0x10] sm:$0xff]
    %v1930 = vld [vmem:[%s35 + $0x18] sm:$0xff]
    %v1931 = vld [vmem:[%s35 + $0x20] sm:$0xff]
    %v1932 = vld [vmem:[%s35 + $0x28] sm:$0xff]
    %v1933 = vld [vmem:[%s35 + $0x30] sm:$0xff]
    %v1934 = vld [vmem:[%s35 + $0x38] sm:$0xff]
    %v1935 = vld [vmem:[%s35 + $0x40] sm:$0xff]
    %v1936 = vld [vmem:[%s35 + $0x48] sm:$0xff]
    %v1937 = vld [vmem:[%s35 + $0x50] sm:$0xff]
    %v1938 = vld [vmem:[%s35 + $0x58] sm:$0xff]
    %v1939 = vld [vmem:[%s35 + $0x60] sm:$0xff]
    %v1940 = vld [vmem:[%s35 + $0x68] sm:$0xff]
    %v1941 = vld [vmem:[%s35 + $0x70] sm:$0xff]
    %v1942 = vld [vmem:[%s35 + $0x78] sm:$0xff]
    %v1943 = vld [vmem:[#allocation23] sm:$0x1]
    %v1945 = vlaneseq
    %v1946 = vshrl.u32 %v1945, 7
    %v1947 = vsub.s32 0, %v1946
    %v1948 = vrot.slane %v1943, %v1947
    %1950 = vmatprep.subr.mxu0 0.0
    %1951 = vmatpush1.msra.mxu0 %v1927
    %1952 = vmatprep.subr.mxu0 0.0
    %1953 = vmatpush1.msra.mxu0 %v1928
    %1954 = vmatprep.subr.mxu0 0.0
    %1955 = vmatpush1.msra.mxu0 %v1929
    %1956 = vmatprep.subr.mxu0 0.0
    %1957 = vmatpush1.msra.mxu0 %v1930
    %1958 = vmatprep.subr.mxu0 0.0
    %1959 = vmatpush1.msra.mxu0 %v1931
    %1960 = vmatprep.subr.mxu0 0.0
    %1961 = vmatpush1.msra.mxu0 %v1932
    %1962 = vmatprep.subr.mxu0 0.0
    %1963 = vmatpush1.msra.mxu0 %v1933
    %1964 = vmatprep.subr.mxu0 0.0
    %1965 = vmatpush1.msra.mxu0 %v1934
    %1966 = vmatprep.subr.mxu0 0.0
    %1967 = vmatpush1.msra.mxu0 %v1935
    %1968 = vmatprep.subr.mxu0 0.0
    %1969 = vmatpush1.msra.mxu0 %v1936
    %1970 = vmatprep.subr.mxu0 0.0
    %1971 = vmatpush1.msra.mxu0 %v1937
    %1972 = vmatprep.subr.mxu0 0.0
    %1973 = vmatpush1.msra.mxu0 %v1938
    %1974 = vmatprep.subr.mxu0 0.0
    %1975 = vmatpush1.msra.mxu0 %v1939
    %1976 = vmatprep.subr.mxu0 0.0
    %1977 = vmatpush1.msra.mxu0 %v1940
    %1978 = vmatprep.subr.mxu0 0.0
    %1979 = vmatpush1.msra.mxu0 %v1941
    %1980 = vmatprep.subr.mxu0 0.0
    %1981 = vmatpush1.msra.mxu0 %v1942
    %1982 = vmatprep.subr.mxu0 0.0
    %1983 = vmatpush1.msra.mxu0 0.0
    %1984 = vmatprep.subr.mxu0 0.0
    %1985 = vmatpush1.msra.mxu0 0.0
    %1986 = vmatprep.subr.mxu0 0.0
    %1987 = vmatpush1.msra.mxu0 0.0
    %1988 = vmatprep.subr.mxu0 0.0
    %1989 = vmatpush1.msra.mxu0 0.0
    %1990 = vmatprep.subr.mxu0 0.0
    %1991 = vmatpush1.msra.mxu0 0.0
    %1992 = vmatprep.subr.mxu0 0.0
    %1993 = vmatpush1.msra.mxu0 0.0
    %1994 = vmatprep.subr.mxu0 0.0
    %1995 = vmatpush1.msra.mxu0 0.0
    %1996 = vmatprep.subr.mxu0 0.0
    %1997 = vmatpush1.msra.mxu0 0.0
    %1998 = vmatprep.subr.mxu0 0.0
    %1999 = vmatpush1.msra.mxu0 0.0
    %2000 = vmatprep.subr.mxu0 0.0
    %2001 = vmatpush1.msra.mxu0 0.0
    %2002 = vmatprep.subr.mxu0 0.0
    %2003 = vmatpush1.msra.mxu0 0.0
    %2004 = vmatprep.subr.mxu0 0.0
    %2005 = vmatpush1.msra.mxu0 0.0
    %2006 = vmatprep.subr.mxu0 0.0
    %2007 = vmatpush1.msra.mxu0 0.0
    %2008 = vmatprep.subr.mxu0 0.0
    %2009 = vmatpush1.msra.mxu0 0.0
    %2010 = vmatprep.subr.mxu0 0.0
    %2011 = vmatpush1.msra.mxu0 0.0
    %2012 = vmatprep.subr.mxu0 0.0
    %2013 = vmatpush1.msra.mxu0 0.0
    %2014 = vmatprep.mubr.f32.mxu0 0.0
    %2015 = vmatmul.mubr.f32.gmra.mrb[0].mxu0 %v1819
    %v2016 = vpop.f32.mrb[0].mxu0
    %v2017 = vadd.f32 %v1948, %v2016
    %v2018 = vpop.f32.mrb[0].mxu0
    %2019 = vmatprep.mubr.f32.mxu0 0.0
    %2020 = vmatmul.mubr.f32.gmra.mrb[0].mxu0 %v1826
    %v2021 = vpop.f32.mrb[0].mxu0
    %v2022 = vadd.f32 %v1948, %v2021
    %v2023 = vpop.f32.mrb[0].mxu0
    %2024 = vdwg.mxu0
    %v2025 = vmax.f32 %v2017, 0.0
    %v2026 = vmax.f32 %v2022, 0.0
    %v2028 = vrot.slane %v2025, 7
    %v2030 = vsel %vm759, 0.0, %v2028
    %v2031 = vsel %vm759, %v2028, 0.0
    %v2034 = vrot.slane %v2030, 1
    %v2035 = vrot.slane %v2031, 1
    %v2036 = vsel %vm773, %v2034, %v2035
    %2037 = vrot.lane.b32.xlu0 %v2036, 64
    %v2038 = vpop.permute.xlu0 %2037
    %v2040 = vrot.slane %v2030, 2
    %v2041 = vrot.slane %v2031, 2
    %v2042 = vsel %vm788, %v2040, %v2041
    %v2043 = vsel %vm807, %v2030, %v2038
    %v2045 = vrot.slane %v2026, 7
    %v2047 = vsel %vm759, 0.0, %v2045
    %v2048 = vsel %vm759, %v2045, 0.0
    %v2051 = vrot.slane %v2047, 1
    %v2052 = vrot.slane %v2048, 1
    %v2053 = vsel %vm773, %v2051, %v2052
    %2054 = vrot.lane.b32.xlu0 %v2053, 64
    %v2055 = vpop.permute.xlu0 %2054
    %v2057 = vrot.slane %v2047, 2
    %v2058 = vrot.slane %v2048, 2
    %v2059 = vsel %vm788, %v2057, %v2058
    %v2060 = vsel %vm807, %v2047, %v2055
    %v2061 = vld [vmem:[%s39] sm:$0xff]
    %v2062 = vld [vmem:[%s39 + $0x8] sm:$0xff]
    %v2063 = vld [vmem:[%s39 + $0x10] sm:$0xff]
    %v2064 = vld [vmem:[%s39 + $0x18] sm:$0xff]
    %v2065 = vld [vmem:[%s39 + $0x20] sm:$0xff]
    %v2066 = vld [vmem:[%s39 + $0x28] sm:$0xff]
    %v2067 = vld [vmem:[%s39 + $0x30] sm:$0xff]
    %v2068 = vld [vmem:[%s39 + $0x38] sm:$0xff]
    %v2069 = vld [vmem:[%s39 + $0x40] sm:$0xff]
    %v2070 = vld [vmem:[%s39 + $0x48] sm:$0xff]
    %v2071 = vld [vmem:[%s39 + $0x50] sm:$0xff]
    %v2072 = vld [vmem:[%s39 + $0x58] sm:$0xff]
    %v2073 = vld [vmem:[%s39 + $0x60] sm:$0xff]
    %v2074 = vld [vmem:[%s39 + $0x68] sm:$0xff]
    %v2075 = vld [vmem:[%s39 + $0x70] sm:$0xff]
    %v2076 = vld [vmem:[%s39 + $0x78] sm:$0xff]
    %v2077 = vld [vmem:[%s39 + $0x80] sm:$0xff]
    %v2078 = vld [vmem:[%s39 + $0x88] sm:$0xff]
    %v2079 = vld [vmem:[%s39 + $0x90] sm:$0xff]
    %v2080 = vld [vmem:[%s39 + $0x98] sm:$0xff]
    %v2081 = vld [vmem:[%s39 + $0xa0] sm:$0xff]
    %v2082 = vld [vmem:[%s39 + $0xa8] sm:$0xff]
    %v2083 = vld [vmem:[%s39 + $0xb0] sm:$0xff]
    %v2084 = vld [vmem:[%s39 + $0xb8] sm:$0xff]
    %v2085 = vld [vmem:[#allocation25] sm:$0x1]
    %v2087 = vlaneseq
    %v2088 = vshrl.u32 %v2087, 7
    %v2089 = vsub.s32 0, %v2088
    %v2090 = vrot.slane %v2085, %v2089
    %v2092 = vsel %vm807, %v2042, 0
    %v2094 = vsel %vm807, %v2059, 0
    %2096 = vmatprep.subr.mxu0 0.0
    %2097 = vmatpush1.msra.mxu0 %v2061
    %2098 = vmatprep.subr.mxu0 0.0
    %2099 = vmatpush1.msra.mxu0 %v2062
    %2100 = vmatprep.subr.mxu0 0.0
    %2101 = vmatpush1.msra.mxu0 %v2063
    %2102 = vmatprep.subr.mxu0 0.0
    %2103 = vmatpush1.msra.mxu0 %v2064
    %2104 = vmatprep.subr.mxu0 0.0
    %2105 = vmatpush1.msra.mxu0 %v2065
    %2106 = vmatprep.subr.mxu0 0.0
    %2107 = vmatpush1.msra.mxu0 %v2066
    %2108 = vmatprep.subr.mxu0 0.0
    %2109 = vmatpush1.msra.mxu0 %v2067
    %2110 = vmatprep.subr.mxu0 0.0
    %2111 = vmatpush1.msra.mxu0 %v2068
    %2112 = vmatprep.subr.mxu0 0.0
    %2113 = vmatpush1.msra.mxu0 %v2069
    %2114 = vmatprep.subr.mxu0 0.0
    %2115 = vmatpush1.msra.mxu0 %v2070
    %2116 = vmatprep.subr.mxu0 0.0
    %2117 = vmatpush1.msra.mxu0 %v2071
    %2118 = vmatprep.subr.mxu0 0.0
    %2119 = vmatpush1.msra.mxu0 %v2072
    %2120 = vmatprep.subr.mxu0 0.0
    %2121 = vmatpush1.msra.mxu0 %v2073
    %2122 = vmatprep.subr.mxu0 0.0
    %2123 = vmatpush1.msra.mxu0 %v2074
    %2124 = vmatprep.subr.mxu0 0.0
    %2125 = vmatpush1.msra.mxu0 %v2075
    %2126 = vmatprep.subr.mxu0 0.0
    %2127 = vmatpush1.msra.mxu0 %v2076
    %2128 = vmatprep.subr.mxu0 0.0
    %2129 = vmatpush1.msra.mxu0 %v2077
    %2130 = vmatprep.subr.mxu0 0.0
    %2131 = vmatpush1.msra.mxu0 %v2078
    %2132 = vmatprep.subr.mxu0 0.0
    %2133 = vmatpush1.msra.mxu0 %v2079
    %2134 = vmatprep.subr.mxu0 0.0
    %2135 = vmatpush1.msra.mxu0 %v2080
    %2136 = vmatprep.subr.mxu0 0.0
    %2137 = vmatpush1.msra.mxu0 %v2081
    %2138 = vmatprep.subr.mxu0 0.0
    %2139 = vmatpush1.msra.mxu0 %v2082
    %2140 = vmatprep.subr.mxu0 0.0
    %2141 = vmatpush1.msra.mxu0 %v2083
    %2142 = vmatprep.subr.mxu0 0.0
    %2143 = vmatpush1.msra.mxu0 %v2084
    %2144 = vmatprep.subr.mxu0 0.0
    %2145 = vmatpush1.msra.mxu0 0.0
    %2146 = vmatprep.subr.mxu0 0.0
    %2147 = vmatpush1.msra.mxu0 0.0
    %2148 = vmatprep.subr.mxu0 0.0
    %2149 = vmatpush1.msra.mxu0 0.0
    %2150 = vmatprep.subr.mxu0 0.0
    %2151 = vmatpush1.msra.mxu0 0.0
    %2152 = vmatprep.subr.mxu0 0.0
    %2153 = vmatpush1.msra.mxu0 0.0
    %2154 = vmatprep.subr.mxu0 0.0
    %2155 = vmatpush1.msra.mxu0 0.0
    %2156 = vmatprep.subr.mxu0 0.0
    %2157 = vmatpush1.msra.mxu0 0.0
    %2158 = vmatprep.subr.mxu0 0.0
    %2159 = vmatpush1.msra.mxu0 0.0
    %2160 = vmatprep.mubr.f32.mxu0 %v2092
    %2161 = vmatmul.mubr.f32.gmra.mrb[0].mxu0 %v2043
    %v2162 = vpop.f32.mrb[0].mxu0
    %v2163 = vadd.f32 %v2090, %v2162
    %v2164 = vpop.f32.mrb[0].mxu0
    %2165 = vmatprep.mubr.f32.mxu0 %v2094
    %2166 = vmatmul.mubr.f32.gmra.mrb[0].mxu0 %v2060
    %v2167 = vpop.f32.mrb[0].mxu0
    %v2168 = vadd.f32 %v2090, %v2167
    %v2169 = vpop.f32.mrb[0].mxu0
    %2170 = vdwg.mxu0
    %v2171 = vmax.f32 %v2163, 0.0
    %v2172 = vmax.f32 %v2168, 0.0
    %v2173 = vld [vmem:[%s43] sm:$0xff]
    %v2174 = vld [vmem:[%s43 + $0x8] sm:$0xff]
    %v2175 = vld [vmem:[%s43 + $0x10] sm:$0xff]
    %v2176 = vld [vmem:[%s43 + $0x18] sm:$0xff]
    %v2177 = vld [vmem:[%s43 + $0x20] sm:$0xff]
    %v2178 = vld [vmem:[%s43 + $0x28] sm:$0xff]
    %v2179 = vld [vmem:[%s43 + $0x30] sm:$0xff]
    %v2180 = vld [vmem:[%s43 + $0x38] sm:$0xff]
    %v2181 = vld [vmem:[%s43 + $0x40] sm:$0xff]
    %v2182 = vld [vmem:[%s43 + $0x48] sm:$0xff]
    %v2183 = vld [vmem:[%s43 + $0x50] sm:$0xff]
    %v2184 = vld [vmem:[%s43 + $0x58] sm:$0xff]
    %v2185 = vld [vmem:[%s43 + $0x60] sm:$0xff]
    %v2186 = vld [vmem:[%s43 + $0x68] sm:$0xff]
    %v2187 = vld [vmem:[%s43 + $0x70] sm:$0xff]
    %v2188 = vld [vmem:[%s43 + $0x78] sm:$0xff]
    %v2189 = vld [vmem:[#allocation26] sm:$0x1]
    %v2191 = vlaneseq
    %v2192 = vshrl.u32 %v2191, 7
    %v2193 = vsub.s32 0, %v2192
    %v2194 = vrot.slane %v2189, %v2193
    %2196 = vmatprep.subr.mxu0 0.0
    %2197 = vmatpush1.msra.mxu0 %v2173
    %2198 = vmatprep.subr.mxu0 0.0
    %2199 = vmatpush1.msra.mxu0 %v2174
    %2200 = vmatprep.subr.mxu0 0.0
    %2201 = vmatpush1.msra.mxu0 %v2175
    %2202 = vmatprep.subr.mxu0 0.0
    %2203 = vmatpush1.msra.mxu0 %v2176
    %2204 = vmatprep.subr.mxu0 0.0
    %2205 = vmatpush1.msra.mxu0 %v2177
    %2206 = vmatprep.subr.mxu0 0.0
    %2207 = vmatpush1.msra.mxu0 %v2178
    %2208 = vmatprep.subr.mxu0 0.0
    %2209 = vmatpush1.msra.mxu0 %v2179
    %2210 = vmatprep.subr.mxu0 0.0
    %2211 = vmatpush1.msra.mxu0 %v2180
    %2212 = vmatprep.subr.mxu0 0.0
    %2213 = vmatpush1.msra.mxu0 %v2181
    %2214 = vmatprep.subr.mxu0 0.0
    %2215 = vmatpush1.msra.mxu0 %v2182
    %2216 = vmatprep.subr.mxu0 0.0
    %2217 = vmatpush1.msra.mxu0 %v2183
    %2218 = vmatprep.subr.mxu0 0.0
    %2219 = vmatpush1.msra.mxu0 %v2184
    %2220 = vmatprep.subr.mxu0 0.0
    %2221 = vmatpush1.msra.mxu0 %v2185
    %2222 = vmatprep.subr.mxu0 0.0
    %2223 = vmatpush1.msra.mxu0 %v2186
    %2224 = vmatprep.subr.mxu0 0.0
    %2225 = vmatpush1.msra.mxu0 %v2187
    %2226 = vmatprep.subr.mxu0 0.0
    %2227 = vmatpush1.msra.mxu0 %v2188
    %2228 = vmatprep.subr.mxu0 0.0
    %2229 = vmatpush1.msra.mxu0 0.0
    %2230 = vmatprep.subr.mxu0 0.0
    %2231 = vmatpush1.msra.mxu0 0.0
    %2232 = vmatprep.subr.mxu0 0.0
    %2233 = vmatpush1.msra.mxu0 0.0
    %2234 = vmatprep.subr.mxu0 0.0
    %2235 = vmatpush1.msra.mxu0 0.0
    %2236 = vmatprep.subr.mxu0 0.0
    %2237 = vmatpush1.msra.mxu0 0.0
    %2238 = vmatprep.subr.mxu0 0.0
    %2239 = vmatpush1.msra.mxu0 0.0
    %2240 = vmatprep.subr.mxu0 0.0
    %2241 = vmatpush1.msra.mxu0 0.0
    %2242 = vmatprep.subr.mxu0 0.0
    %2243 = vmatpush1.msra.mxu0 0.0
    %2244 = vmatprep.subr.mxu0 0.0
    %2245 = vmatpush1.msra.mxu0 0.0
    %2246 = vmatprep.subr.mxu0 0.0
    %2247 = vmatpush1.msra.mxu0 0.0
    %2248 = vmatprep.subr.mxu0 0.0
    %2249 = vmatpush1.msra.mxu0 0.0
    %2250 = vmatprep.subr.mxu0 0.0
    %2251 = vmatpush1.msra.mxu0 0.0
    %2252 = vmatprep.subr.mxu0 0.0
    %2253 = vmatpush1.msra.mxu0 0.0
    %2254 = vmatprep.subr.mxu0 0.0
    %2255 = vmatpush1.msra.mxu0 0.0
    %2256 = vmatprep.subr.mxu0 0.0
    %2257 = vmatpush1.msra.mxu0 0.0
    %2258 = vmatprep.subr.mxu0 0.0
    %2259 = vmatpush1.msra.mxu0 0.0
    %2260 = vmatprep.mubr.f32.mxu0 0.0
    %2261 = vmatmul.mubr.f32.gmra.mrb[0].mxu0 %v1819
    %v2262 = vpop.f32.mrb[0].mxu0
    %v2263 = vadd.f32 %v2194, %v2262
    %v2264 = vpop.f32.mrb[0].mxu0
    %2265 = vmatprep.mubr.f32.mxu0 0.0
    %2266 = vmatmul.mubr.f32.gmra.mrb[0].mxu0 %v1826
    %v2267 = vpop.f32.mrb[0].mxu0
    %v2268 = vadd.f32 %v2194, %v2267
    %v2269 = vpop.f32.mrb[0].mxu0
    %2270 = vdwg.mxu0
    %v2271 = vmax.f32 %v2263, 0.0
    %v2272 = vmax.f32 %v2268, 0.0
    %v2274 = vrot.slane %v2271, 6
    %v2276 = vsel %vm862, 0.0, %v2274
    %v2277 = vsel %vm862, %v2274, 0.0
    %v2280 = vrot.slane %v2276, 1
    %v2281 = vrot.slane %v2277, 1
    %v2282 = vsel %vm773, %v2280, %v2281
    %2283 = vrot.lane.b32.xlu0 %v2282, 64
    %v2284 = vpop.permute.xlu0 %2283
    %v2286 = vrot.slane %v2276, 2
    %v2287 = vrot.slane %v2277, 2
    %v2288 = vsel %vm788, %v2286, %v2287
    %v2290 = vrot.slane %v2276, 3
    %v2291 = vrot.slane %v2277, 3
    %v2292 = vsel %vm549, %v2290, %v2291
    %2293 = vrot.lane.b32.xlu0 %v2292, 64
    %v2294 = vpop.permute.xlu0 %2293
    %v2296 = vrot.slane %v2276, 4
    %v2297 = vrot.slane %v2277, 4
    %v2298 = vsel %vm1118, %v2296, %v2297
    %v2299 = vsel %vm807, %v2276, %v2284
    %v2300 = vsel %vm807, %v2288, %v2294
    %v2302 = vrot.slane %v2272, 6
    %v2304 = vsel %vm862, 0.0, %v2302
    %v2305 = vsel %vm862, %v2302, 0.0
    %v2308 = vrot.slane %v2304, 1
    %v2309 = vrot.slane %v2305, 1
    %v2310 = vsel %vm773, %v2308, %v2309
    %2311 = vrot.lane.b32.xlu0 %v2310, 64
    %v2312 = vpop.permute.xlu0 %2311
    %v2314 = vrot.slane %v2304, 2
    %v2315 = vrot.slane %v2305, 2
    %v2316 = vsel %vm788, %v2314, %v2315
    %v2318 = vrot.slane %v2304, 3
    %v2319 = vrot.slane %v2305, 3
    %v2320 = vsel %vm549, %v2318, %v2319
    %2321 = vrot.lane.b32.xlu0 %v2320, 64
    %v2322 = vpop.permute.xlu0 %2321
    %v2324 = vrot.slane %v2304, 4
    %v2325 = vrot.slane %v2305, 4
    %v2326 = vsel %vm1118, %v2324, %v2325
    %v2327 = vsel %vm807, %v2304, %v2312
    %v2328 = vsel %vm807, %v2316, %v2322
    %v2329 = vld [vmem:[%s47] sm:$0xff]
    %v2330 = vld [vmem:[%s47 + $0x8] sm:$0xff]
    %v2331 = vld [vmem:[%s47 + $0x10] sm:$0xff]
    %v2332 = vld [vmem:[%s47 + $0x18] sm:$0xff]
    %v2333 = vld [vmem:[%s47 + $0x20] sm:$0xff]
    %v2334 = vld [vmem:[%s47 + $0x28] sm:$0xff]
    %v2335 = vld [vmem:[%s47 + $0x30] sm:$0xff]
    %v2336 = vld [vmem:[%s47 + $0x38] sm:$0xff]
    %v2337 = vld [vmem:[%s47 + $0x40] sm:$0xff]
    %v2338 = vld [vmem:[%s47 + $0x48] sm:$0xff]
    %v2339 = vld [vmem:[%s47 + $0x50] sm:$0xff]
    %v2340 = vld [vmem:[%s47 + $0x58] sm:$0xff]
    %v2341 = vld [vmem:[%s47 + $0x60] sm:$0xff]
    %v2342 = vld [vmem:[%s47 + $0x68] sm:$0xff]
    %v2343 = vld [vmem:[%s47 + $0x70] sm:$0xff]
    %v2344 = vld [vmem:[%s47 + $0x78] sm:$0xff]
    %v2345 = vld [vmem:[%s47 + $0x80] sm:$0xff]
    %v2346 = vld [vmem:[%s47 + $0x88] sm:$0xff]
    %v2347 = vld [vmem:[%s47 + $0x90] sm:$0xff]
    %v2348 = vld [vmem:[%s47 + $0x98] sm:$0xff]
    %v2349 = vld [vmem:[%s47 + $0xa0] sm:$0xff]
    %v2350 = vld [vmem:[%s47 + $0xa8] sm:$0xff]
    %v2351 = vld [vmem:[%s47 + $0xb0] sm:$0xff]
    %v2352 = vld [vmem:[%s47 + $0xb8] sm:$0xff]
    %v2353 = vld [vmem:[%s47 + $0xc0] sm:$0xff]
    %v2354 = vld [vmem:[%s47 + $0xc8] sm:$0xff]
    %v2355 = vld [vmem:[%s47 + $0xd0] sm:$0xff]
    %v2356 = vld [vmem:[%s47 + $0xd8] sm:$0xff]
    %v2357 = vld [vmem:[%s47 + $0xe0] sm:$0xff]
    %v2358 = vld [vmem:[%s47 + $0xe8] sm:$0xff]
    %v2359 = vld [vmem:[%s47 + $0xf0] sm:$0xff]
    %v2360 = vld [vmem:[%s47 + $0xf8] sm:$0xff]
    %v2361 = vld [vmem:[%s47 + $0x100] sm:$0xff]
    %v2362 = vld [vmem:[%s47 + $0x108] sm:$0xff]
    %v2363 = vld [vmem:[%s47 + $0x110] sm:$0xff]
    %v2364 = vld [vmem:[%s47 + $0x118] sm:$0xff]
    %v2365 = vld [vmem:[%s47 + $0x120] sm:$0xff]
    %v2366 = vld [vmem:[%s47 + $0x128] sm:$0xff]
    %v2367 = vld [vmem:[%s47 + $0x130] sm:$0xff]
    %v2368 = vld [vmem:[%s47 + $0x138] sm:$0xff]
    %v2369 = vld [vmem:[#allocation28] sm:$0x1]
    %v2371 = vlaneseq
    %v2372 = vshrl.u32 %v2371, 7
    %v2373 = vsub.s32 0, %v2372
    %v2374 = vrot.slane %v2369, %v2373
    %v2376 = vsel %vm807, %v2298, 0
    %v2378 = vsel %vm807, %v2326, 0
    %2380 = vmatprep.subr.mxu0 0.0
    %2381 = vmatpush1.msra.mxu0 %v2329
    %2382 = vmatprep.subr.mxu0 0.0
    %2383 = vmatpush1.msra.mxu0 %v2330
    %2384 = vmatprep.subr.mxu0 0.0
    %2385 = vmatpush1.msra.mxu0 %v2331
    %2386 = vmatprep.subr.mxu0 0.0
    %2387 = vmatpush1.msra.mxu0 %v2332
    %2388 = vmatprep.subr.mxu0 0.0
    %2389 = vmatpush1.msra.mxu0 %v2333
    %2390 = vmatprep.subr.mxu0 0.0
    %2391 = vmatpush1.msra.mxu0 %v2334
    %2392 = vmatprep.subr.mxu0 0.0
    %2393 = vmatpush1.msra.mxu0 %v2335
    %2394 = vmatprep.subr.mxu0 0.0
    %2395 = vmatpush1.msra.mxu0 %v2336
    %2396 = vmatprep.subr.mxu0 0.0
    %2397 = vmatpush1.msra.mxu0 %v2337
    %2398 = vmatprep.subr.mxu0 0.0
    %2399 = vmatpush1.msra.mxu0 %v2338
    %2400 = vmatprep.subr.mxu0 0.0
    %2401 = vmatpush1.msra.mxu0 %v2339
    %2402 = vmatprep.subr.mxu0 0.0
    %2403 = vmatpush1.msra.mxu0 %v2340
    %2404 = vmatprep.subr.mxu0 0.0
    %2405 = vmatpush1.msra.mxu0 %v2341
    %2406 = vmatprep.subr.mxu0 0.0
    %2407 = vmatpush1.msra.mxu0 %v2342
    %2408 = vmatprep.subr.mxu0 0.0
    %2409 = vmatpush1.msra.mxu0 %v2343
    %2410 = vmatprep.subr.mxu0 0.0
    %2411 = vmatpush1.msra.mxu0 %v2344
    %2412 = vmatprep.subr.mxu0 0.0
    %2413 = vmatpush1.msra.mxu0 %v2345
    %2414 = vmatprep.subr.mxu0 0.0
    %2415 = vmatpush1.msra.mxu0 %v2346
    %2416 = vmatprep.subr.mxu0 0.0
    %2417 = vmatpush1.msra.mxu0 %v2347
    %2418 = vmatprep.subr.mxu0 0.0
    %2419 = vmatpush1.msra.mxu0 %v2348
    %2420 = vmatprep.subr.mxu0 0.0
    %2421 = vmatpush1.msra.mxu0 %v2349
    %2422 = vmatprep.subr.mxu0 0.0
    %2423 = vmatpush1.msra.mxu0 %v2350
    %2424 = vmatprep.subr.mxu0 0.0
    %2425 = vmatpush1.msra.mxu0 %v2351
    %2426 = vmatprep.subr.mxu0 0.0
    %2427 = vmatpush1.msra.mxu0 %v2352
    %2428 = vmatprep.subr.mxu0 0.0
    %2429 = vmatpush1.msra.mxu0 %v2353
    %2430 = vmatprep.subr.mxu0 0.0
    %2431 = vmatpush1.msra.mxu0 %v2354
    %2432 = vmatprep.subr.mxu0 0.0
    %2433 = vmatpush1.msra.mxu0 %v2355
    %2434 = vmatprep.subr.mxu0 0.0
    %2435 = vmatpush1.msra.mxu0 %v2356
    %2436 = vmatprep.subr.mxu0 0.0
    %2437 = vmatpush1.msra.mxu0 %v2357
    %2438 = vmatprep.subr.mxu0 0.0
    %2439 = vmatpush1.msra.mxu0 %v2358
    %2440 = vmatprep.subr.mxu0 0.0
    %2441 = vmatpush1.msra.mxu0 %v2359
    %2442 = vmatprep.subr.mxu0 0.0
    %2443 = vmatpush1.msra.mxu0 %v2360
    %2444 = vmatprep.mubr.f32.mxu0 %v2300
    %2445 = vmatmul.mubr.f32.gmra.mrb[0].mxu0 %v2299
    %v2446 = vpop.f32.mrb[0].mxu0
    %v2447 = vadd.f32 %v2374, %v2446
    %v2448 = vpop.f32.mrb[0].mxu0
    %2449 = vmatprep.mubr.f32.mxu0 %v2328
    %2450 = vmatmul.mubr.f32.gmra.mrb[0].mxu0 %v2327
    %v2451 = vpop.f32.mrb[0].mxu0
    %v2452 = vadd.f32 %v2374, %v2451
    %v2453 = vpop.f32.mrb[0].mxu0
    %2454 = vdwg.mxu0
    %2455 = vmatprep.subr.mxu0 0.0
    %2456 = vmatpush1.msra.mxu0 %v2361
    %2457 = vmatprep.subr.mxu0 0.0
    %2458 = vmatpush1.msra.mxu0 %v2362
    %2459 = vmatprep.subr.mxu0 0.0
    %2460 = vmatpush1.msra.mxu0 %v2363
    %2461 = vmatprep.subr.mxu0 0.0
    %2462 = vmatpush1.msra.mxu0 %v2364
    %2463 = vmatprep.subr.mxu0 0.0
    %2464 = vmatpush1.msra.mxu0 %v2365
    %2465 = vmatprep.subr.mxu0 0.0
    %2466 = vmatpush1.msra.mxu0 %v2366
    %2467 = vmatprep.subr.mxu0 0.0
    %2468 = vmatpush1.msra.mxu0 %v2367
    %2469 = vmatprep.subr.mxu0 0.0
    %2470 = vmatpush1.msra.mxu0 %v2368
    %2471 = vmatprep.subr.mxu0 0.0
    %2472 = vmatpush1.msra.mxu0 0.0
    %2473 = vmatprep.subr.mxu0 0.0
    %2474 = vmatpush1.msra.mxu0 0.0
    %2475 = vmatprep.subr.mxu0 0.0
    %2476 = vmatpush1.msra.mxu0 0.0
    %2477 = vmatprep.subr.mxu0 0.0
    %2478 = vmatpush1.msra.mxu0 0.0
    %2479 = vmatprep.subr.mxu0 0.0
    %2480 = vmatpush1.msra.mxu0 0.0
    %2481 = vmatprep.subr.mxu0 0.0
    %2482 = vmatpush1.msra.mxu0 0.0
    %2483 = vmatprep.subr.mxu0 0.0
    %2484 = vmatpush1.msra.mxu0 0.0
    %2485 = vmatprep.subr.mxu0 0.0
    %2486 = vmatpush1.msra.mxu0 0.0
    %2487 = vmatprep.subr.mxu0 0.0
    %2488 = vmatpush1.msra.mxu0 0.0
    %2489 = vmatprep.subr.mxu0 0.0
    %2490 = vmatpush1.msra.mxu0 0.0
    %2491 = vmatprep.subr.mxu0 0.0
    %2492 = vmatpush1.msra.mxu0 0.0
    %2493 = vmatprep.subr.mxu0 0.0
    %2494 = vmatpush1.msra.mxu0 0.0
    %2495 = vmatprep.subr.mxu0 0.0
    %2496 = vmatpush1.msra.mxu0 0.0
    %2497 = vmatprep.subr.mxu0 0.0
    %2498 = vmatpush1.msra.mxu0 0.0
    %2499 = vmatprep.subr.mxu0 0.0
    %2500 = vmatpush1.msra.mxu0 0.0
    %2501 = vmatprep.subr.mxu0 0.0
    %2502 = vmatpush1.msra.mxu0 0.0
    %2503 = vmatprep.subr.mxu0 0.0
    %2504 = vmatpush1.msra.mxu0 0.0
    %2505 = vmatprep.subr.mxu0 0.0
    %2506 = vmatpush1.msra.mxu0 0.0
    %2507 = vmatprep.subr.mxu0 0.0
    %2508 = vmatpush1.msra.mxu0 0.0
    %2509 = vmatprep.subr.mxu0 0.0
    %2510 = vmatpush1.msra.mxu0 0.0
    %2511 = vmatprep.subr.mxu0 0.0
    %2512 = vmatpush1.msra.mxu0 0.0
    %2513 = vmatprep.subr.mxu0 0.0
    %2514 = vmatpush1.msra.mxu0 0.0
    %2515 = vmatprep.subr.mxu0 0.0
    %2516 = vmatpush1.msra.mxu0 0.0
    %2517 = vmatprep.subr.mxu0 0.0
    %2518 = vmatpush1.msra.mxu0 0.0
    %2519 = vmatprep.mubr.f32.mxu0 0.0
    %2520 = vmatmul.mubr.f32.gmra.mrb[0].mxu0 %v2376
    %v2521 = vpop.f32.mrb[0].mxu0
    %v2522 = vadd.f32 %v2447, %v2521
    %v2523 = vpop.f32.mrb[0].mxu0
    %2524 = vmatprep.mubr.f32.mxu0 0.0
    %2525 = vmatmul.mubr.f32.gmra.mrb[0].mxu0 %v2378
    %v2526 = vpop.f32.mrb[0].mxu0
    %v2527 = vadd.f32 %v2452, %v2526
    %v2528 = vpop.f32.mrb[0].mxu0
    %2529 = vdwg.mxu0
    %v2530 = vmax.f32 %v2522, 0.0
    %v2531 = vmax.f32 %v2527, 0.0
    %v2533 = vrot.slane %v1819, 7
    %v2535 = vsel %vm759, -1e+30, %v2533
    %v2536 = vsel %vm759, %v2533, -1e+30
    %v2539 = vrot.slane %v2535, 1
    %v2540 = vrot.slane %v2536, 1
    %v2541 = vsel %vm773, %v2539, %v2540
    %v2543 = vmax.f32 %v2535, %v2541
    %v2544 = vrot.slane %v2535, 2
    %v2545 = vrot.slane %v2536, 2
    %v2546 = vsel %vm788, %v2544, %v2545
    %v2548 = vmax.f32 %v2543, %v2546
    %v2550 = vrot.slane %v1826, 7
    %v2552 = vsel %vm759, -1e+30, %v2550
    %v2553 = vsel %vm759, %v2550, -1e+30
    %v2556 = vrot.slane %v2552, 1
    %v2557 = vrot.slane %v2553, 1
    %v2558 = vsel %vm773, %v2556, %v2557
    %v2560 = vmax.f32 %v2552, %v2558
    %v2561 = vrot.slane %v2552, 2
    %v2562 = vrot.slane %v2553, 2
    %v2563 = vsel %vm788, %v2561, %v2562
    %v2565 = vmax.f32 %v2560, %v2563
    %v2566 = vld [vmem:[%s51] sm:$0xff]
    %v2567 = vld [vmem:[%s51 + $0x8] sm:$0xff]
    %v2568 = vld [vmem:[%s51 + $0x10] sm:$0xff]
    %v2569 = vld [vmem:[%s51 + $0x18] sm:$0xff]
    %v2570 = vld [vmem:[%s51 + $0x20] sm:$0xff]
    %v2571 = vld [vmem:[%s51 + $0x28] sm:$0xff]
    %v2572 = vld [vmem:[%s51 + $0x30] sm:$0xff]
    %v2573 = vld [vmem:[%s51 + $0x38] sm:$0xff]
    %v2574 = vld [vmem:[%s51 + $0x40] sm:$0xff]
    %v2575 = vld [vmem:[%s51 + $0x48] sm:$0xff]
    %v2576 = vld [vmem:[%s51 + $0x50] sm:$0xff]
    %v2577 = vld [vmem:[%s51 + $0x58] sm:$0xff]
    %v2578 = vld [vmem:[%s51 + $0x60] sm:$0xff]
    %v2579 = vld [vmem:[%s51 + $0x68] sm:$0xff]
    %v2580 = vld [vmem:[%s51 + $0x70] sm:$0xff]
    %v2581 = vld [vmem:[%s51 + $0x78] sm:$0xff]
    %v2582 = vld [vmem:[#allocation29] sm:$0x1]
    %v2584 = vlaneseq
    %v2585 = vshrl.u32 %v2584, 7
    %v2586 = vsub.s32 0, %v2585
    %v2587 = vrot.slane %v2582, %v2586
    %2589 = vmatprep.subr.mxu0 0.0
    %2590 = vmatpush1.msra.mxu0 %v2566
    %2591 = vmatprep.subr.mxu0 0.0
    %2592 = vmatpush1.msra.mxu0 %v2567
    %2593 = vmatprep.subr.mxu0 0.0
    %2594 = vmatpush1.msra.mxu0 %v2568
    %2595 = vmatprep.subr.mxu0 0.0
    %2596 = vmatpush1.msra.mxu0 %v2569
    %2597 = vmatprep.subr.mxu0 0.0
    %2598 = vmatpush1.msra.mxu0 %v2570
    %2599 = vmatprep.subr.mxu0 0.0
    %2600 = vmatpush1.msra.mxu0 %v2571
    %2601 = vmatprep.subr.mxu0 0.0
    %2602 = vmatpush1.msra.mxu0 %v2572
    %2603 = vmatprep.subr.mxu0 0.0
    %2604 = vmatpush1.msra.mxu0 %v2573
    %2605 = vmatprep.subr.mxu0 0.0
    %2606 = vmatpush1.msra.mxu0 %v2574
    %2607 = vmatprep.subr.mxu0 0.0
    %2608 = vmatpush1.msra.mxu0 %v2575
    %2609 = vmatprep.subr.mxu0 0.0
    %2610 = vmatpush1.msra.mxu0 %v2576
    %2611 = vmatprep.subr.mxu0 0.0
    %2612 = vmatpush1.msra.mxu0 %v2577
    %2613 = vmatprep.subr.mxu0 0.0
    %2614 = vmatpush1.msra.mxu0 %v2578
    %2615 = vmatprep.subr.mxu0 0.0
    %2616 = vmatpush1.msra.mxu0 %v2579
    %2617 = vmatprep.subr.mxu0 0.0
    %2618 = vmatpush1.msra.mxu0 %v2580
    %2619 = vmatprep.subr.mxu0 0.0
    %2620 = vmatpush1.msra.mxu0 %v2581
    %2621 = vmatprep.subr.mxu0 0.0
    %2622 = vmatpush1.msra.mxu0 0.0
    %2623 = vmatprep.subr.mxu0 0.0
    %2624 = vmatpush1.msra.mxu0 0.0
    %2625 = vmatprep.subr.mxu0 0.0
    %2626 = vmatpush1.msra.mxu0 0.0
    %2627 = vmatprep.subr.mxu0 0.0
    %2628 = vmatpush1.msra.mxu0 0.0
    %2629 = vmatprep.subr.mxu0 0.0
    %2630 = vmatpush1.msra.mxu0 0.0
    %2631 = vmatprep.subr.mxu0 0.0
    %2632 = vmatpush1.msra.mxu0 0.0
    %2633 = vmatprep.subr.mxu0 0.0
    %2634 = vmatpush1.msra.mxu0 0.0
    %2635 = vmatprep.subr.mxu0 0.0
    %2636 = vmatpush1.msra.mxu0 0.0
    %2637 = vmatprep.subr.mxu0 0.0
    %2638 = vmatpush1.msra.mxu0 0.0
    %2639 = vmatprep.subr.mxu0 0.0
    %2640 = vmatpush1.msra.mxu0 0.0
    %2641 = vmatprep.subr.mxu0 0.0
    %2642 = vmatpush1.msra.mxu0 0.0
    %2643 = vmatprep.subr.mxu0 0.0
    %2644 = vmatpush1.msra.mxu0 0.0
    %2645 = vmatprep.subr.mxu0 0.0
    %2646 = vmatpush1.msra.mxu0 0.0
    %2647 = vmatprep.subr.mxu0 0.0
    %2648 = vmatpush1.msra.mxu0 0.0
    %2649 = vmatprep.subr.mxu0 0.0
    %2650 = vmatpush1.msra.mxu0 0.0
    %2651 = vmatprep.subr.mxu0 0.0
    %2652 = vmatpush1.msra.mxu0 0.0
    %2653 = vmatprep.mubr.f32.mxu0 0.0
    %2654 = vmatmul.mubr.f32.gmra.mrb[0].mxu0 %v2548
    %v2655 = vpop.f32.mrb[0].mxu0
    %v2656 = vadd.f32 %v2587, %v2655
    %v2657 = vpop.f32.mrb[0].mxu0
    %2658 = vmatprep.mubr.f32.mxu0 0.0
    %2659 = vmatmul.mubr.f32.gmra.mrb[0].mxu0 %v2565
    %v2660 = vpop.f32.mrb[0].mxu0
    %v2661 = vadd.f32 %v2587, %v2660
    %v2662 = vpop.f32.mrb[0].mxu0
    %2663 = vdwg.mxu0
    %v2664 = vmax.f32 %v2656, 0.0
    %v2665 = vmax.f32 %v2661, 0.0
    %2668 = vrot.lane.b32.xlu0 %v2171, 64
    %v2669 = vpop.permute.xlu0 %2668
    %2670 = vrot.lane.b32.xlu0 %v2172, 64
    %v2671 = vpop.permute.xlu0 %2670
    %2676 = vrot.lane.b32.xlu0 %v2664, 64
    %v2677 = vpop.permute.xlu0 %2676
    %2678 = vrot.lane.b32.xlu0 %v2665, 64
    %v2679 = vpop.permute.xlu0 %2678
    %v2682 = vsel %vm807, %v1925, %v2669
    %v2683 = vsel %vm807, %v1926, %v2671
    %v2684 = vsel %vm807, %v2530, %v2677
    %v2685 = vsel %vm807, %v2531, %v2679
    %v2686 = vld [vmem:[#allocation31] sm:$0x3]
    %v2688 = vlaneseq
    %v2689 = vshrl.u32 %v2688, 7
    %v2690 = vsub.s32 0, %v2689
    %v2691 = vrot.slane %v2686, %v2690
    %v2692 = vlaneseq
    %v2693 = vshrl.u32 %v2692, 7
    %v2694 = vsub.s32 1, %v2693
    %v2695 = vrot.slane %v2686, %v2694
    %v2698 = vmul.f32 %v2682, %v2691
    %v2699 = vmul.f32 %v2684, %v2695
    %v2700 = vmul.f32 %v2683, %v2691
    %v2701 = vmul.f32 %v2685, %v2695
    %v2702 = vld [vmem:[#allocation32] sm:$0x3]
    %v2704 = vlaneseq
    %v2705 = vshrl.u32 %v2704, 7
    %v2706 = vsub.s32 0, %v2705
    %v2707 = vrot.slane %v2702, %v2706
    %v2708 = vlaneseq
    %v2709 = vshrl.u32 %v2708, 7
    %v2710 = vsub.s32 1, %v2709
    %v2711 = vrot.slane %v2702, %v2710
    %v2714 = vadd.f32 %v2698, %v2707
    %v2715 = vadd.f32 %v2699, %v2711
    %v2716 = vadd.f32 %v2700, %v2707
    %v2717 = vadd.f32 %v2701, %v2711
    %v2718 = vsel %vm769, %v2714, -inf
    %v2719 = vrot.slane %v2718, 4
    %v2720 = vmax.f32 %v2718, %v2719
    %v2721 = vrot.slane %v2720, 2
    %v2722 = vmax.f32 %v2720, %v2721
    %v2723 = vrot.slane %v2722, 1
    %v2724 = vmax.f32 %v2722, %v2723
    %v2725 = vsel %vm769, %v2715, -inf
    %v2726 = vrot.slane %v2725, 4
    %v2727 = vmax.f32 %v2725, %v2726
    %v2728 = vrot.slane %v2727, 2
    %v2729 = vmax.f32 %v2727, %v2728
    %v2730 = vrot.slane %v2729, 1
    %v2731 = vmax.f32 %v2729, %v2730
    %v2732 = vsel %vm1697, %v2714, -inf
    %v2733 = vrot.slane %v2732, 4
    %v2734 = vmax.f32 %v2732, %v2733
    %v2735 = vrot.slane %v2734, 2
    %v2736 = vmax.f32 %v2734, %v2735
    %v2737 = vrot.slane %v2736, 1
    %v2738 = vmax.f32 %v2736, %v2737
    %v2739 = vsel %vm1697, %v2715, -inf
    %v2740 = vrot.slane %v2739, 4
    %v2741 = vmax.f32 %v2739, %v2740
    %v2742 = vrot.slane %v2741, 2
    %v2743 = vmax.f32 %v2741, %v2742
    %v2744 = vrot.slane %v2743, 1
    %v2745 = vmax.f32 %v2743, %v2744
    %v2746 = vsel %vm1705, %v2714, -inf
    %v2747 = vrot.slane %v2746, 4
    %v2748 = vmax.f32 %v2746, %v2747
    %v2749 = vrot.slane %v2748, 2
    %v2750 = vmax.f32 %v2748, %v2749
    %v2751 = vrot.slane %v2750, 1
    %v2752 = vmax.f32 %v2750, %v2751
    %v2753 = vsel %vm1705, %v2715, -inf
    %v2754 = vrot.slane %v2753, 4
    %v2755 = vmax.f32 %v2753, %v2754
    %v2756 = vrot.slane %v2755, 2
    %v2757 = vmax.f32 %v2755, %v2756
    %v2758 = vrot.slane %v2757, 1
    %v2759 = vmax.f32 %v2757, %v2758
    %v2760 = vsel %vm769, %v2716, -inf
    %v2761 = vrot.slane %v2760, 4
    %v2762 = vmax.f32 %v2760, %v2761
    %v2763 = vrot.slane %v2762, 2
    %v2764 = vmax.f32 %v2762, %v2763
    %v2765 = vrot.slane %v2764, 1
    %v2766 = vmax.f32 %v2764, %v2765
    %v2767 = vsel %vm769, %v2717, -inf
    %v2768 = vrot.slane %v2767, 4
    %v2769 = vmax.f32 %v2767, %v2768
    %v2770 = vrot.slane %v2769, 2
    %v2771 = vmax.f32 %v2769, %v2770
    %v2772 = vrot.slane %v2771, 1
    %v2773 = vmax.f32 %v2771, %v2772
    %v2774 = vsel %vm1697, %v2716, -inf
    %v2775 = vrot.slane %v2774, 4
    %v2776 = vmax.f32 %v2774, %v2775
    %v2777 = vrot.slane %v2776, 2
    %v2778 = vmax.f32 %v2776, %v2777
    %v2779 = vrot.slane %v2778, 1
    %v2780 = vmax.f32 %v2778, %v2779
    %v2781 = vsel %vm1697, %v2717, -inf
    %v2782 = vrot.slane %v2781, 4
    %v2783 = vmax.f32 %v2781, %v2782
    %v2784 = vrot.slane %v2783, 2
    %v2785 = vmax.f32 %v2783, %v2784
    %v2786 = vrot.slane %v2785, 1
    %v2787 = vmax.f32 %v2785, %v2786
    %v2788 = vsel %vm1705, %v2716, -inf
    %v2789 = vrot.slane %v2788, 4
    %v2790 = vmax.f32 %v2788, %v2789
    %v2791 = vrot.slane %v2790, 2
    %v2792 = vmax.f32 %v2790, %v2791
    %v2793 = vrot.slane %v2792, 1
    %v2794 = vmax.f32 %v2792, %v2793
    %v2795 = vsel %vm1705, %v2717, -inf
    %v2796 = vrot.slane %v2795, 4
    %v2797 = vmax.f32 %v2795, %v2796
    %v2798 = vrot.slane %v2797, 2
    %v2799 = vmax.f32 %v2797, %v2798
    %v2800 = vrot.slane %v2799, 1
    %v2801 = vmax.f32 %v2799, %v2800
    %v2802 = vsel %vm759, %v2724, %v2738
    %v2803 = vsel %vm759, %v2731, %v2745
    %v2804 = vsel %vm862, %v2802, %v2752
    %v2805 = vsel %vm862, %v2803, %v2759
    %v2806 = vsel %vm769, %v2804, %v2766
    %v2807 = vsel %vm769, %v2805, %v2773
    %v2808 = vsel %vm1118, %v2806, %v2780
    %v2809 = vsel %vm1118, %v2807, %v2787
    %v2810 = vsel %vm549, %v2808, %v2794
    %v2811 = vsel %vm549, %v2809, %v2801
    %v2812 = vld [vmem:[%s59] sm:$0xff]
    %v2813 = vld [vmem:[%s59 + $0x8] sm:$0xff]
    %v2814 = vld [vmem:[%s59 + $0x10] sm:$0xff]
    %v2815 = vld [vmem:[%s59 + $0x18] sm:$0xff]
    %v2816 = vld [vmem:[%s59 + $0x20] sm:$0xff]
    %v2817 = vld [vmem:[%s59 + $0x28] sm:$0xff]
    %v2818 = vld [vmem:[%s59 + $0x30] sm:$0xff]
    %v2819 = vld [vmem:[%s59 + $0x38] sm:$0xff]
    %v2820 = vld [vmem:[%s59 + $0x40] sm:$0xff]
    %v2821 = vld [vmem:[%s59 + $0x48] sm:$0xff]
    %v2822 = vld [vmem:[%s59 + $0x50] sm:$0xff]
    %v2823 = vld [vmem:[%s59 + $0x58] sm:$0xff]
    %v2824 = vld [vmem:[%s59 + $0x60] sm:$0xff]
    %v2825 = vld [vmem:[%s59 + $0x68] sm:$0xff]
    %v2826 = vld [vmem:[%s59 + $0x70] sm:$0xff]
    %v2827 = vld [vmem:[%s59 + $0x78] sm:$0xff]
    %v2828 = vld [vmem:[%s59 + $0x80] sm:$0xff]
    %v2829 = vld [vmem:[%s59 + $0x88] sm:$0xff]
    %v2830 = vld [vmem:[%s59 + $0x90] sm:$0xff]
    %v2831 = vld [vmem:[%s59 + $0x98] sm:$0xff]
    %v2832 = vld [vmem:[%s59 + $0xa0] sm:$0xff]
    %v2833 = vld [vmem:[%s59 + $0xa8] sm:$0xff]
    %v2834 = vld [vmem:[%s59 + $0xb0] sm:$0xff]
    %v2835 = vld [vmem:[%s59 + $0xb8] sm:$0xff]
    %v2836 = vld [vmem:[%s59 + $0xc0] sm:$0xff]
    %v2837 = vld [vmem:[%s59 + $0xc8] sm:$0xff]
    %v2838 = vld [vmem:[%s59 + $0xd0] sm:$0xff]
    %v2839 = vld [vmem:[%s59 + $0xd8] sm:$0xff]
    %v2840 = vld [vmem:[%s59 + $0xe0] sm:$0xff]
    %v2841 = vld [vmem:[%s59 + $0xe8] sm:$0xff]
    %v2842 = vld [vmem:[%s59 + $0xf0] sm:$0xff]
    %v2843 = vld [vmem:[%s59 + $0xf8] sm:$0xff]
    %v2844 = vld [vmem:[%s61] sm:$0x1]
    %v2846 = vlaneseq
    %v2847 = vshrl.u32 %v2846, 7
    %v2848 = vsub.s32 0, %v2847
    %v2849 = vrot.slane %v2844, %v2848
    %2851 = vmatprep.subr.mxu0 0.0
    %2852 = vmatpush1.msra.mxu0 %v2812
    %2853 = vmatprep.subr.mxu0 0.0
    %2854 = vmatpush1.msra.mxu0 %v2813
    %2855 = vmatprep.subr.mxu0 0.0
    %2856 = vmatpush1.msra.mxu0 %v2814
    %2857 = vmatprep.subr.mxu0 0.0
    %2858 = vmatpush1.msra.mxu0 %v2815
    %2859 = vmatprep.subr.mxu0 0.0
    %2860 = vmatpush1.msra.mxu0 %v2816
    %2861 = vmatprep.subr.mxu0 0.0
    %2862 = vmatpush1.msra.mxu0 %v2817
    %2863 = vmatprep.subr.mxu0 0.0
    %2864 = vmatpush1.msra.mxu0 %v2818
    %2865 = vmatprep.subr.mxu0 0.0
    %2866 = vmatpush1.msra.mxu0 %v2819
    %2867 = vmatprep.subr.mxu0 0.0
    %2868 = vmatpush1.msra.mxu0 %v2820
    %2869 = vmatprep.subr.mxu0 0.0
    %2870 = vmatpush1.msra.mxu0 %v2821
    %2871 = vmatprep.subr.mxu0 0.0
    %2872 = vmatpush1.msra.mxu0 %v2822
    %2873 = vmatprep.subr.mxu0 0.0
    %2874 = vmatpush1.msra.mxu0 %v2823
    %2875 = vmatprep.subr.mxu0 0.0
    %2876 = vmatpush1.msra.mxu0 %v2824
    %2877 = vmatprep.subr.mxu0 0.0
    %2878 = vmatpush1.msra.mxu0 %v2825
    %2879 = vmatprep.subr.mxu0 0.0
    %2880 = vmatpush1.msra.mxu0 %v2826
    %2881 = vmatprep.subr.mxu0 0.0
    %2882 = vmatpush1.msra.mxu0 %v2827
    %2883 = vmatprep.subr.mxu0 0.0
    %2884 = vmatpush1.msra.mxu0 %v2828
    %2885 = vmatprep.subr.mxu0 0.0
    %2886 = vmatpush1.msra.mxu0 %v2829
    %2887 = vmatprep.subr.mxu0 0.0
    %2888 = vmatpush1.msra.mxu0 %v2830
    %2889 = vmatprep.subr.mxu0 0.0
    %2890 = vmatpush1.msra.mxu0 %v2831
    %2891 = vmatprep.subr.mxu0 0.0
    %2892 = vmatpush1.msra.mxu0 %v2832
    %2893 = vmatprep.subr.mxu0 0.0
    %2894 = vmatpush1.msra.mxu0 %v2833
    %2895 = vmatprep.subr.mxu0 0.0
    %2896 = vmatpush1.msra.mxu0 %v2834
    %2897 = vmatprep.subr.mxu0 0.0
    %2898 = vmatpush1.msra.mxu0 %v2835
    %2899 = vmatprep.subr.mxu0 0.0
    %2900 = vmatpush1.msra.mxu0 %v2836
    %2901 = vmatprep.subr.mxu0 0.0
    %2902 = vmatpush1.msra.mxu0 %v2837
    %2903 = vmatprep.subr.mxu0 0.0
    %2904 = vmatpush1.msra.mxu0 %v2838
    %2905 = vmatprep.subr.mxu0 0.0
    %2906 = vmatpush1.msra.mxu0 %v2839
    %2907 = vmatprep.subr.mxu0 0.0
    %2908 = vmatpush1.msra.mxu0 %v2840
    %2909 = vmatprep.subr.mxu0 0.0
    %2910 = vmatpush1.msra.mxu0 %v2841
    %2911 = vmatprep.subr.mxu0 0.0
    %2912 = vmatpush1.msra.mxu0 %v2842
    %2913 = vmatprep.subr.mxu0 0.0
    %2914 = vmatpush1.msra.mxu0 %v2843
    %2915 = vmatprep.mubr.f32.mxu0 %v2811
    %2916 = vmatmul.mubr.f32.gmra.mrb[0].mxu0 %v2810
    %v2917 = vpop.f32.mrb[0].mxu0
    %v2918 = vadd.f32 %v2849, %v2917
    %v2919 = vpop.f32.mrb[0].mxu0
    %2920 = vdwg.mxu0
    %v2921 = vmax.f32 %v2918, 0.0
    %v2922 = vld [vmem:[#allocation34] sm:$0xff]
    %v2923 = vld [vmem:[#allocation34 + $0x8] sm:$0xff]
    %v2924 = vld [vmem:[#allocation34 + $0x10] sm:$0xff]
    %v2925 = vld [vmem:[#allocation34 + $0x18] sm:$0xff]
    %v2926 = vld [vmem:[#allocation34 + $0x20] sm:$0xff]
    %v2927 = vld [vmem:[#allocation34 + $0x28] sm:$0xff]
    %v2928 = vld [vmem:[#allocation34 + $0x30] sm:$0xff]
    %v2929 = vld [vmem:[#allocation34 + $0x38] sm:$0xff]
    %v2930 = vld [vmem:[#allocation34 + $0x40] sm:$0xff]
    %v2931 = vld [vmem:[#allocation34 + $0x48] sm:$0xff]
    %v2932 = vld [vmem:[#allocation34 + $0x50] sm:$0xff]
    %v2933 = vld [vmem:[#allocation34 + $0x58] sm:$0xff]
    %v2934 = vld [vmem:[#allocation34 + $0x60] sm:$0xff]
    %v2935 = vld [vmem:[#allocation34 + $0x68] sm:$0xff]
    %v2936 = vld [vmem:[#allocation34 + $0x70] sm:$0xff]
    %v2937 = vld [vmem:[#allocation34 + $0x78] sm:$0xff]
    %v2938 = vld [vmem:[#allocation34 + $0x80] sm:$0xff]
    %v2939 = vld [vmem:[#allocation34 + $0x88] sm:$0xff]
    %v2940 = vld [vmem:[#allocation34 + $0x90] sm:$0xff]
    %v2941 = vld [vmem:[#allocation34 + $0x98] sm:$0xff]
    %v2942 = vld [vmem:[#allocation34 + $0xa0] sm:$0xff]
    %v2943 = vld [vmem:[#allocation34 + $0xa8] sm:$0xff]
    %v2944 = vld [vmem:[#allocation34 + $0xb0] sm:$0xff]
    %v2945 = vld [vmem:[#allocation34 + $0xb8] sm:$0xff]
    %v2946 = vld [vmem:[#allocation34 + $0xc0] sm:$0xff]
    %v2947 = vld [vmem:[#allocation34 + $0xc8] sm:$0xff]
    %v2948 = vld [vmem:[#allocation34 + $0xd0] sm:$0xff]
    %v2949 = vld [vmem:[#allocation34 + $0xd8] sm:$0xff]
    %v2950 = vld [vmem:[#allocation34 + $0xe0] sm:$0xff]
    %v2951 = vld [vmem:[#allocation34 + $0xe8] sm:$0xff]
    %v2952 = vld [vmem:[#allocation34 + $0xf0] sm:$0xff]
    %v2953 = vld [vmem:[#allocation34 + $0xf8] sm:$0xff]
    %v2954 = vld [vmem:[%s65] sm:$0x1]
    %v2956 = vlaneseq
    %v2957 = vshrl.u32 %v2956, 7
    %v2958 = vsub.s32 0, %v2957
    %v2959 = vrot.slane %v2954, %v2958
    %2961 = vmatprep.subr.mxu0 0.0
    %2962 = vmatpush1.msra.mxu0 %v2922
    %2963 = vmatprep.subr.mxu0 0.0
    %2964 = vmatpush1.msra.mxu0 %v2923
    %2965 = vmatprep.subr.mxu0 0.0
    %2966 = vmatpush1.msra.mxu0 %v2924
    %2967 = vmatprep.subr.mxu0 0.0
    %2968 = vmatpush1.msra.mxu0 %v2925
    %2969 = vmatprep.subr.mxu0 0.0
    %2970 = vmatpush1.msra.mxu0 %v2926
    %2971 = vmatprep.subr.mxu0 0.0
    %2972 = vmatpush1.msra.mxu0 %v2927
    %2973 = vmatprep.subr.mxu0 0.0
    %2974 = vmatpush1.msra.mxu0 %v2928
    %2975 = vmatprep.subr.mxu0 0.0
    %2976 = vmatpush1.msra.mxu0 %v2929
    %2977 = vmatprep.subr.mxu0 0.0
    %2978 = vmatpush1.msra.mxu0 %v2930
    %2979 = vmatprep.subr.mxu0 0.0
    %2980 = vmatpush1.msra.mxu0 %v2931
    %2981 = vmatprep.subr.mxu0 0.0
    %2982 = vmatpush1.msra.mxu0 %v2932
    %2983 = vmatprep.subr.mxu0 0.0
    %2984 = vmatpush1.msra.mxu0 %v2933
    %2985 = vmatprep.subr.mxu0 0.0
    %2986 = vmatpush1.msra.mxu0 %v2934
    %2987 = vmatprep.subr.mxu0 0.0
    %2988 = vmatpush1.msra.mxu0 %v2935
    %2989 = vmatprep.subr.mxu0 0.0
    %2990 = vmatpush1.msra.mxu0 %v2936
    %2991 = vmatprep.subr.mxu0 0.0
    %2992 = vmatpush1.msra.mxu0 %v2937
    %2993 = vmatprep.subr.mxu0 0.0
    %2994 = vmatpush1.msra.mxu0 %v2938
    %2995 = vmatprep.subr.mxu0 0.0
    %2996 = vmatpush1.msra.mxu0 %v2939
    %2997 = vmatprep.subr.mxu0 0.0
    %2998 = vmatpush1.msra.mxu0 %v2940
    %2999 = vmatprep.subr.mxu0 0.0
    %3000 = vmatpush1.msra.mxu0 %v2941
    %3001 = vmatprep.subr.mxu0 0.0
    %3002 = vmatpush1.msra.mxu0 %v2942
    %3003 = vmatprep.subr.mxu0 0.0
    %3004 = vmatpush1.msra.mxu0 %v2943
    %3005 = vmatprep.subr.mxu0 0.0
    %3006 = vmatpush1.msra.mxu0 %v2944
    %3007 = vmatprep.subr.mxu0 0.0
    %3008 = vmatpush1.msra.mxu0 %v2945
    %3009 = vmatprep.subr.mxu0 0.0
    %3010 = vmatpush1.msra.mxu0 %v2946
    %3011 = vmatprep.subr.mxu0 0.0
    %3012 = vmatpush1.msra.mxu0 %v2947
    %3013 = vmatprep.subr.mxu0 0.0
    %3014 = vmatpush1.msra.mxu0 %v2948
    %3015 = vmatprep.subr.mxu0 0.0
    %3016 = vmatpush1.msra.mxu0 %v2949
    %3017 = vmatprep.subr.mxu0 0.0
    %3018 = vmatpush1.msra.mxu0 %v2950
    %3019 = vmatprep.subr.mxu0 0.0
    %3020 = vmatpush1.msra.mxu0 %v2951
    %3021 = vmatprep.subr.mxu0 0.0
    %3022 = vmatpush1.msra.mxu0 %v2952
    %3023 = vmatprep.subr.mxu0 0.0
    %3024 = vmatpush1.msra.mxu0 %v2953
    %3025 = vmatprep.mubr.f32.mxu0 %v2811
    %3026 = vmatmul.mubr.f32.gmra.mrb[0].mxu0 %v2810
    %v3027 = vpop.f32.mrb[0].mxu0
    %v3028 = vadd.f32 %v2959, %v3027
    %v3029 = vpop.f32.mrb[0].mxu0
    %3030 = vdwg.mxu0
    %v3031 = vmax.f32 %v3028, 0.0
    %v3033 = vrot.slane %v3031, 7
    %v3035 = vsel %vm759, 0.0, %v3033
    %v3036 = vsel %vm1118, %v3035, 0.0
    %v3038 = vrot.slane %v3036, 1
    %v3040 = vrot.slane %v3036, 2
    %v3042 = vrot.slane %v3031, 2
    %v3044 = vsel %vm759, 0.0, %v3042
    %v3045 = vsel %vm1118, %v3044, 0.0
    %v3047 = vrot.slane %v3045, 1
    %v3048 = vrot.slane %v3045, 2
    %v3049 = vrot.slane %v3045, 5
    %v3050 = vrot.slane %v3047, 5
    %v3051 = vrot.slane %v3048, 5
    %v3055 = vsel %vm769, %v3036, %v3049
    %v3056 = vsel %vm769, %v3038, %v3050
    %v3057 = vsel %vm769, %v3040, %v3051
    %v3058 = vld [vmem:[%s67] sm:$0xff]
    %v3059 = vld [vmem:[%s67 + $0x8] sm:$0xff]
    %v3060 = vld [vmem:[%s67 + $0x10] sm:$0xff]
    %v3061 = vld [vmem:[%s67 + $0x18] sm:$0xff]
    %v3062 = vld [vmem:[%s67 + $0x20] sm:$0xff]
    %v3063 = vld [vmem:[%s67 + $0x28] sm:$0xff]
    %v3064 = vld [vmem:[%s67 + $0x30] sm:$0xff]
    %v3065 = vld [vmem:[%s67 + $0x38] sm:$0xff]
    %v3066 = vld [vmem:[%s67 + $0x40] sm:$0xff]
    %v3067 = vld [vmem:[%s67 + $0x48] sm:$0xff]
    %v3068 = vld [vmem:[%s67 + $0x50] sm:$0xff]
    %v3069 = vld [vmem:[%s67 + $0x58] sm:$0xff]
    %v3070 = vld [vmem:[%s67 + $0x60] sm:$0xff]
    %v3071 = vld [vmem:[%s67 + $0x68] sm:$0xff]
    %v3072 = vld [vmem:[%s67 + $0x70] sm:$0xff]
    %v3073 = vld [vmem:[%s67 + $0x78] sm:$0xff]
    %v3074 = vld [vmem:[%s67 + $0x80] sm:$0xff]
    %v3075 = vld [vmem:[%s67 + $0x88] sm:$0xff]
    %v3076 = vld [vmem:[%s67 + $0x90] sm:$0xff]
    %v3077 = vld [vmem:[%s67 + $0x98] sm:$0xff]
    %v3078 = vld [vmem:[%s67 + $0xa0] sm:$0xff]
    %v3079 = vld [vmem:[%s67 + $0xa8] sm:$0xff]
    %v3080 = vld [vmem:[%s67 + $0xb0] sm:$0xff]
    %v3081 = vld [vmem:[%s67 + $0xb8] sm:$0xff]
    %v3082 = vld [vmem:[%s67 + $0xc0] sm:$0xff]
    %v3083 = vld [vmem:[%s67 + $0xc8] sm:$0xff]
    %v3084 = vld [vmem:[%s67 + $0xd0] sm:$0xff]
    %v3085 = vld [vmem:[%s67 + $0xd8] sm:$0xff]
    %v3086 = vld [vmem:[%s67 + $0xe0] sm:$0xff]
    %v3087 = vld [vmem:[%s67 + $0xe8] sm:$0xff]
    %v3088 = vld [vmem:[%s67 + $0xf0] sm:$0xff]
    %v3089 = vld [vmem:[%s67 + $0xf8] sm:$0xff]
    %v3090 = vld [vmem:[%s67 + $0x100] sm:$0xff]
    %v3091 = vld [vmem:[%s67 + $0x108] sm:$0xff]
    %v3092 = vld [vmem:[%s67 + $0x110] sm:$0xff]
    %v3093 = vld [vmem:[%s67 + $0x118] sm:$0xff]
    %v3094 = vld [vmem:[%s67 + $0x120] sm:$0xff]
    %v3095 = vld [vmem:[%s67 + $0x128] sm:$0xff]
    %v3096 = vld [vmem:[%s67 + $0x130] sm:$0xff]
    %v3097 = vld [vmem:[%s67 + $0x138] sm:$0xff]
    %v3098 = vld [vmem:[%s67 + $0x140] sm:$0xff]
    %v3099 = vld [vmem:[%s67 + $0x148] sm:$0xff]
    %v3100 = vld [vmem:[%s67 + $0x150] sm:$0xff]
    %v3101 = vld [vmem:[%s67 + $0x158] sm:$0xff]
    %v3102 = vld [vmem:[%s67 + $0x160] sm:$0xff]
    %v3103 = vld [vmem:[%s67 + $0x168] sm:$0xff]
    %v3104 = vld [vmem:[%s67 + $0x170] sm:$0xff]
    %v3105 = vld [vmem:[%s67 + $0x178] sm:$0xff]
    %v3106 = vld [vmem:[%s69] sm:$0x1]
    %v3108 = vlaneseq
    %v3109 = vshrl.u32 %v3108, 7
    %v3110 = vsub.s32 0, %v3109
    %v3111 = vrot.slane %v3106, %v3110
    %3113 = vmatprep.subr.mxu0 0.0
    %3114 = vmatpush1.msra.mxu0 %v3058
    %3115 = vmatprep.subr.mxu0 0.0
    %3116 = vmatpush1.msra.mxu0 %v3059
    %3117 = vmatprep.subr.mxu0 0.0
    %3118 = vmatpush1.msra.mxu0 %v3060
    %3119 = vmatprep.subr.mxu0 0.0
    %3120 = vmatpush1.msra.mxu0 %v3061
    %3121 = vmatprep.subr.mxu0 0.0
    %3122 = vmatpush1.msra.mxu0 %v3062
    %3123 = vmatprep.subr.mxu0 0.0
    %3124 = vmatpush1.msra.mxu0 %v3063
    %3125 = vmatprep.subr.mxu0 0.0
    %3126 = vmatpush1.msra.mxu0 %v3064
    %3127 = vmatprep.subr.mxu0 0.0
    %3128 = vmatpush1.msra.mxu0 %v3065
    %3129 = vmatprep.subr.mxu0 0.0
    %3130 = vmatpush1.msra.mxu0 %v3066
    %3131 = vmatprep.subr.mxu0 0.0
    %3132 = vmatpush1.msra.mxu0 %v3067
    %3133 = vmatprep.subr.mxu0 0.0
    %3134 = vmatpush1.msra.mxu0 %v3068
    %3135 = vmatprep.subr.mxu0 0.0
    %3136 = vmatpush1.msra.mxu0 %v3069
    %3137 = vmatprep.subr.mxu0 0.0
    %3138 = vmatpush1.msra.mxu0 %v3070
    %3139 = vmatprep.subr.mxu0 0.0
    %3140 = vmatpush1.msra.mxu0 %v3071
    %3141 = vmatprep.subr.mxu0 0.0
    %3142 = vmatpush1.msra.mxu0 %v3072
    %3143 = vmatprep.subr.mxu0 0.0
    %3144 = vmatpush1.msra.mxu0 %v3073
    %3145 = vmatprep.subr.mxu0 0.0
    %3146 = vmatpush1.msra.mxu0 %v3074
    %3147 = vmatprep.subr.mxu0 0.0
    %3148 = vmatpush1.msra.mxu0 %v3075
    %3149 = vmatprep.subr.mxu0 0.0
    %3150 = vmatpush1.msra.mxu0 %v3076
    %3151 = vmatprep.subr.mxu0 0.0
    %3152 = vmatpush1.msra.mxu0 %v3077
    %3153 = vmatprep.subr.mxu0 0.0
    %3154 = vmatpush1.msra.mxu0 %v3078
    %3155 = vmatprep.subr.mxu0 0.0
    %3156 = vmatpush1.msra.mxu0 %v3079
    %3157 = vmatprep.subr.mxu0 0.0
    %3158 = vmatpush1.msra.mxu0 %v3080
    %3159 = vmatprep.subr.mxu0 0.0
    %3160 = vmatpush1.msra.mxu0 %v3081
    %3161 = vmatprep.subr.mxu0 0.0
    %3162 = vmatpush1.msra.mxu0 %v3082
    %3163 = vmatprep.subr.mxu0 0.0
    %3164 = vmatpush1.msra.mxu0 %v3083
    %3165 = vmatprep.subr.mxu0 0.0
    %3166 = vmatpush1.msra.mxu0 %v3084
    %3167 = vmatprep.subr.mxu0 0.0
    %3168 = vmatpush1.msra.mxu0 %v3085
    %3169 = vmatprep.subr.mxu0 0.0
    %3170 = vmatpush1.msra.mxu0 %v3086
    %3171 = vmatprep.subr.mxu0 0.0
    %3172 = vmatpush1.msra.mxu0 %v3087
    %3173 = vmatprep.subr.mxu0 0.0
    %3174 = vmatpush1.msra.mxu0 %v3088
    %3175 = vmatprep.subr.mxu0 0.0
    %3176 = vmatpush1.msra.mxu0 %v3089
    %3177 = vmatprep.mubr.f32.mxu0 %v3056
    %3178 = vmatmul.mubr.f32.gmra.mrb[0].mxu0 %v3055
    %v3179 = vpop.f32.mrb[0].mxu0
    %v3180 = vadd.f32 %v3111, %v3179
    %v3181 = vpop.f32.mrb[0].mxu0
    %3182 = vdwg.mxu0
    %3183 = vmatprep.subr.mxu0 0.0
    %3184 = vmatpush1.msra.mxu0 %v3090
    %3185 = vmatprep.subr.mxu0 0.0
    %3186 = vmatpush1.msra.mxu0 %v3091
    %3187 = vmatprep.subr.mxu0 0.0
    %3188 = vmatpush1.msra.mxu0 %v3092
    %3189 = vmatprep.subr.mxu0 0.0
    %3190 = vmatpush1.msra.mxu0 %v3093
    %3191 = vmatprep.subr.mxu0 0.0
    %3192 = vmatpush1.msra.mxu0 %v3094
    %3193 = vmatprep.subr.mxu0 0.0
    %3194 = vmatpush1.msra.mxu0 %v3095
    %3195 = vmatprep.subr.mxu0 0.0
    %3196 = vmatpush1.msra.mxu0 %v3096
    %3197 = vmatprep.subr.mxu0 0.0
    %3198 = vmatpush1.msra.mxu0 %v3097
    %3199 = vmatprep.subr.mxu0 0.0
    %3200 = vmatpush1.msra.mxu0 %v3098
    %3201 = vmatprep.subr.mxu0 0.0
    %3202 = vmatpush1.msra.mxu0 %v3099
    %3203 = vmatprep.subr.mxu0 0.0
    %3204 = vmatpush1.msra.mxu0 %v3100
    %3205 = vmatprep.subr.mxu0 0.0
    %3206 = vmatpush1.msra.mxu0 %v3101
    %3207 = vmatprep.subr.mxu0 0.0
    %3208 = vmatpush1.msra.mxu0 %v3102
    %3209 = vmatprep.subr.mxu0 0.0
    %3210 = vmatpush1.msra.mxu0 %v3103
    %3211 = vmatprep.subr.mxu0 0.0
    %3212 = vmatpush1.msra.mxu0 %v3104
    %3213 = vmatprep.subr.mxu0 0.0
    %3214 = vmatpush1.msra.mxu0 %v3105
    %3215 = vmatprep.subr.mxu0 0.0
    %3216 = vmatpush1.msra.mxu0 0.0
    %3217 = vmatprep.subr.mxu0 0.0
    %3218 = vmatpush1.msra.mxu0 0.0
    %3219 = vmatprep.subr.mxu0 0.0
    %3220 = vmatpush1.msra.mxu0 0.0
    %3221 = vmatprep.subr.mxu0 0.0
    %3222 = vmatpush1.msra.mxu0 0.0
    %3223 = vmatprep.subr.mxu0 0.0
    %3224 = vmatpush1.msra.mxu0 0.0
    %3225 = vmatprep.subr.mxu0 0.0
    %3226 = vmatpush1.msra.mxu0 0.0
    %3227 = vmatprep.subr.mxu0 0.0
    %3228 = vmatpush1.msra.mxu0 0.0
    %3229 = vmatprep.subr.mxu0 0.0
    %3230 = vmatpush1.msra.mxu0 0.0
    %3231 = vmatprep.subr.mxu0 0.0
    %3232 = vmatpush1.msra.mxu0 0.0
    %3233 = vmatprep.subr.mxu0 0.0
    %3234 = vmatpush1.msra.mxu0 0.0
    %3235 = vmatprep.subr.mxu0 0.0
    %3236 = vmatpush1.msra.mxu0 0.0
    %3237 = vmatprep.subr.mxu0 0.0
    %3238 = vmatpush1.msra.mxu0 0.0
    %3239 = vmatprep.subr.mxu0 0.0
    %3240 = vmatpush1.msra.mxu0 0.0
    %3241 = vmatprep.subr.mxu0 0.0
    %3242 = vmatpush1.msra.mxu0 0.0
    %3243 = vmatprep.subr.mxu0 0.0
    %3244 = vmatpush1.msra.mxu0 0.0
    %3245 = vmatprep.subr.mxu0 0.0
    %3246 = vmatpush1.msra.mxu0 0.0
    %3247 = vmatprep.mubr.f32.mxu0 0.0
    %3248 = vmatmul.mubr.f32.gmra.mrb[0].mxu0 %v3057
    %v3249 = vpop.f32.mrb[0].mxu0
    %v3250 = vadd.f32 %v3180, %v3249
    %v3251 = vpop.f32.mrb[0].mxu0
    %3252 = vdwg.mxu0
    %v3253 = vmax.f32 %v3250, 0.0
    %v3254 = vld [vmem:[#allocation35] sm:$0xff]
    %v3255 = vld [vmem:[#allocation35 + $0x8] sm:$0xff]
    %v3256 = vld [vmem:[#allocation35 + $0x10] sm:$0xff]
    %v3257 = vld [vmem:[#allocation35 + $0x18] sm:$0xff]
    %v3258 = vld [vmem:[#allocation35 + $0x20] sm:$0xff]
    %v3259 = vld [vmem:[#allocation35 + $0x28] sm:$0xff]
    %v3260 = vld [vmem:[#allocation35 + $0x30] sm:$0xff]
    %v3261 = vld [vmem:[#allocation35 + $0x38] sm:$0xff]
    %v3262 = vld [vmem:[#allocation35 + $0x40] sm:$0xff]
    %v3263 = vld [vmem:[#allocation35 + $0x48] sm:$0xff]
    %v3264 = vld [vmem:[#allocation35 + $0x50] sm:$0xff]
    %v3265 = vld [vmem:[#allocation35 + $0x58] sm:$0xff]
    %v3266 = vld [vmem:[#allocation35 + $0x60] sm:$0xff]
    %v3267 = vld [vmem:[#allocation35 + $0x68] sm:$0xff]
    %v3268 = vld [vmem:[#allocation35 + $0x70] sm:$0xff]
    %v3269 = vld [vmem:[#allocation35 + $0x78] sm:$0xff]
    %v3270 = vld [vmem:[#allocation35 + $0x80] sm:$0xff]
    %v3271 = vld [vmem:[#allocation35 + $0x88] sm:$0xff]
    %v3272 = vld [vmem:[#allocation35 + $0x90] sm:$0xff]
    %v3273 = vld [vmem:[#allocation35 + $0x98] sm:$0xff]
    %v3274 = vld [vmem:[#allocation35 + $0xa0] sm:$0xff]
    %v3275 = vld [vmem:[#allocation35 + $0xa8] sm:$0xff]
    %v3276 = vld [vmem:[#allocation35 + $0xb0] sm:$0xff]
    %v3277 = vld [vmem:[#allocation35 + $0xb8] sm:$0xff]
    %v3278 = vld [vmem:[#allocation35 + $0xc0] sm:$0xff]
    %v3279 = vld [vmem:[#allocation35 + $0xc8] sm:$0xff]
    %v3280 = vld [vmem:[#allocation35 + $0xd0] sm:$0xff]
    %v3281 = vld [vmem:[#allocation35 + $0xd8] sm:$0xff]
    %v3282 = vld [vmem:[#allocation35 + $0xe0] sm:$0xff]
    %v3283 = vld [vmem:[#allocation35 + $0xe8] sm:$0xff]
    %v3284 = vld [vmem:[#allocation35 + $0xf0] sm:$0xff]
    %v3285 = vld [vmem:[#allocation35 + $0xf8] sm:$0xff]
    %v3286 = vld [vmem:[%s73] sm:$0x1]
    %v3288 = vlaneseq
    %v3289 = vshrl.u32 %v3288, 7
    %v3290 = vsub.s32 0, %v3289
    %v3291 = vrot.slane %v3286, %v3290
    %3293 = vmatprep.subr.mxu0 0.0
    %3294 = vmatpush1.msra.mxu0 %v3254
    %3295 = vmatprep.subr.mxu0 0.0
    %3296 = vmatpush1.msra.mxu0 %v3255
    %3297 = vmatprep.subr.mxu0 0.0
    %3298 = vmatpush1.msra.mxu0 %v3256
    %3299 = vmatprep.subr.mxu0 0.0
    %3300 = vmatpush1.msra.mxu0 %v3257
    %3301 = vmatprep.subr.mxu0 0.0
    %3302 = vmatpush1.msra.mxu0 %v3258
    %3303 = vmatprep.subr.mxu0 0.0
    %3304 = vmatpush1.msra.mxu0 %v3259
    %3305 = vmatprep.subr.mxu0 0.0
    %3306 = vmatpush1.msra.mxu0 %v3260
    %3307 = vmatprep.subr.mxu0 0.0
    %3308 = vmatpush1.msra.mxu0 %v3261
    %3309 = vmatprep.subr.mxu0 0.0
    %3310 = vmatpush1.msra.mxu0 %v3262
    %3311 = vmatprep.subr.mxu0 0.0
    %3312 = vmatpush1.msra.mxu0 %v3263
    %3313 = vmatprep.subr.mxu0 0.0
    %3314 = vmatpush1.msra.mxu0 %v3264
    %3315 = vmatprep.subr.mxu0 0.0
    %3316 = vmatpush1.msra.mxu0 %v3265
    %3317 = vmatprep.subr.mxu0 0.0
    %3318 = vmatpush1.msra.mxu0 %v3266
    %3319 = vmatprep.subr.mxu0 0.0
    %3320 = vmatpush1.msra.mxu0 %v3267
    %3321 = vmatprep.subr.mxu0 0.0
    %3322 = vmatpush1.msra.mxu0 %v3268
    %3323 = vmatprep.subr.mxu0 0.0
    %3324 = vmatpush1.msra.mxu0 %v3269
    %3325 = vmatprep.subr.mxu0 0.0
    %3326 = vmatpush1.msra.mxu0 %v3270
    %3327 = vmatprep.subr.mxu0 0.0
    %3328 = vmatpush1.msra.mxu0 %v3271
    %3329 = vmatprep.subr.mxu0 0.0
    %3330 = vmatpush1.msra.mxu0 %v3272
    %3331 = vmatprep.subr.mxu0 0.0
    %3332 = vmatpush1.msra.mxu0 %v3273
    %3333 = vmatprep.subr.mxu0 0.0
    %3334 = vmatpush1.msra.mxu0 %v3274
    %3335 = vmatprep.subr.mxu0 0.0
    %3336 = vmatpush1.msra.mxu0 %v3275
    %3337 = vmatprep.subr.mxu0 0.0
    %3338 = vmatpush1.msra.mxu0 %v3276
    %3339 = vmatprep.subr.mxu0 0.0
    %3340 = vmatpush1.msra.mxu0 %v3277
    %3341 = vmatprep.subr.mxu0 0.0
    %3342 = vmatpush1.msra.mxu0 %v3278
    %3343 = vmatprep.subr.mxu0 0.0
    %3344 = vmatpush1.msra.mxu0 %v3279
    %3345 = vmatprep.subr.mxu0 0.0
    %3346 = vmatpush1.msra.mxu0 %v3280
    %3347 = vmatprep.subr.mxu0 0.0
    %3348 = vmatpush1.msra.mxu0 %v3281
    %3349 = vmatprep.subr.mxu0 0.0
    %3350 = vmatpush1.msra.mxu0 %v3282
    %3351 = vmatprep.subr.mxu0 0.0
    %3352 = vmatpush1.msra.mxu0 %v3283
    %3353 = vmatprep.subr.mxu0 0.0
    %3354 = vmatpush1.msra.mxu0 %v3284
    %3355 = vmatprep.subr.mxu0 0.0
    %3356 = vmatpush1.msra.mxu0 %v3285
    %3357 = vmatprep.mubr.f32.mxu0 %v2811
    %3358 = vmatmul.mubr.f32.gmra.mrb[0].mxu0 %v2810
    %v3359 = vpop.f32.mrb[0].mxu0
    %v3360 = vadd.f32 %v3291, %v3359
    %v3361 = vpop.f32.mrb[0].mxu0
    %3362 = vdwg.mxu0
    %v3363 = vmax.f32 %v3360, 0.0
    %v3365 = vrot.slane %v3363, 6
    %v3367 = vsel %vm862, 0.0, %v3365
    %v3368 = vsel %vm549, %v3367, 0.0
    %v3370 = vrot.slane %v3368, 1
    %v3372 = vrot.slane %v3368, 2
    %v3374 = vrot.slane %v3368, 3
    %v3376 = vrot.slane %v3368, 4
    %v3378 = vrot.slane %v3363, 1
    %v3380 = vsel %vm862, 0.0, %v3378
    %v3381 = vsel %vm549, %v3380, 0.0
    %v3383 = vrot.slane %v3381, 1
    %v3384 = vrot.slane %v3381, 2
    %v3385 = vrot.slane %v3381, 3
    %v3386 = vrot.slane %v3381, 4
    %v3387 = vrot.slane %v3381, 5
    %v3388 = vrot.slane %v3383, 5
    %v3389 = vrot.slane %v3384, 5
    %v3390 = vrot.slane %v3385, 5
    %v3391 = vrot.slane %v3386, 5
    %v3397 = vsel %vm769, %v3368, %v3387
    %v3398 = vsel %vm769, %v3370, %v3388
    %v3399 = vsel %vm769, %v3372, %v3389
    %v3400 = vsel %vm769, %v3374, %v3390
    %v3401 = vsel %vm769, %v3376, %v3391
    %v3402 = vld [vmem:[%s75] sm:$0xff]
    %v3403 = vld [vmem:[%s75 + $0x8] sm:$0xff]
    %v3404 = vld [vmem:[%s75 + $0x10] sm:$0xff]
    %v3405 = vld [vmem:[%s75 + $0x18] sm:$0xff]
    %v3406 = vld [vmem:[%s75 + $0x20] sm:$0xff]
    %v3407 = vld [vmem:[%s75 + $0x28] sm:$0xff]
    %v3408 = vld [vmem:[%s75 + $0x30] sm:$0xff]
    %v3409 = vld [vmem:[%s75 + $0x38] sm:$0xff]
    %v3410 = vld [vmem:[%s75 + $0x40] sm:$0xff]
    %v3411 = vld [vmem:[%s75 + $0x48] sm:$0xff]
    %v3412 = vld [vmem:[%s75 + $0x50] sm:$0xff]
    %v3413 = vld [vmem:[%s75 + $0x58] sm:$0xff]
    %v3414 = vld [vmem:[%s75 + $0x60] sm:$0xff]
    %v3415 = vld [vmem:[%s75 + $0x68] sm:$0xff]
    %v3416 = vld [vmem:[%s75 + $0x70] sm:$0xff]
    %v3417 = vld [vmem:[%s75 + $0x78] sm:$0xff]
    %v3418 = vld [vmem:[%s75 + $0x80] sm:$0xff]
    %v3419 = vld [vmem:[%s75 + $0x88] sm:$0xff]
    %v3420 = vld [vmem:[%s75 + $0x90] sm:$0xff]
    %v3421 = vld [vmem:[%s75 + $0x98] sm:$0xff]
    %v3422 = vld [vmem:[%s75 + $0xa0] sm:$0xff]
    %v3423 = vld [vmem:[%s75 + $0xa8] sm:$0xff]
    %v3424 = vld [vmem:[%s75 + $0xb0] sm:$0xff]
    %v3425 = vld [vmem:[%s75 + $0xb8] sm:$0xff]
    %v3426 = vld [vmem:[%s75 + $0xc0] sm:$0xff]
    %v3427 = vld [vmem:[%s75 + $0xc8] sm:$0xff]
    %v3428 = vld [vmem:[%s75 + $0xd0] sm:$0xff]
    %v3429 = vld [vmem:[%s75 + $0xd8] sm:$0xff]
    %v3430 = vld [vmem:[%s75 + $0xe0] sm:$0xff]
    %v3431 = vld [vmem:[%s75 + $0xe8] sm:$0xff]
    %v3432 = vld [vmem:[%s75 + $0xf0] sm:$0xff]
    %v3433 = vld [vmem:[%s75 + $0xf8] sm:$0xff]
    %v3434 = vld [vmem:[%s75 + $0x100] sm:$0xff]
    %v3435 = vld [vmem:[%s75 + $0x108] sm:$0xff]
    %v3436 = vld [vmem:[%s75 + $0x110] sm:$0xff]
    %v3437 = vld [vmem:[%s75 + $0x118] sm:$0xff]
    %v3438 = vld [vmem:[%s75 + $0x120] sm:$0xff]
    %v3439 = vld [vmem:[%s75 + $0x128] sm:$0xff]
    %v3440 = vld [vmem:[%s75 + $0x130] sm:$0xff]
    %v3441 = vld [vmem:[%s75 + $0x138] sm:$0xff]
    %v3442 = vld [vmem:[%s75 + $0x140] sm:$0xff]
    %v3443 = vld [vmem:[%s75 + $0x148] sm:$0xff]
    %v3444 = vld [vmem:[%s75 + $0x150] sm:$0xff]
    %v3445 = vld [vmem:[%s75 + $0x158] sm:$0xff]
    %v3446 = vld [vmem:[%s75 + $0x160] sm:$0xff]
    %v3447 = vld [vmem:[%s75 + $0x168] sm:$0xff]
    %v3448 = vld [vmem:[%s75 + $0x170] sm:$0xff]
    %v3449 = vld [vmem:[%s75 + $0x178] sm:$0xff]
    %v3450 = vld [vmem:[%s75 + $0x180] sm:$0xff]
    %v3451 = vld [vmem:[%s75 + $0x188] sm:$0xff]
    %v3452 = vld [vmem:[%s75 + $0x190] sm:$0xff]
    %v3453 = vld [vmem:[%s75 + $0x198] sm:$0xff]
    %v3454 = vld [vmem:[%s75 + $0x1a0] sm:$0xff]
    %v3455 = vld [vmem:[%s75 + $0x1a8] sm:$0xff]
    %v3456 = vld [vmem:[%s75 + $0x1b0] sm:$0xff]
    %v3457 = vld [vmem:[%s75 + $0x1b8] sm:$0xff]
    %v3458 = vld [vmem:[%s75 + $0x1c0] sm:$0xff]
    %v3459 = vld [vmem:[%s75 + $0x1c8] sm:$0xff]
    %v3460 = vld [vmem:[%s75 + $0x1d0] sm:$0xff]
    %v3461 = vld [vmem:[%s75 + $0x1d8] sm:$0xff]
    %v3462 = vld [vmem:[%s75 + $0x1e0] sm:$0xff]
    %v3463 = vld [vmem:[%s75 + $0x1e8] sm:$0xff]
    %v3464 = vld [vmem:[%s75 + $0x1f0] sm:$0xff]
    %v3465 = vld [vmem:[%s75 + $0x1f8] sm:$0xff]
    %v3466 = vld [vmem:[%s75 + $0x200] sm:$0xff]
    %v3467 = vld [vmem:[%s75 + $0x208] sm:$0xff]
    %v3468 = vld [vmem:[%s75 + $0x210] sm:$0xff]
    %v3469 = vld [vmem:[%s75 + $0x218] sm:$0xff]
    %v3470 = vld [vmem:[%s75 + $0x220] sm:$0xff]
    %v3471 = vld [vmem:[%s75 + $0x228] sm:$0xff]
    %v3472 = vld [vmem:[%s75 + $0x230] sm:$0xff]
    %v3473 = vld [vmem:[%s75 + $0x238] sm:$0xff]
    %v3474 = vld [vmem:[%s75 + $0x240] sm:$0xff]
    %v3475 = vld [vmem:[%s75 + $0x248] sm:$0xff]
    %v3476 = vld [vmem:[%s75 + $0x250] sm:$0xff]
    %v3477 = vld [vmem:[%s75 + $0x258] sm:$0xff]
    %v3478 = vld [vmem:[%s75 + $0x260] sm:$0xff]
    %v3479 = vld [vmem:[%s75 + $0x268] sm:$0xff]
    %v3480 = vld [vmem:[%s75 + $0x270] sm:$0xff]
    %v3481 = vld [vmem:[%s75 + $0x278] sm:$0xff]
    %v3482 = vld [vmem:[%s77] sm:$0x1]
    %v3484 = vlaneseq
    %v3485 = vshrl.u32 %v3484, 7
    %v3486 = vsub.s32 0, %v3485
    %v3487 = vrot.slane %v3482, %v3486
    %3489 = vmatprep.subr.mxu0 0.0
    %3490 = vmatpush1.msra.mxu0 %v3402
    %3491 = vmatprep.subr.mxu0 0.0
    %3492 = vmatpush1.msra.mxu0 %v3403
    %3493 = vmatprep.subr.mxu0 0.0
    %3494 = vmatpush1.msra.mxu0 %v3404
    %3495 = vmatprep.subr.mxu0 0.0
    %3496 = vmatpush1.msra.mxu0 %v3405
    %3497 = vmatprep.subr.mxu0 0.0
    %3498 = vmatpush1.msra.mxu0 %v3406
    %3499 = vmatprep.subr.mxu0 0.0
    %3500 = vmatpush1.msra.mxu0 %v3407
    %3501 = vmatprep.subr.mxu0 0.0
    %3502 = vmatpush1.msra.mxu0 %v3408
    %3503 = vmatprep.subr.mxu0 0.0
    %3504 = vmatpush1.msra.mxu0 %v3409
    %3505 = vmatprep.subr.mxu0 0.0
    %3506 = vmatpush1.msra.mxu0 %v3410
    %3507 = vmatprep.subr.mxu0 0.0
    %3508 = vmatpush1.msra.mxu0 %v3411
    %3509 = vmatprep.subr.mxu0 0.0
    %3510 = vmatpush1.msra.mxu0 %v3412
    %3511 = vmatprep.subr.mxu0 0.0
    %3512 = vmatpush1.msra.mxu0 %v3413
    %3513 = vmatprep.subr.mxu0 0.0
    %3514 = vmatpush1.msra.mxu0 %v3414
    %3515 = vmatprep.subr.mxu0 0.0
    %3516 = vmatpush1.msra.mxu0 %v3415
    %3517 = vmatprep.subr.mxu0 0.0
    %3518 = vmatpush1.msra.mxu0 %v3416
    %3519 = vmatprep.subr.mxu0 0.0
    %3520 = vmatpush1.msra.mxu0 %v3417
    %3521 = vmatprep.subr.mxu0 0.0
    %3522 = vmatpush1.msra.mxu0 %v3418
    %3523 = vmatprep.subr.mxu0 0.0
    %3524 = vmatpush1.msra.mxu0 %v3419
    %3525 = vmatprep.subr.mxu0 0.0
    %3526 = vmatpush1.msra.mxu0 %v3420
    %3527 = vmatprep.subr.mxu0 0.0
    %3528 = vmatpush1.msra.mxu0 %v3421
    %3529 = vmatprep.subr.mxu0 0.0
    %3530 = vmatpush1.msra.mxu0 %v3422
    %3531 = vmatprep.subr.mxu0 0.0
    %3532 = vmatpush1.msra.mxu0 %v3423
    %3533 = vmatprep.subr.mxu0 0.0
    %3534 = vmatpush1.msra.mxu0 %v3424
    %3535 = vmatprep.subr.mxu0 0.0
    %3536 = vmatpush1.msra.mxu0 %v3425
    %3537 = vmatprep.subr.mxu0 0.0
    %3538 = vmatpush1.msra.mxu0 %v3426
    %3539 = vmatprep.subr.mxu0 0.0
    %3540 = vmatpush1.msra.mxu0 %v3427
    %3541 = vmatprep.subr.mxu0 0.0
    %3542 = vmatpush1.msra.mxu0 %v3428
    %3543 = vmatprep.subr.mxu0 0.0
    %3544 = vmatpush1.msra.mxu0 %v3429
    %3545 = vmatprep.subr.mxu0 0.0
    %3546 = vmatpush1.msra.mxu0 %v3430
    %3547 = vmatprep.subr.mxu0 0.0
    %3548 = vmatpush1.msra.mxu0 %v3431
    %3549 = vmatprep.subr.mxu0 0.0
    %3550 = vmatpush1.msra.mxu0 %v3432
    %3551 = vmatprep.subr.mxu0 0.0
    %3552 = vmatpush1.msra.mxu0 %v3433
    %3553 = vmatprep.mubr.f32.mxu0 %v3398
    %3554 = vmatmul.mubr.f32.gmra.mrb[0].mxu0 %v3397
    %v3555 = vpop.f32.mrb[0].mxu0
    %v3556 = vadd.f32 %v3487, %v3555
    %v3557 = vpop.f32.mrb[0].mxu0
    %3558 = vdwg.mxu0
    %3559 = vmatprep.subr.mxu0 0.0
    %3560 = vmatpush1.msra.mxu0 %v3434
    %3561 = vmatprep.subr.mxu0 0.0
    %3562 = vmatpush1.msra.mxu0 %v3435
    %3563 = vmatprep.subr.mxu0 0.0
    %3564 = vmatpush1.msra.mxu0 %v3436
    %3565 = vmatprep.subr.mxu0 0.0
    %3566 = vmatpush1.msra.mxu0 %v3437
    %3567 = vmatprep.subr.mxu0 0.0
    %3568 = vmatpush1.msra.mxu0 %v3438
    %3569 = vmatprep.subr.mxu0 0.0
    %3570 = vmatpush1.msra.mxu0 %v3439
    %3571 = vmatprep.subr.mxu0 0.0
    %3572 = vmatpush1.msra.mxu0 %v3440
    %3573 = vmatprep.subr.mxu0 0.0
    %3574 = vmatpush1.msra.mxu0 %v3441
    %3575 = vmatprep.subr.mxu0 0.0
    %3576 = vmatpush1.msra.mxu0 %v3442
    %3577 = vmatprep.subr.mxu0 0.0
    %3578 = vmatpush1.msra.mxu0 %v3443
    %3579 = vmatprep.subr.mxu0 0.0
    %3580 = vmatpush1.msra.mxu0 %v3444
    %3581 = vmatprep.subr.mxu0 0.0
    %3582 = vmatpush1.msra.mxu0 %v3445
    %3583 = vmatprep.subr.mxu0 0.0
    %3584 = vmatpush1.msra.mxu0 %v3446
    %3585 = vmatprep.subr.mxu0 0.0
    %3586 = vmatpush1.msra.mxu0 %v3447
    %3587 = vmatprep.subr.mxu0 0.0
    %3588 = vmatpush1.msra.mxu0 %v3448
    %3589 = vmatprep.subr.mxu0 0.0
    %3590 = vmatpush1.msra.mxu0 %v3449
    %3591 = vmatprep.subr.mxu0 0.0
    %3592 = vmatpush1.msra.mxu0 %v3450
    %3593 = vmatprep.subr.mxu0 0.0
    %3594 = vmatpush1.msra.mxu0 %v3451
    %3595 = vmatprep.subr.mxu0 0.0
    %3596 = vmatpush1.msra.mxu0 %v3452
    %3597 = vmatprep.subr.mxu0 0.0
    %3598 = vmatpush1.msra.mxu0 %v3453
    %3599 = vmatprep.subr.mxu0 0.0
    %3600 = vmatpush1.msra.mxu0 %v3454
    %3601 = vmatprep.subr.mxu0 0.0
    %3602 = vmatpush1.msra.mxu0 %v3455
    %3603 = vmatprep.subr.mxu0 0.0
    %3604 = vmatpush1.msra.mxu0 %v3456
    %3605 = vmatprep.subr.mxu0 0.0
    %3606 = vmatpush1.msra.mxu0 %v3457
    %3607 = vmatprep.subr.mxu0 0.0
    %3608 = vmatpush1.msra.mxu0 %v3458
    %3609 = vmatprep.subr.mxu0 0.0
    %3610 = vmatpush1.msra.mxu0 %v3459
    %3611 = vmatprep.subr.mxu0 0.0
    %3612 = vmatpush1.msra.mxu0 %v3460
    %3613 = vmatprep.subr.mxu0 0.0
    %3614 = vmatpush1.msra.mxu0 %v3461
    %3615 = vmatprep.subr.mxu0 0.0
    %3616 = vmatpush1.msra.mxu0 %v3462
    %3617 = vmatprep.subr.mxu0 0.0
    %3618 = vmatpush1.msra.mxu0 %v3463
    %3619 = vmatprep.subr.mxu0 0.0
    %3620 = vmatpush1.msra.mxu0 %v3464
    %3621 = vmatprep.subr.mxu0 0.0
    %3622 = vmatpush1.msra.mxu0 %v3465
    %3623 = vmatprep.mubr.f32.mxu0 %v3400
    %3624 = vmatmul.mubr.f32.gmra.mrb[0].mxu0 %v3399
    %v3625 = vpop.f32.mrb[0].mxu0
    %v3626 = vadd.f32 %v3556, %v3625
    %v3627 = vpop.f32.mrb[0].mxu0
    %3628 = vdwg.mxu0
    %3629 = vmatprep.subr.mxu0 0.0
    %3630 = vmatpush1.msra.mxu0 %v3466
    %3631 = vmatprep.subr.mxu0 0.0
    %3632 = vmatpush1.msra.mxu0 %v3467
    %3633 = vmatprep.subr.mxu0 0.0
    %3634 = vmatpush1.msra.mxu0 %v3468
    %3635 = vmatprep.subr.mxu0 0.0
    %3636 = vmatpush1.msra.mxu0 %v3469
    %3637 = vmatprep.subr.mxu0 0.0
    %3638 = vmatpush1.msra.mxu0 %v3470
    %3639 = vmatprep.subr.mxu0 0.0
    %3640 = vmatpush1.msra.mxu0 %v3471
    %3641 = vmatprep.subr.mxu0 0.0
    %3642 = vmatpush1.msra.mxu0 %v3472
    %3643 = vmatprep.subr.mxu0 0.0
    %3644 = vmatpush1.msra.mxu0 %v3473
    %3645 = vmatprep.subr.mxu0 0.0
    %3646 = vmatpush1.msra.mxu0 %v3474
    %3647 = vmatprep.subr.mxu0 0.0
    %3648 = vmatpush1.msra.mxu0 %v3475
    %3649 = vmatprep.subr.mxu0 0.0
    %3650 = vmatpush1.msra.mxu0 %v3476
    %3651 = vmatprep.subr.mxu0 0.0
    %3652 = vmatpush1.msra.mxu0 %v3477
    %3653 = vmatprep.subr.mxu0 0.0
    %3654 = vmatpush1.msra.mxu0 %v3478
    %3655 = vmatprep.subr.mxu0 0.0
    %3656 = vmatpush1.msra.mxu0 %v3479
    %3657 = vmatprep.subr.mxu0 0.0
    %3658 = vmatpush1.msra.mxu0 %v3480
    %3659 = vmatprep.subr.mxu0 0.0
    %3660 = vmatpush1.msra.mxu0 %v3481
    %3661 = vmatprep.subr.mxu0 0.0
    %3662 = vmatpush1.msra.mxu0 0.0
    %3663 = vmatprep.subr.mxu0 0.0
    %3664 = vmatpush1.msra.mxu0 0.0
    %3665 = vmatprep.subr.mxu0 0.0
    %3666 = vmatpush1.msra.mxu0 0.0
    %3667 = vmatprep.subr.mxu0 0.0
    %3668 = vmatpush1.msra.mxu0 0.0
    %3669 = vmatprep.subr.mxu0 0.0
    %3670 = vmatpush1.msra.mxu0 0.0
    %3671 = vmatprep.subr.mxu0 0.0
    %3672 = vmatpush1.msra.mxu0 0.0
    %3673 = vmatprep.subr.mxu0 0.0
    %3674 = vmatpush1.msra.mxu0 0.0
    %3675 = vmatprep.subr.mxu0 0.0
    %3676 = vmatpush1.msra.mxu0 0.0
    %3677 = vmatprep.subr.mxu0 0.0
    %3678 = vmatpush1.msra.mxu0 0.0
    %3679 = vmatprep.subr.mxu0 0.0
    %3680 = vmatpush1.msra.mxu0 0.0
    %3681 = vmatprep.subr.mxu0 0.0
    %3682 = vmatpush1.msra.mxu0 0.0
    %3683 = vmatprep.subr.mxu0 0.0
    %3684 = vmatpush1.msra.mxu0 0.0
    %3685 = vmatprep.subr.mxu0 0.0
    %3686 = vmatpush1.msra.mxu0 0.0
    %3687 = vmatprep.subr.mxu0 0.0
    %3688 = vmatpush1.msra.mxu0 0.0
    %3689 = vmatprep.subr.mxu0 0.0
    %3690 = vmatpush1.msra.mxu0 0.0
    %3691 = vmatprep.subr.mxu0 0.0
    %3692 = vmatpush1.msra.mxu0 0.0
    %3693 = vmatprep.mubr.f32.mxu0 0.0
    %3694 = vmatmul.mubr.f32.gmra.mrb[0].mxu0 %v3401
    %v3695 = vpop.f32.mrb[0].mxu0
    %v3696 = vadd.f32 %v3626, %v3695
    %v3697 = vpop.f32.mrb[0].mxu0
    %3698 = vdwg.mxu0
    %v3699 = vmax.f32 %v3696, 0.0
    %v3702 = vrot.slane %v2810, 7
    %v3703 = vrot.slane %v2811, 7
    %v3706 = vsel %vm759, -1e+30, %v3702
    %v3707 = vsel %vm759, -1e+30, %v3703
    %v3708 = vsel %vm1118, %v3706, -1e+30
    %v3709 = vsel %vm1118, %v3707, -1e+30
    %v3712 = vrot.slane %v3708, 1
    %v3713 = vrot.slane %v3709, 1
    %v3716 = vmax.f32 %v3708, %v3712
    %v3717 = vmax.f32 %v3709, %v3713
    %v3718 = vrot.slane %v3708, 2
    %v3719 = vrot.slane %v3709, 2
    %v3722 = vmax.f32 %v3716, %v3718
    %v3723 = vmax.f32 %v3717, %v3719
    %v3724 = vrot.slane %v2810, 2
    %v3725 = vrot.slane %v2811, 2
    %v3728 = vsel %vm759, -1e+30, %v3724
    %v3729 = vsel %vm759, -1e+30, %v3725
    %v3730 = vsel %vm1118, %v3728, -1e+30
    %v3731 = vsel %vm1118, %v3729, -1e+30
    %v3734 = vrot.slane %v3730, 1
    %v3735 = vrot.slane %v3731, 1
    %v3738 = vmax.f32 %v3730, %v3734
    %v3739 = vmax.f32 %v3731, %v3735
    %v3740 = vrot.slane %v3730, 2
    %v3741 = vrot.slane %v3731, 2
    %v3744 = vmax.f32 %v3738, %v3740
    %v3745 = vmax.f32 %v3739, %v3741
    %v3748 = vrot.slane %v3744, 5
    %v3749 = vrot.slane %v3745, 5
    %v3752 = vsel %vm769, %v3722, %v3748
    %v3753 = vsel %vm769, %v3723, %v3749
    %v3754 = vld [vmem:[#allocation37] sm:$0xff]
    %v3755 = vld [vmem:[#allocation37 + $0x8] sm:$0xff]
    %v3756 = vld [vmem:[#allocation37 + $0x10] sm:$0xff]
    %v3757 = vld [vmem:[#allocation37 + $0x18] sm:$0xff]
    %v3758 = vld [vmem:[#allocation37 + $0x20] sm:$0xff]
    %v3759 = vld [vmem:[#allocation37 + $0x28] sm:$0xff]
    %v3760 = vld [vmem:[#allocation37 + $0x30] sm:$0xff]
    %v3761 = vld [vmem:[#allocation37 + $0x38] sm:$0xff]
    %v3762 = vld [vmem:[#allocation37 + $0x40] sm:$0xff]
    %v3763 = vld [vmem:[#allocation37 + $0x48] sm:$0xff]
    %v3764 = vld [vmem:[#allocation37 + $0x50] sm:$0xff]
    %v3765 = vld [vmem:[#allocation37 + $0x58] sm:$0xff]
    %v3766 = vld [vmem:[#allocation37 + $0x60] sm:$0xff]
    %v3767 = vld [vmem:[#allocation37 + $0x68] sm:$0xff]
    %v3768 = vld [vmem:[#allocation37 + $0x70] sm:$0xff]
    %v3769 = vld [vmem:[#allocation37 + $0x78] sm:$0xff]
    %v3770 = vld [vmem:[#allocation37 + $0x80] sm:$0xff]
    %v3771 = vld [vmem:[#allocation37 + $0x88] sm:$0xff]
    %v3772 = vld [vmem:[#allocation37 + $0x90] sm:$0xff]
    %v3773 = vld [vmem:[#allocation37 + $0x98] sm:$0xff]
    %v3774 = vld [vmem:[#allocation37 + $0xa0] sm:$0xff]
    %v3775 = vld [vmem:[#allocation37 + $0xa8] sm:$0xff]
    %v3776 = vld [vmem:[#allocation37 + $0xb0] sm:$0xff]
    %v3777 = vld [vmem:[#allocation37 + $0xb8] sm:$0xff]
    %v3778 = vld [vmem:[#allocation37 + $0xc0] sm:$0xff]
    %v3779 = vld [vmem:[#allocation37 + $0xc8] sm:$0xff]
    %v3780 = vld [vmem:[#allocation37 + $0xd0] sm:$0xff]
    %v3781 = vld [vmem:[#allocation37 + $0xd8] sm:$0xff]
    %v3782 = vld [vmem:[#allocation37 + $0xe0] sm:$0xff]
    %v3783 = vld [vmem:[#allocation37 + $0xe8] sm:$0xff]
    %v3784 = vld [vmem:[#allocation37 + $0xf0] sm:$0xff]
    %v3785 = vld [vmem:[#allocation37 + $0xf8] sm:$0xff]
    %v3786 = vld [vmem:[%s81] sm:$0x1]
    %v3788 = vlaneseq
    %v3789 = vshrl.u32 %v3788, 7
    %v3790 = vsub.s32 0, %v3789
    %v3791 = vrot.slane %v3786, %v3790
    %3793 = vmatprep.subr.mxu0 0.0
    %3794 = vmatpush1.msra.mxu0 %v3754
    %3795 = vmatprep.subr.mxu0 0.0
    %3796 = vmatpush1.msra.mxu0 %v3755
    %3797 = vmatprep.subr.mxu0 0.0
    %3798 = vmatpush1.msra.mxu0 %v3756
    %3799 = vmatprep.subr.mxu0 0.0
    %3800 = vmatpush1.msra.mxu0 %v3757
    %3801 = vmatprep.subr.mxu0 0.0
    %3802 = vmatpush1.msra.mxu0 %v3758
    %3803 = vmatprep.subr.mxu0 0.0
    %3804 = vmatpush1.msra.mxu0 %v3759
    %3805 = vmatprep.subr.mxu0 0.0
    %3806 = vmatpush1.msra.mxu0 %v3760
    %3807 = vmatprep.subr.mxu0 0.0
    %3808 = vmatpush1.msra.mxu0 %v3761
    %3809 = vmatprep.subr.mxu0 0.0
    %3810 = vmatpush1.msra.mxu0 %v3762
    %3811 = vmatprep.subr.mxu0 0.0
    %3812 = vmatpush1.msra.mxu0 %v3763
    %3813 = vmatprep.subr.mxu0 0.0
    %3814 = vmatpush1.msra.mxu0 %v3764
    %3815 = vmatprep.subr.mxu0 0.0
    %3816 = vmatpush1.msra.mxu0 %v3765
    %3817 = vmatprep.subr.mxu0 0.0
    %3818 = vmatpush1.msra.mxu0 %v3766
    %3819 = vmatprep.subr.mxu0 0.0
    %3820 = vmatpush1.msra.mxu0 %v3767
    %3821 = vmatprep.subr.mxu0 0.0
    %3822 = vmatpush1.msra.mxu0 %v3768
    %3823 = vmatprep.subr.mxu0 0.0
    %3824 = vmatpush1.msra.mxu0 %v3769
    %3825 = vmatprep.subr.mxu0 0.0
    %3826 = vmatpush1.msra.mxu0 %v3770
    %3827 = vmatprep.subr.mxu0 0.0
    %3828 = vmatpush1.msra.mxu0 %v3771
    %3829 = vmatprep.subr.mxu0 0.0
    %3830 = vmatpush1.msra.mxu0 %v3772
    %3831 = vmatprep.subr.mxu0 0.0
    %3832 = vmatpush1.msra.mxu0 %v3773
    %3833 = vmatprep.subr.mxu0 0.0
    %3834 = vmatpush1.msra.mxu0 %v3774
    %3835 = vmatprep.subr.mxu0 0.0
    %3836 = vmatpush1.msra.mxu0 %v3775
    %3837 = vmatprep.subr.mxu0 0.0
    %3838 = vmatpush1.msra.mxu0 %v3776
    %3839 = vmatprep.subr.mxu0 0.0
    %3840 = vmatpush1.msra.mxu0 %v3777
    %3841 = vmatprep.subr.mxu0 0.0
    %3842 = vmatpush1.msra.mxu0 %v3778
    %3843 = vmatprep.subr.mxu0 0.0
    %3844 = vmatpush1.msra.mxu0 %v3779
    %3845 = vmatprep.subr.mxu0 0.0
    %3846 = vmatpush1.msra.mxu0 %v3780
    %3847 = vmatprep.subr.mxu0 0.0
    %3848 = vmatpush1.msra.mxu0 %v3781
    %3849 = vmatprep.subr.mxu0 0.0
    %3850 = vmatpush1.msra.mxu0 %v3782
    %3851 = vmatprep.subr.mxu0 0.0
    %3852 = vmatpush1.msra.mxu0 %v3783
    %3853 = vmatprep.subr.mxu0 0.0
    %3854 = vmatpush1.msra.mxu0 %v3784
    %3855 = vmatprep.subr.mxu0 0.0
    %3856 = vmatpush1.msra.mxu0 %v3785
    %3857 = vmatprep.mubr.f32.mxu0 %v3753
    %3858 = vmatmul.mubr.f32.gmra.mrb[0].mxu0 %v3752
    %v3859 = vpop.f32.mrb[0].mxu0
    %v3860 = vadd.f32 %v3791, %v3859
    %v3861 = vpop.f32.mrb[0].mxu0
    %3862 = vdwg.mxu0
    %v3863 = vmax.f32 %v3860, 0.0
    %v3864 = vld [vmem:[%s83] sm:$0xf]
    %v3866 = vlaneseq
    %v3867 = vshrl.u32 %v3866, 7
    %v3868 = vsub.s32 0, %v3867
    %v3869 = vrot.slane %v3864, %v3868
    %v3870 = vlaneseq
    %v3871 = vshrl.u32 %v3870, 7
    %v3872 = vsub.s32 1, %v3871
    %v3873 = vrot.slane %v3864, %v3872
    %v3874 = vlaneseq
    %v3875 = vshrl.u32 %v3874, 7
    %v3876 = vsub.s32 2, %v3875
    %v3877 = vrot.slane %v3864, %v3876
    %v3878 = vlaneseq
    %v3879 = vshrl.u32 %v3878, 7
    %v3880 = vsub.s32 3, %v3879
    %v3881 = vrot.slane %v3864, %v3880
    %v3886 = vmul.f32 %v2921, %v3869
    %v3887 = vmul.f32 %v3253, %v3873
    %v3888 = vmul.f32 %v3699, %v3877
    %v3889 = vmul.f32 %v3863, %v3881
    %v3890 = vld [vmem:[%s85] sm:$0xf]
    %v3892 = vlaneseq
    %v3893 = vshrl.u32 %v3892, 7
    %v3894 = vsub.s32 0, %v3893
    %v3895 = vrot.slane %v3890, %v3894
    %v3896 = vlaneseq
    %v3897 = vshrl.u32 %v3896, 7
    %v3898 = vsub.s32 1, %v3897
    %v3899 = vrot.slane %v3890, %v3898
    %v3900 = vlaneseq
    %v3901 = vshrl.u32 %v3900, 7
    %v3902 = vsub.s32 2, %v3901
    %v3903 = vrot.slane %v3890, %v3902
    %v3904 = vlaneseq
    %v3905 = vshrl.u32 %v3904, 7
    %v3906 = vsub.s32 3, %v3905
    %v3907 = vrot.slane %v3890, %v3906
    %v3912 = vadd.f32 %v3886, %v3895
    %v3913 = vadd.f32 %v3887, %v3899
    %v3914 = vadd.f32 %v3888, %v3903
    %v3915 = vadd.f32 %v3889, %v3907
    %v3916 = vsel %vm769, %v3912, -inf
    %v3917 = vrot.slane %v3916, 4
    %v3918 = vmax.f32 %v3916, %v3917
    %v3919 = vrot.slane %v3918, 2
    %v3920 = vmax.f32 %v3918, %v3919
    %v3921 = vrot.slane %v3920, 1
    %v3922 = vmax.f32 %v3920, %v3921
    %v3923 = vsel %vm769, %v3913, -inf
    %v3924 = vrot.slane %v3923, 4
    %v3925 = vmax.f32 %v3923, %v3924
    %v3926 = vrot.slane %v3925, 2
    %v3927 = vmax.f32 %v3925, %v3926
    %v3928 = vrot.slane %v3927, 1
    %v3929 = vmax.f32 %v3927, %v3928
    %v3930 = vsel %vm769, %v3914, -inf
    %v3931 = vrot.slane %v3930, 4
    %v3932 = vmax.f32 %v3930, %v3931
    %v3933 = vrot.slane %v3932, 2
    %v3934 = vmax.f32 %v3932, %v3933
    %v3935 = vrot.slane %v3934, 1
    %v3936 = vmax.f32 %v3934, %v3935
    %v3937 = vsel %vm769, %v3915, -inf
    %v3938 = vrot.slane %v3937, 4
    %v3939 = vmax.f32 %v3937, %v3938
    %v3940 = vrot.slane %v3939, 2
    %v3941 = vmax.f32 %v3939, %v3940
    %v3942 = vrot.slane %v3941, 1
    %v3943 = vmax.f32 %v3941, %v3942
    %vm3944 = vcmask 1045507
    %v3945 = vsel %vm3944, %v3912, -inf
    %v3946 = vrot.slane %v3945, 4
    %v3947 = vmax.f32 %v3945, %v3946
    %v3948 = vrot.slane %v3947, 2
    %v3949 = vmax.f32 %v3947, %v3948
    %v3950 = vrot.slane %v3949, 1
    %v3951 = vmax.f32 %v3949, %v3950
    %v3952 = vsel %vm3944, %v3913, -inf
    %v3953 = vrot.slane %v3952, 4
    %v3954 = vmax.f32 %v3952, %v3953
    %v3955 = vrot.slane %v3954, 2
    %v3956 = vmax.f32 %v3954, %v3955
    %v3957 = vrot.slane %v3956, 1
    %v3958 = vmax.f32 %v3956, %v3957
    %v3959 = vsel %vm3944, %v3914, -inf
    %v3960 = vrot.slane %v3959, 4
    %v3961 = vmax.f32 %v3959, %v3960
    %v3962 = vrot.slane %v3961, 2
    %v3963 = vmax.f32 %v3961, %v3962
    %v3964 = vrot.slane %v3963, 1
    %v3965 = vmax.f32 %v3963, %v3964
    %v3966 = vsel %vm3944, %v3915, -inf
    %v3967 = vrot.slane %v3966, 4
    %v3968 = vmax.f32 %v3966, %v3967
    %v3969 = vrot.slane %v3968, 2
    %v3970 = vmax.f32 %v3968, %v3969
    %v3971 = vrot.slane %v3970, 1
    %v3972 = vmax.f32 %v3970, %v3971
    %v3973 = vsel %vm759, %v3922, %v3951
    %v3974 = vsel %vm759, %v3929, %v3958
    %v3975 = vsel %vm759, %v3936, %v3965
    %v3976 = vsel %vm759, %v3943, %v3972
    %v3977 = vld [vmem:[%s87] sm:$0xff]
    %v3978 = vld [vmem:[%s87 + $0x8] sm:$0xff]
    %v3979 = vld [vmem:[%s87 + $0x10] sm:$0xff]
    %v3980 = vld [vmem:[%s87 + $0x18] sm:$0xff]
    %v3981 = vld [vmem:[%s87 + $0x20] sm:$0xff]
    %v3982 = vld [vmem:[%s87 + $0x28] sm:$0xff]
    %v3983 = vld [vmem:[%s87 + $0x30] sm:$0xff]
    %v3984 = vld [vmem:[%s87 + $0x38] sm:$0xff]
    %v3985 = vld [vmem:[%s87 + $0x40] sm:$0xff]
    %v3986 = vld [vmem:[%s87 + $0x48] sm:$0xff]
    %v3987 = vld [vmem:[%s87 + $0x50] sm:$0xff]
    %v3988 = vld [vmem:[%s87 + $0x58] sm:$0xff]
    %v3989 = vld [vmem:[%s87 + $0x60] sm:$0xff]
    %v3990 = vld [vmem:[%s87 + $0x68] sm:$0xff]
    %v3991 = vld [vmem:[%s87 + $0x70] sm:$0xff]
    %v3992 = vld [vmem:[%s87 + $0x78] sm:$0xff]
    %v3993 = vld [vmem:[%s87 + $0x80] sm:$0xff]
    %v3994 = vld [vmem:[%s87 + $0x88] sm:$0xff]
    %v3995 = vld [vmem:[%s87 + $0x90] sm:$0xff]
    %v3996 = vld [vmem:[%s87 + $0x98] sm:$0xff]
    %v3997 = vld [vmem:[%s87 + $0xa0] sm:$0xff]
    %v3998 = vld [vmem:[%s87 + $0xa8] sm:$0xff]
    %v3999 = vld [vmem:[%s87 + $0xb0] sm:$0xff]
    %v4000 = vld [vmem:[%s87 + $0xb8] sm:$0xff]
    %v4001 = vld [vmem:[%s87 + $0xc0] sm:$0xff]
    %v4002 = vld [vmem:[%s87 + $0xc8] sm:$0xff]
    %v4003 = vld [vmem:[%s87 + $0xd0] sm:$0xff]
    %v4004 = vld [vmem:[%s87 + $0xd8] sm:$0xff]
    %v4005 = vld [vmem:[%s87 + $0xe0] sm:$0xff]
    %v4006 = vld [vmem:[%s87 + $0xe8] sm:$0xff]
    %v4007 = vld [vmem:[%s87 + $0xf0] sm:$0xff]
    %v4008 = vld [vmem:[%s87 + $0xf8] sm:$0xff]
    %v4009 = vld [vmem:[%s87 + $0x100] sm:$0xff]
    %v4010 = vld [vmem:[%s87 + $0x108] sm:$0xff]
    %v4011 = vld [vmem:[%s87 + $0x110] sm:$0xff]
    %v4012 = vld [vmem:[%s87 + $0x118] sm:$0xff]
    %v4013 = vld [vmem:[%s87 + $0x120] sm:$0xff]
    %v4014 = vld [vmem:[%s87 + $0x128] sm:$0xff]
    %v4015 = vld [vmem:[%s87 + $0x130] sm:$0xff]
    %v4016 = vld [vmem:[%s87 + $0x138] sm:$0xff]
    %v4017 = vld [vmem:[%s87 + $0x140] sm:$0xff]
    %v4018 = vld [vmem:[%s87 + $0x148] sm:$0xff]
    %v4019 = vld [vmem:[%s87 + $0x150] sm:$0xff]
    %v4020 = vld [vmem:[%s87 + $0x158] sm:$0xff]
    %v4021 = vld [vmem:[%s87 + $0x160] sm:$0xff]
    %v4022 = vld [vmem:[%s87 + $0x168] sm:$0xff]
    %v4023 = vld [vmem:[%s87 + $0x170] sm:$0xff]
    %v4024 = vld [vmem:[%s87 + $0x178] sm:$0xff]
    %v4025 = vld [vmem:[%s87 + $0x180] sm:$0xff]
    %v4026 = vld [vmem:[%s87 + $0x188] sm:$0xff]
    %v4027 = vld [vmem:[%s87 + $0x190] sm:$0xff]
    %v4028 = vld [vmem:[%s87 + $0x198] sm:$0xff]
    %v4029 = vld [vmem:[%s87 + $0x1a0] sm:$0xff]
    %v4030 = vld [vmem:[%s87 + $0x1a8] sm:$0xff]
    %v4031 = vld [vmem:[%s87 + $0x1b0] sm:$0xff]
    %v4032 = vld [vmem:[%s87 + $0x1b8] sm:$0xff]
    %v4033 = vld [vmem:[%s87 + $0x1c0] sm:$0xff]
    %v4034 = vld [vmem:[%s87 + $0x1c8] sm:$0xff]
    %v4035 = vld [vmem:[%s87 + $0x1d0] sm:$0xff]
    %v4036 = vld [vmem:[%s87 + $0x1d8] sm:$0xff]
    %v4037 = vld [vmem:[%s87 + $0x1e0] sm:$0xff]
    %v4038 = vld [vmem:[%s87 + $0x1e8] sm:$0xff]
    %v4039 = vld [vmem:[%s87 + $0x1f0] sm:$0xff]
    %v4040 = vld [vmem:[%s87 + $0x1f8] sm:$0xff]
    %v4041 = vld [vmem:[%s87 + $0x200] sm:$0xff]
    %v4042 = vld [vmem:[%s87 + $0x208] sm:$0xff]
    %v4043 = vld [vmem:[%s87 + $0x210] sm:$0xff]
    %v4044 = vld [vmem:[%s87 + $0x218] sm:$0xff]
    %v4045 = vld [vmem:[%s87 + $0x220] sm:$0xff]
    %v4046 = vld [vmem:[%s87 + $0x228] sm:$0xff]
    %v4047 = vld [vmem:[%s87 + $0x230] sm:$0xff]
    %v4048 = vld [vmem:[%s87 + $0x238] sm:$0xff]
    %v4049 = vld [vmem:[%s87 + $0x240] sm:$0xff]
    %v4050 = vld [vmem:[%s87 + $0x248] sm:$0xff]
    %v4051 = vld [vmem:[%s87 + $0x250] sm:$0xff]
    %v4052 = vld [vmem:[%s87 + $0x258] sm:$0xff]
    %v4053 = vld [vmem:[%s87 + $0x260] sm:$0xff]
    %v4054 = vld [vmem:[%s87 + $0x268] sm:$0xff]
    %v4055 = vld [vmem:[%s87 + $0x270] sm:$0xff]
    %v4056 = vld [vmem:[%s87 + $0x278] sm:$0xff]
    %v4057 = vld [vmem:[%s87 + $0x280] sm:$0xff]
    %v4058 = vld [vmem:[%s87 + $0x288] sm:$0xff]
    %v4059 = vld [vmem:[%s87 + $0x290] sm:$0xff]
    %v4060 = vld [vmem:[%s87 + $0x298] sm:$0xff]
    %v4061 = vld [vmem:[%s87 + $0x2a0] sm:$0xff]
    %v4062 = vld [vmem:[%s87 + $0x2a8] sm:$0xff]
    %v4063 = vld [vmem:[%s87 + $0x2b0] sm:$0xff]
    %v4064 = vld [vmem:[%s87 + $0x2b8] sm:$0xff]
    %v4065 = vld [vmem:[%s87 + $0x2c0] sm:$0xff]
    %v4066 = vld [vmem:[%s87 + $0x2c8] sm:$0xff]
    %v4067 = vld [vmem:[%s87 + $0x2d0] sm:$0xff]
    %v4068 = vld [vmem:[%s87 + $0x2d8] sm:$0xff]
    %v4069 = vld [vmem:[%s87 + $0x2e0] sm:$0xff]
    %v4070 = vld [vmem:[%s87 + $0x2e8] sm:$0xff]
    %v4071 = vld [vmem:[%s87 + $0x2f0] sm:$0xff]
    %v4072 = vld [vmem:[%s87 + $0x2f8] sm:$0xff]
    %v4073 = vld [vmem:[%s87 + $0x300] sm:$0xff]
    %v4074 = vld [vmem:[%s87 + $0x308] sm:$0xff]
    %v4075 = vld [vmem:[%s87 + $0x310] sm:$0xff]
    %v4076 = vld [vmem:[%s87 + $0x318] sm:$0xff]
    %v4077 = vld [vmem:[%s87 + $0x320] sm:$0xff]
    %v4078 = vld [vmem:[%s87 + $0x328] sm:$0xff]
    %v4079 = vld [vmem:[%s87 + $0x330] sm:$0xff]
    %v4080 = vld [vmem:[%s87 + $0x338] sm:$0xff]
    %v4081 = vld [vmem:[%s87 + $0x340] sm:$0xff]
    %v4082 = vld [vmem:[%s87 + $0x348] sm:$0xff]
    %v4083 = vld [vmem:[%s87 + $0x350] sm:$0xff]
    %v4084 = vld [vmem:[%s87 + $0x358] sm:$0xff]
    %v4085 = vld [vmem:[%s87 + $0x360] sm:$0xff]
    %v4086 = vld [vmem:[%s87 + $0x368] sm:$0xff]
    %v4087 = vld [vmem:[%s87 + $0x370] sm:$0xff]
    %v4088 = vld [vmem:[%s87 + $0x378] sm:$0xff]
    %v4089 = vld [vmem:[%s87 + $0x380] sm:$0xff]
    %v4090 = vld [vmem:[%s87 + $0x388] sm:$0xff]
    %v4091 = vld [vmem:[%s87 + $0x390] sm:$0xff]
    %v4092 = vld [vmem:[%s87 + $0x398] sm:$0xff]
    %v4093 = vld [vmem:[%s87 + $0x3a0] sm:$0xff]
    %v4094 = vld [vmem:[%s87 + $0x3a8] sm:$0xff]
    %v4095 = vld [vmem:[%s87 + $0x3b0] sm:$0xff]
    %v4096 = vld [vmem:[%s87 + $0x3b8] sm:$0xff]
    %v4097 = vld [vmem:[%s87 + $0x3c0] sm:$0xff]
    %v4098 = vld [vmem:[%s87 + $0x3c8] sm:$0xff]
    %v4099 = vld [vmem:[%s87 + $0x3d0] sm:$0xff]
    %v4100 = vld [vmem:[%s87 + $0x3d8] sm:$0xff]
    %v4101 = vld [vmem:[%s87 + $0x3e0] sm:$0xff]
    %v4102 = vld [vmem:[%s87 + $0x3e8] sm:$0xff]
    %v4103 = vld [vmem:[%s87 + $0x3f0] sm:$0xff]
    %v4104 = vld [vmem:[%s87 + $0x3f8] sm:$0xff]
    %v4105 = vld [vmem:[#allocation38] sm:$0x3]
    %v4107 = vlaneseq
    %v4108 = vshrl.u32 %v4107, 7
    %v4109 = vsub.s32 0, %v4108
    %v4110 = vrot.slane %v4105, %v4109
    %v4111 = vlaneseq
    %v4112 = vshrl.u32 %v4111, 7
    %v4113 = vsub.s32 1, %v4112
    %v4114 = vrot.slane %v4105, %v4113
    %4117 = vmatprep.subr.mxu0 %v3978
    %4118 = vmatpush1.msra.mxu0 %v3977
    %4119 = vmatprep.subr.mxu0 %v3980
    %4120 = vmatpush1.msra.mxu0 %v3979
    %4121 = vmatprep.subr.mxu0 %v3982
    %4122 = vmatpush1.msra.mxu0 %v3981
    %4123 = vmatprep.subr.mxu0 %v3984
    %4124 = vmatpush1.msra.mxu0 %v3983
    %4125 = vmatprep.subr.mxu0 %v3986
    %4126 = vmatpush1.msra.mxu0 %v3985
    %4127 = vmatprep.subr.mxu0 %v3988
    %4128 = vmatpush1.msra.mxu0 %v3987
    %4129 = vmatprep.subr.mxu0 %v3990
    %4130 = vmatpush1.msra.mxu0 %v3989
    %4131 = vmatprep.subr.mxu0 %v3992
    %4132 = vmatpush1.msra.mxu0 %v3991
    %4133 = vmatprep.subr.mxu0 %v3994
    %4134 = vmatpush1.msra.mxu0 %v3993
    %4135 = vmatprep.subr.mxu0 %v3996
    %4136 = vmatpush1.msra.mxu0 %v3995
    %4137 = vmatprep.subr.mxu0 %v3998
    %4138 = vmatpush1.msra.mxu0 %v3997
    %4139 = vmatprep.subr.mxu0 %v4000
    %4140 = vmatpush1.msra.mxu0 %v3999
    %4141 = vmatprep.subr.mxu0 %v4002
    %4142 = vmatpush1.msra.mxu0 %v4001
    %4143 = vmatprep.subr.mxu0 %v4004
    %4144 = vmatpush1.msra.mxu0 %v4003
    %4145 = vmatprep.subr.mxu0 %v4006
    %4146 = vmatpush1.msra.mxu0 %v4005
    %4147 = vmatprep.subr.mxu0 %v4008
    %4148 = vmatpush1.msra.mxu0 %v4007
    %4149 = vmatprep.subr.mxu0 %v4010
    %4150 = vmatpush1.msra.mxu0 %v4009
    %4151 = vmatprep.subr.mxu0 %v4012
    %4152 = vmatpush1.msra.mxu0 %v4011
    %4153 = vmatprep.subr.mxu0 %v4014
    %4154 = vmatpush1.msra.mxu0 %v4013
    %4155 = vmatprep.subr.mxu0 %v4016
    %4156 = vmatpush1.msra.mxu0 %v4015
    %4157 = vmatprep.subr.mxu0 %v4018
    %4158 = vmatpush1.msra.mxu0 %v4017
    %4159 = vmatprep.subr.mxu0 %v4020
    %4160 = vmatpush1.msra.mxu0 %v4019
    %4161 = vmatprep.subr.mxu0 %v4022
    %4162 = vmatpush1.msra.mxu0 %v4021
    %4163 = vmatprep.subr.mxu0 %v4024
    %4164 = vmatpush1.msra.mxu0 %v4023
    %4165 = vmatprep.subr.mxu0 %v4026
    %4166 = vmatpush1.msra.mxu0 %v4025
    %4167 = vmatprep.subr.mxu0 %v4028
    %4168 = vmatpush1.msra.mxu0 %v4027
    %4169 = vmatprep.subr.mxu0 %v4030
    %4170 = vmatpush1.msra.mxu0 %v4029
    %4171 = vmatprep.subr.mxu0 %v4032
    %4172 = vmatpush1.msra.mxu0 %v4031
    %4173 = vmatprep.subr.mxu0 %v4034
    %4174 = vmatpush1.msra.mxu0 %v4033
    %4175 = vmatprep.subr.mxu0 %v4036
    %4176 = vmatpush1.msra.mxu0 %v4035
    %4177 = vmatprep.subr.mxu0 %v4038
    %4178 = vmatpush1.msra.mxu0 %v4037
    %4179 = vmatprep.subr.mxu0 %v4040
    %4180 = vmatpush1.msra.mxu0 %v4039
    %4181 = vmatprep.mubr.f32.mxu0 %v3974
    %4182 = vmatmul.mubr.f32.gmra.mrb[0].mxu0 %v3973
    %v4183 = vpop.f32.mrb[0].mxu0
    %v4184 = vadd.f32 %v4110, %v4183
    %v4185 = vpop.f32.mrb[0].mxu0
    %v4186 = vadd.f32 %v4114, %v4185
    %4187 = vdwg.mxu0
    %4188 = vmatprep.subr.mxu0 %v4042
    %4189 = vmatpush1.msra.mxu0 %v4041
    %4190 = vmatprep.subr.mxu0 %v4044
    %4191 = vmatpush1.msra.mxu0 %v4043
    %4192 = vmatprep.subr.mxu0 %v4046
    %4193 = vmatpush1.msra.mxu0 %v4045
    %4194 = vmatprep.subr.mxu0 %v4048
    %4195 = vmatpush1.msra.mxu0 %v4047
    %4196 = vmatprep.subr.mxu0 %v4050
    %4197 = vmatpush1.msra.mxu0 %v4049
    %4198 = vmatprep.subr.mxu0 %v4052
    %4199 = vmatpush1.msra.mxu0 %v4051
    %4200 = vmatprep.subr.mxu0 %v4054
    %4201 = vmatpush1.msra.mxu0 %v4053
    %4202 = vmatprep.subr.mxu0 %v4056
    %4203 = vmatpush1.msra.mxu0 %v4055
    %4204 = vmatprep.subr.mxu0 %v4058
    %4205 = vmatpush1.msra.mxu0 %v4057
    %4206 = vmatprep.subr.mxu0 %v4060
    %4207 = vmatpush1.msra.mxu0 %v4059
    %4208 = vmatprep.subr.mxu0 %v4062
    %4209 = vmatpush1.msra.mxu0 %v4061
    %4210 = vmatprep.subr.mxu0 %v4064
    %4211 = vmatpush1.msra.mxu0 %v4063
    %4212 = vmatprep.subr.mxu0 %v4066
    %4213 = vmatpush1.msra.mxu0 %v4065
    %4214 = vmatprep.subr.mxu0 %v4068
    %4215 = vmatpush1.msra.mxu0 %v4067
    %4216 = vmatprep.subr.mxu0 %v4070
    %4217 = vmatpush1.msra.mxu0 %v4069
    %4218 = vmatprep.subr.mxu0 %v4072
    %4219 = vmatpush1.msra.mxu0 %v4071
    %4220 = vmatprep.subr.mxu0 %v4074
    %4221 = vmatpush1.msra.mxu0 %v4073
    %4222 = vmatprep.subr.mxu0 %v4076
    %4223 = vmatpush1.msra.mxu0 %v4075
    %4224 = vmatprep.subr.mxu0 %v4078
    %4225 = vmatpush1.msra.mxu0 %v4077
    %4226 = vmatprep.subr.mxu0 %v4080
    %4227 = vmatpush1.msra.mxu0 %v4079
    %4228 = vmatprep.subr.mxu0 %v4082
    %4229 = vmatpush1.msra.mxu0 %v4081
    %4230 = vmatprep.subr.mxu0 %v4084
    %4231 = vmatpush1.msra.mxu0 %v4083
    %4232 = vmatprep.subr.mxu0 %v4086
    %4233 = vmatpush1.msra.mxu0 %v4085
    %4234 = vmatprep.subr.mxu0 %v4088
    %4235 = vmatpush1.msra.mxu0 %v4087
    %4236 = vmatprep.subr.mxu0 %v4090
    %4237 = vmatpush1.msra.mxu0 %v4089
    %4238 = vmatprep.subr.mxu0 %v4092
    %4239 = vmatpush1.msra.mxu0 %v4091
    %4240 = vmatprep.subr.mxu0 %v4094
    %4241 = vmatpush1.msra.mxu0 %v4093
    %4242 = vmatprep.subr.mxu0 %v4096
    %4243 = vmatpush1.msra.mxu0 %v4095
    %4244 = vmatprep.subr.mxu0 %v4098
    %4245 = vmatpush1.msra.mxu0 %v4097
    %4246 = vmatprep.subr.mxu0 %v4100
    %4247 = vmatpush1.msra.mxu0 %v4099
    %4248 = vmatprep.subr.mxu0 %v4102
    %4249 = vmatpush1.msra.mxu0 %v4101
    %4250 = vmatprep.subr.mxu0 %v4104
    %4251 = vmatpush1.msra.mxu0 %v4103
    %4252 = vmatprep.mubr.f32.mxu0 %v3976
    %4253 = vmatmul.mubr.f32.gmra.mrb[0].mxu0 %v3975
    %v4254 = vpop.f32.mrb[0].mxu0
    %v4255 = vadd.f32 %v4184, %v4254
    %v4256 = vpop.f32.mrb[0].mxu0
    %v4257 = vadd.f32 %v4186, %v4256
    %4258 = vdwg.mxu0
    %v4259 = vld [vmem:[#allocation40] sm:$0x3]
    %v4261 = vlaneseq
    %v4262 = vshrl.u32 %v4261, 7
    %v4263 = vsub.s32 0, %v4262
    %v4264 = vrot.slane %v4259, %v4263
    %v4265 = vlaneseq
    %v4266 = vshrl.u32 %v4265, 7
    %v4267 = vsub.s32 1, %v4266
    %v4268 = vrot.slane %v4259, %v4267
    %v4271 = vmul.f32 %v4255, %v4264
    %v4272 = vmul.f32 %v4257, %v4268
    %v4273 = vld [vmem:[#allocation41] sm:$0x3]
    %v4275 = vlaneseq
    %v4276 = vshrl.u32 %v4275, 7
    %v4277 = vsub.s32 0, %v4276
    %v4278 = vrot.slane %v4273, %v4277
    %v4279 = vlaneseq
    %v4280 = vshrl.u32 %v4279, 7
    %v4281 = vsub.s32 1, %v4280
    %v4282 = vrot.slane %v4273, %v4281
    %v4285 = vadd.f32 %v4271, %v4278
    %v4286 = vadd.f32 %v4272, %v4282
    %v4287 = vmax.f32 %v4285, 0.0
    %v4288 = vmax.f32 %v4286, 0.0
    %v4289 = vld [vmem:[%s95] sm:$0xff]
    %v4290 = vld [vmem:[%s95 + $0x8] sm:$0xff]
    %v4291 = vld [vmem:[%s95 + $0x10] sm:$0xff]
    %v4292 = vld [vmem:[%s95 + $0x18] sm:$0xff]
    %v4293 = vld [vmem:[%s95 + $0x20] sm:$0xff]
    %v4294 = vld [vmem:[%s95 + $0x28] sm:$0xff]
    %v4295 = vld [vmem:[%s95 + $0x30] sm:$0xff]
    %v4296 = vld [vmem:[%s95 + $0x38] sm:$0xff]
    %v4297 = vld [vmem:[%s95 + $0x40] sm:$0xff]
    %v4298 = vld [vmem:[%s95 + $0x48] sm:$0xff]
    %v4299 = vld [vmem:[%s95 + $0x50] sm:$0xff]
    %v4300 = vld [vmem:[%s95 + $0x58] sm:$0xff]
    %v4301 = vld [vmem:[%s95 + $0x60] sm:$0xff]
    %v4302 = vld [vmem:[%s95 + $0x68] sm:$0xff]
    %v4303 = vld [vmem:[%s95 + $0x70] sm:$0xff]
    %v4304 = vld [vmem:[%s95 + $0x78] sm:$0xff]
    %v4305 = vld [vmem:[%s95 + $0x80] sm:$0xff]
    %v4306 = vld [vmem:[%s95 + $0x88] sm:$0xff]
    %v4307 = vld [vmem:[%s95 + $0x90] sm:$0xff]
    %v4308 = vld [vmem:[%s95 + $0x98] sm:$0xff]
    %v4309 = vld [vmem:[%s95 + $0xa0] sm:$0xff]
    %v4310 = vld [vmem:[%s95 + $0xa8] sm:$0xff]
    %v4311 = vld [vmem:[%s95 + $0xb0] sm:$0xff]
    %v4312 = vld [vmem:[%s95 + $0xb8] sm:$0xff]
    %v4313 = vld [vmem:[%s95 + $0xc0] sm:$0xff]
    %v4314 = vld [vmem:[%s95 + $0xc8] sm:$0xff]
    %v4315 = vld [vmem:[%s95 + $0xd0] sm:$0xff]
    %v4316 = vld [vmem:[%s95 + $0xd8] sm:$0xff]
    %v4317 = vld [vmem:[%s95 + $0xe0] sm:$0xff]
    %v4318 = vld [vmem:[%s95 + $0xe8] sm:$0xff]
    %v4319 = vld [vmem:[%s95 + $0xf0] sm:$0xff]
    %v4320 = vld [vmem:[%s95 + $0xf8] sm:$0xff]
    %v4321 = vld [vmem:[#allocation2] sm:$0x1]
    %v4323 = vlaneseq
    %v4324 = vshrl.u32 %v4323, 7
    %v4325 = vsub.s32 0, %v4324
    %v4326 = vrot.slane %v4321, %v4325
    %4328 = vmatprep.subr.mxu0 0.0
    %4329 = vmatpush1.msra.mxu0 %v4289
    %4330 = vmatprep.subr.mxu0 0.0
    %4331 = vmatpush1.msra.mxu0 %v4290
    %4332 = vmatprep.subr.mxu0 0.0
    %4333 = vmatpush1.msra.mxu0 %v4291
    %4334 = vmatprep.subr.mxu0 0.0
    %4335 = vmatpush1.msra.mxu0 %v4292
    %4336 = vmatprep.subr.mxu0 0.0
    %4337 = vmatpush1.msra.mxu0 %v4293
    %4338 = vmatprep.subr.mxu0 0.0
    %4339 = vmatpush1.msra.mxu0 %v4294
    %4340 = vmatprep.subr.mxu0 0.0
    %4341 = vmatpush1.msra.mxu0 %v4295
    %4342 = vmatprep.subr.mxu0 0.0
    %4343 = vmatpush1.msra.mxu0 %v4296
    %4344 = vmatprep.subr.mxu0 0.0
    %4345 = vmatpush1.msra.mxu0 %v4297
    %4346 = vmatprep.subr.mxu0 0.0
    %4347 = vmatpush1.msra.mxu0 %v4298
    %4348 = vmatprep.subr.mxu0 0.0
    %4349 = vmatpush1.msra.mxu0 %v4299
    %4350 = vmatprep.subr.mxu0 0.0
    %4351 = vmatpush1.msra.mxu0 %v4300
    %4352 = vmatprep.subr.mxu0 0.0
    %4353 = vmatpush1.msra.mxu0 %v4301
    %4354 = vmatprep.subr.mxu0 0.0
    %4355 = vmatpush1.msra.mxu0 %v4302
    %4356 = vmatprep.subr.mxu0 0.0
    %4357 = vmatpush1.msra.mxu0 %v4303
    %4358 = vmatprep.subr.mxu0 0.0
    %4359 = vmatpush1.msra.mxu0 %v4304
    %4360 = vmatprep.subr.mxu0 0.0
    %4361 = vmatpush1.msra.mxu0 %v4305
    %4362 = vmatprep.subr.mxu0 0.0
    %4363 = vmatpush1.msra.mxu0 %v4306
    %4364 = vmatprep.subr.mxu0 0.0
    %4365 = vmatpush1.msra.mxu0 %v4307
    %4366 = vmatprep.subr.mxu0 0.0
    %4367 = vmatpush1.msra.mxu0 %v4308
    %4368 = vmatprep.subr.mxu0 0.0
    %4369 = vmatpush1.msra.mxu0 %v4309
    %4370 = vmatprep.subr.mxu0 0.0
    %4371 = vmatpush1.msra.mxu0 %v4310
    %4372 = vmatprep.subr.mxu0 0.0
    %4373 = vmatpush1.msra.mxu0 %v4311
    %4374 = vmatprep.subr.mxu0 0.0
    %4375 = vmatpush1.msra.mxu0 %v4312
    %4376 = vmatprep.subr.mxu0 0.0
    %4377 = vmatpush1.msra.mxu0 %v4313
    %4378 = vmatprep.subr.mxu0 0.0
    %4379 = vmatpush1.msra.mxu0 %v4314
    %4380 = vmatprep.subr.mxu0 0.0
    %4381 = vmatpush1.msra.mxu0 %v4315
    %4382 = vmatprep.subr.mxu0 0.0
    %4383 = vmatpush1.msra.mxu0 %v4316
    %4384 = vmatprep.subr.mxu0 0.0
    %4385 = vmatpush1.msra.mxu0 %v4317
    %4386 = vmatprep.subr.mxu0 0.0
    %4387 = vmatpush1.msra.mxu0 %v4318
    %4388 = vmatprep.subr.mxu0 0.0
    %4389 = vmatpush1.msra.mxu0 %v4319
    %4390 = vmatprep.subr.mxu0 0.0
    %4391 = vmatpush1.msra.mxu0 %v4320
    %4392 = vmatprep.mubr.f32.mxu0 %v4288
    %4393 = vmatmul.mubr.f32.gmra.mrb[0].mxu0 %v4287
    %v4394 = vpop.f32.mrb[0].mxu0
    %v4395 = vadd.f32 %v4326, %v4394
    %v4396 = vpop.f32.mrb[0].mxu0
    %4397 = vdwg.mxu0
    %v4398 = vsub.f32 0.0, %v4395
    %v4399 = vmul.f32 %v4398, 1.442695
    %v4400 = vpow.pop %v4399
    %v4401 = vadd.f32 %v4400, 1.0
    %v4402 = vrcp.pop %v4401
    %v4403 = vmul.f32 1.0, %v4402
    %vm4404 = vcmask 1024
    %4405 = vst.msk [vmem:[%s99] sm:$0x3] %vm4404, %v4403
    // Predicated region
    $region302: #{forward.1} parent=1 // pred_check
      _
    $region303: #{forward.1} parent=1 // pred_check_branch
      %4407 = sbr.rel (0) target = $region305
    $region304: #{forward.1} parent=1 // pred_region
      _
    $region305: #{forward.1} parent=1 // pred_fallthru
      _
    // Predicated region
    $region306: #{forward.1} parent=1 // pred_check
      _
    $region307: #{forward.1} parent=1 // pred_check_branch
      %4409 = sbr.rel (0) target = $region309
    $region308: #{forward.1} parent=1 // pred_region
      _
    $region309: #{forward.1} parent=1 // pred_fallthru
      _
    %4410 = vsyncpa [#allocation4], 1
    %4411 = vsyncpa [#allocation6], 1
    %4412 = vsyncpa [#allocation9], 1
    %4413 = vsyncpa [#allocation12], 1
    %4414 = vsyncpa [#allocation15], 1
    %4415 = vsyncpa [#allocation18], 1
    %4416 = vsyncpa [#allocation21], 1
    %4417 = vsyncpa [#allocation24], 1
    %4418 = vsyncpa [#allocation27], 1
    %4419 = vsyncpa [#allocation30], 1
    %4420 = vsyncpa [#allocation33], 1
    %4421 = vsyncpa [#allocation36], 1
    %4422 = vsyncpa [#allocation39], 1
    %4423 = vsyncpa [#allocation42], 1

</llo_original>
